<compile_context>
chip_gen: v5e
topology: v5e:2x2
jax: 0.10.0
libtpu: 0.0.40
codegen_flags: <defaults>
</compile_context>

<pallas_src>
import functools

import jax
import jax.numpy as jnp
from jax.experimental import pallas as pl
from jax.experimental.pallas import tpu as pltpu

_EPS = 1e-5
_VMEM_LIMIT = 32 * 1024 * 1024


# ----------------------------------------------------------------------------
# helpers
# ----------------------------------------------------------------------------
def _round_up(x, m):
    return (x + m - 1) // m * m


def _pick_tile(d, pref, align):
    """Largest tile <= pref that exactly divides d (aligned when it tiles the dim);
    whole dim when small; falls back to pref (=> zero padding) otherwise."""
    if d <= pref:
        return d
    t = (pref // align) * align
    while t >= align:
        if d % t == 0:
            return t
        t -= align
    return (pref // align) * align


def _row_tile(rows, max_rows=1024):
    if rows <= max_rows:
        return rows
    t = (max_rows // 8) * 8
    while t >= 8:
        if rows % t == 0:
            return t
        t -= 8
    # TODO(synk): ragged fallback keeps the whole slab per step; switch to masked
    # stores for huge row counts with no aligned divisor.
    return rows


def _bn_scale_shift(gamma, beta, mean, var):
    scale = gamma * jax.lax.rsqrt(var + _EPS)
    return scale, beta - mean * scale


def _finish_stats(stats, count):
    """stats: (2, C) [sum, sum-of-squares] -> (mean, biased variance)."""
    mean = stats[0] / count
    var = jnp.maximum(stats[1] / count - mean * mean, 0.0)
    return mean, var


# ----------------------------------------------------------------------------
# 1x1 conv = tiled MXU matmul with fused input affine(+ReLU) and BN-stats epilogue
# ----------------------------------------------------------------------------
def _mm_stats_kernel(a_ref, b_ref, sc_ref, sh_ref, o_ref, st_ref, acc_ref,
                     *, fuse_affine, mask_rows, true_m, tm):
    k = pl.program_id(2)

    @pl.when(k == 0)
    def _():
        acc_ref[...] = jnp.zeros_like(acc_ref)

    a = a_ref[...]
    if fuse_affine:
        # previous layer's BN scale/shift + ReLU fused into the A-tile prologue
        a = jnp.maximum(a.astype(jnp.float32) * sc_ref[...] + sh_ref[...], 0.0)
    acc_ref[...] += jnp.dot(a.astype(jnp.bfloat16), b_ref[...],
                            preferred_element_type=jnp.float32)

    @pl.when(k == pl.num_programs(2) - 1)
    def _():
        r = acc_ref[...]
        o_ref[...] = r.astype(o_ref.dtype)
        if mask_rows:
            # padded rows would otherwise pollute the stats when the input affine
            # turns zero padding into relu(shift) != 0
            row = (jax.lax.broadcasted_iota(jnp.int32, r.shape, 0)
                   + pl.program_id(0) * tm)
            r = jnp.where(row < true_m, r, 0.0)
        st_ref[0] = jnp.concatenate(
            [jnp.sum(r, axis=0, keepdims=True),
             jnp.sum(r * r, axis=0, keepdims=True)], axis=0)


def conv1x1_bn_stats(a, w, in_scale=None, in_shift=None):
    """1x1 conv as a tiled matmul (bf16 MXU inputs, f32 accumulation).

    a: (M, K) activations (f32 or bf16, cast in-kernel); w: (Cout, K[,1,1]) OIHW.
    Optional fused per-input-channel affine+ReLU (the previous layer's BN).
    Returns (bf16 (M, Cout) conv output, f32 (2, Cout) [sum, sum-of-squares])."""
    M, K = a.shape
    Cout = w.shape[0]
    b = w.reshape(Cout, K).T.astype(jnp.bfloat16)
    fuse = in_scale is not None
    if not fuse:
        in_scale = jnp.ones((K,), jnp.float32)
        in_shift = jnp.zeros((K,), jnp.float32)

    TM = _pick_tile(M, 512, 8)
    TK = _pick_tile(K, 512, 128)
    TN = _pick_tile(Cout, 256, 128)
    Mp, Kp, Np = _round_up(M, TM), _round_up(K, TK), _round_up(Cout, TN)
    # TODO(synk): ragged dims fall back to zero padding (extra XLA copies); replace
    # with pl.when-guarded masked stores if such shapes show up in practice.
    if (Mp, Kp) != (M, K):
        a = jnp.pad(a, ((0, Mp - M), (0, Kp - K)))
    if (Kp, Np) != (K, Cout):
        b = jnp.pad(b, ((0, Kp - K), (0, Np - Cout)))
    if Kp != K:
        in_scale = jnp.pad(in_scale, (0, Kp - K))
        in_shift = jnp.pad(in_shift, (0, Kp - K))

    grid = (Mp // TM, Np // TN, Kp // TK)
    out, st = pl.pallas_call(
        functools.partial(_mm_stats_kernel, fuse_affine=fuse,
                          mask_rows=fuse and Mp != M, true_m=M, tm=TM),
        out_shape=(jax.ShapeDtypeStruct((Mp, Np), jnp.bfloat16),
                   jax.ShapeDtypeStruct((grid[0], 2, Np), jnp.float32)),
        grid_spec=pltpu.PrefetchScalarGridSpec(
            num_scalar_prefetch=0,
            grid=grid,
            in_specs=[pl.BlockSpec((TM, TK), lambda i, j, k: (i, k)),
                      pl.BlockSpec((TK, TN), lambda i, j, k: (k, j)),
                      pl.BlockSpec((1, TK), lambda i, j, k: (0, k)),
                      pl.BlockSpec((1, TK), lambda i, j, k: (0, k))],
            out_specs=[pl.BlockSpec((TM, TN), lambda i, j, k: (i, j)),
                       pl.BlockSpec((1, 2, TN), lambda i, j, k: (i, 0, j))],
            scratch_shapes=[pltpu.VMEM((TM, TN), jnp.float32)]),
        compiler_params=pltpu.CompilerParams(
            dimension_semantics=("parallel", "parallel", "arbitrary"),
            vmem_limit_bytes=_VMEM_LIMIT),
    )(a, b, in_scale.reshape(1, Kp), in_shift.reshape(1, Kp))
    if (Mp, Np) != (M, Cout):
        out = out[:M, :Cout]
        st = st[:, :, :Cout]
    return out, jnp.sum(st, axis=0)


# ----------------------------------------------------------------------------
# 3x3 conv (stride s, pad 1) with fused bn1+ReLU prologue and bn2-stats epilogue
# ----------------------------------------------------------------------------
def _conv3x3_kernel(x_ref, m_ref, w_ref, sc_ref, sh_ref, o_ref, st_ref, acc_ref,
                    *, s, BH, Wo):
    # x_ref : (s*s, Hq, Wq, C) bf16  stride-phase slabs of padded y1 (one image;
    #                                resident across the row-block grid axis)
    # m_ref : (s*s, Hq, Wq, 1) bf16  1 inside the image, 0 in padding
    # w_ref : (9, C, Cout)     bf16
    # sc/sh : (1, C)           f32   bn1 scale / shift
    # o_ref : (1, BH*Wo, Cout) bf16
    # st_ref: (1, 2, Cout)     f32   per-row-block partial [sum, sum-of-squares]
    # acc   : (BH*Wo, Cout)    f32 VMEM scratch accumulator
    C = x_ref.shape[-1]
    rows = BH + 2 // s                     # slab rows needed by this row block
    r0 = pl.program_id(1) * BH
    x = x_ref[:, pl.ds(r0, rows), :, :].astype(jnp.float32)
    m = m_ref[:, pl.ds(r0, rows), :, :].astype(jnp.float32)
    # fused bn1 affine + ReLU; the pad mask keeps the conv's zero padding exactly 0
    a = (jnp.maximum(x * sc_ref[0, :] + sh_ref[0, :], 0.0) * m).astype(jnp.bfloat16)

    acc_ref[...] = jnp.zeros_like(acc_ref)
    # TODO(synk): stack the 9 taps along the contraction dim (single K=9*C MXU dot)
    # once lane-offset concatenation cost is verified on all targets; also shift the
    # oj-offset slices with pltpu.roll to avoid sublane-unaligned relayouts.
    for t in range(9):                     # 9 taps, accumulated in VMEM f32
        i, j = t // 3, t % 3
        ph = (i % s) * s + (j % s)
        oi, oj = i // s, j // s
        xt = a[ph, oi:oi + BH, oj:oj + Wo, :].reshape(BH * Wo, C)
        acc_ref[...] += jnp.dot(xt, w_ref[t], preferred_element_type=jnp.float32)

    out = acc_ref[...]
    o_ref[0] = out.astype(o_ref.dtype)
    st_ref[0] = jnp.concatenate(
        [jnp.sum(out, axis=0, keepdims=True),
         jnp.sum(out * out, axis=0, keepdims=True)], axis=0)


def conv3x3_bn_stats(y1, w, scale1, shift1, stride):
    """3x3 / stride-s / pad-1 conv of a1 = relu(bn1(y1)), bn1 fused in the prologue,
    bn2 stats fused in the epilogue.

    y1: (N, H, W, C) bf16 pre-BN conv1 output; w: (Cout, C, 3, 3) OIHW.
    Returns (bf16 (N, Ho, Wo, Cout), f32 (2, Cout) [sum, sum-of-squares])."""
    N, H, W, C = y1.shape
    Cout = w.shape[0]
    s = stride
    Ho = (H + 2 - 3) // s + 1
    Wo = (W + 2 - 3) // s + 1
    Hq = max(Ho + 2 // s, -(-(H + 2) // s))
    Wq = max(Wo + 2 // s, -(-(W + 2) // s))
    Hp, Wp = s * Hq, s * Wq

    # Stride-phase decomposition: tap (i, j) of a stride-s conv becomes a unit-stride
    # contiguous slice of phase ((i % s), (j % s)) -> no strided loads in-kernel.
    # TODO(synk): for s > 1 this pad + reshape/transpose is one extra bf16 HBM copy
    # of y1; fold it into the kernel (strided pl.ds loads or lane-folded W pairs).
    def phase(t):
        n_, c_ = t.shape[0], t.shape[-1]
        tp = jnp.pad(t, ((0, 0), (1, Hp - H - 1), (1, Wp - W - 1), (0, 0)))
        tp = tp.reshape(n_, Hq, s, Wq, s, c_).transpose(0, 2, 4, 1, 3, 5)
        return tp.reshape(n_ * s * s, Hq, Wq, c_)

    xph = phase(y1)
    mask = phase(jnp.ones((1, H, W, 1), jnp.bfloat16))
    w9 = jnp.transpose(w, (2, 3, 1, 0)).reshape(9, C, Cout).astype(jnp.bfloat16)

    # Output-row blocking: bounds the accumulator / patch live set and (for v7x)
    # adds a second parallel grid axis beyond batch.
    BH = Ho
    if Ho * Wo > 512:
        for cand in range(Ho - 1, 0, -1):
            if Ho % cand == 0 and cand * Wo <= 512 and (cand * Wo) % 8 == 0:
                BH = cand
                break
    nrb = Ho // BH

    out, st = pl.pallas_call(
        functools.partial(_conv3x3_kernel, s=s, BH=BH, Wo=Wo),
        out_shape=(jax.ShapeDtypeStruct((N, Ho * Wo, Cout), jnp.bfloat16),
                   jax.ShapeDtypeStruct((N * nrb, 2, Cout), jnp.float32)),
        grid_spec=pltpu.PrefetchScalarGridSpec(
            num_scalar_prefetch=0,
            grid=(N, nrb),
            in_specs=[pl.BlockSpec((s * s, Hq, Wq, C), lambda n, r: (n, 0, 0, 0)),
                      pl.BlockSpec((s * s, Hq, Wq, 1), lambda n, r: (0, 0, 0, 0)),
                      pl.BlockSpec((9, C, Cout), lambda n, r: (0, 0, 0)),
                      pl.BlockSpec((1, C), lambda n, r: (0, 0)),
                      pl.BlockSpec((1, C), lambda n, r: (0, 0))],
            out_specs=[pl.BlockSpec((1, BH * Wo, Cout), lambda n, r: (n, r, 0)),
                       pl.BlockSpec((1, 2, Cout), lambda n, r: (n * nrb + r, 0, 0))],
            scratch_shapes=[pltpu.VMEM((BH * Wo, Cout), jnp.float32)]),
        compiler_params=pltpu.CompilerParams(
            dimension_semantics=("parallel", "parallel"),
            vmem_limit_bytes=_VMEM_LIMIT),
    )(xph, mask, w9, scale1.reshape(1, C), shift1.reshape(1, C))
    return out.reshape(N, Ho, Wo, Cout), jnp.sum(st, axis=0)


# ----------------------------------------------------------------------------
# fused: bn3-apply + (downsample-)bn-apply + residual add + ReLU (single pass)
# ----------------------------------------------------------------------------
def _bn_add_relu_kernel(y_ref, id_ref, ysc_ref, ysh_ref, isc_ref, ish_ref, o_ref):
    y = y_ref[...].astype(jnp.float32) * ysc_ref[...] + ysh_ref[...]
    idn = id_ref[...].astype(jnp.float32) * isc_ref[...] + ish_ref[...]
    o_ref[...] = jnp.maximum(y + idn, 0.0).astype(o_ref.dtype)


def bn_add_relu(y, idn, ysc, ysh, isc, ish):
    rows, C = y.shape
    tr = _row_tile(rows)
    row_spec = pl.BlockSpec((tr, C), lambda i: (i, 0))
    ch_spec = pl.BlockSpec((1, C), lambda i: (0, 0))
    return pl.pallas_call(
        _bn_add_relu_kernel,
        out_shape=jax.ShapeDtypeStruct((rows, C), jnp.float32),
        grid_spec=pltpu.PrefetchScalarGridSpec(
            num_scalar_prefetch=0,
            grid=(rows // tr,),
            in_specs=[row_spec, row_spec, ch_spec, ch_spec, ch_spec, ch_spec],
            out_specs=row_spec),
        compiler_params=pltpu.CompilerParams(
            dimension_semantics=("parallel",),
            vmem_limit_bytes=_VMEM_LIMIT),
    )(y, idn, ysc.reshape(1, C), ysh.reshape(1, C),
      isc.reshape(1, C), ish.reshape(1, C))


# ----------------------------------------------------------------------------
# Bottleneck block (expansion = 4)
# ----------------------------------------------------------------------------
def init_bottleneck_params(key, in_channels, out_channels, stride):
    exp = 4
    ks = jax.random.split(key, 4)

    def conv_w(k, cout, cin, kh, kw):
        fan_in = cin * kh * kw
        return (jax.random.normal(k, (cout, cin, kh, kw), jnp.float32)
                / jnp.sqrt(float(fan_in)))

    p = {
        "stride": stride,
        "conv1": conv_w(ks[0], out_channels, in_channels, 1, 1),
        "bn1": (jnp.ones(out_channels, jnp.float32),
                jnp.zeros(out_channels, jnp.float32)),
        "conv2": conv_w(ks[1], out_channels, out_channels, 3, 3),
        "bn2": (jnp.ones(out_channels, jnp.float32),
                jnp.zeros(out_channels, jnp.float32)),
        "conv3": conv_w(ks[2], out_channels * exp, out_channels, 1, 1),
        "bn3": (jnp.ones(out_channels * exp, jnp.float32),
                jnp.zeros(out_channels * exp, jnp.float32)),
    }
    if stride != 1 or in_channels != out_channels * exp:
        p["down_conv"] = conv_w(ks[3], out_channels * exp, in_channels, 1, 1)
        p["down_bn"] = (jnp.ones(out_channels * exp, jnp.float32),
                        jnp.zeros(out_channels * exp, jnp.float32))
    return p


def bottleneck_forward(params, x_nchw):
    s = params["stride"]
    x = jnp.transpose(x_nchw, (0, 2, 3, 1))                     # NCHW -> NHWC
    N, H, W, Cin = x.shape
    C = params["conv1"].shape[0]
    C3 = params["conv3"].shape[0]
    x2d = x.reshape(N * H * W, Cin)

    # conv1 (1x1) + bn1-stats epilogue
    y1, st1 = conv1x1_bn_stats(x2d, params["conv1"])            # bf16 (N*H*W, C)
    m1, v1 = _finish_stats(st1, N * H * W)
    sc1, sh1 = _bn_scale_shift(params["bn1"][0], params["bn1"][1], m1, v1)

    # conv2 (3x3, stride) with fused bn1+relu prologue + bn2-stats epilogue
    y2, st2 = conv3x3_bn_stats(y1.reshape(N, H, W, C), params["conv2"], sc1, sh1, s)
    _, Ho, Wo, _ = y2.shape
    rows2 = N * Ho * Wo
    m2, v2 = _finish_stats(st2, rows2)
    sc2, sh2 = _bn_scale_shift(params["bn2"][0], params["bn2"][1], m2, v2)

    # conv3 (1x1, expansion) with fused bn2+relu prologue + bn3-stats epilogue
    y3, st3 = conv1x1_bn_stats(y2.reshape(rows2, C), params["conv3"],
                               in_scale=sc2, in_shift=sh2)      # bf16 (rows2, 4C)
    m3, v3 = _finish_stats(st3, rows2)
    sc3, sh3 = _bn_scale_shift(params["bn3"][0], params["bn3"][1], m3, v3)

    # identity / downsample branch
    if "down_conv" in params:
        if s > 1:
            xd = x.astype(jnp.bfloat16)[:, ::s, ::s, :].reshape(rows2, Cin)
        else:
            xd = x2d
        yd, std = conv1x1_bn_stats(xd, params["down_conv"])     # bf16 (rows2, 4C)
        md, vd = _finish_stats(std, rows2)
        scd, shd = _bn_scale_shift(params["down_bn"][0], params["down_bn"][1], md, vd)
        identity = yd
    else:
        identity = x.reshape(rows2, Cin)                        # Cin == 4C here
        scd = jnp.ones((C3,), jnp.float32)
        shd = jnp.zeros((C3,), jnp.float32)

    # fused: bn3-apply + downsample-bn-apply + residual add + relu (one HBM pass)
    out = bn_add_relu(y3, identity, sc3, sh3, scd, shd)
    out = out.reshape(N, Ho, Wo, C3)
    return jnp.transpose(out, (0, 3, 1, 2))                     # NHWC -> NCHW


# ----------------------------------------------------------------------------
# pure-JAX reference (f32 throughout) for a loose numerical self-check
# ----------------------------------------------------------------------------
def _reference_forward(params, x_nchw):
    def conv(x, w, stride, padding):
        return jax.lax.conv_general_dilated(
            x, w, (stride, stride), [(padding, padding)] * 2,
            dimension_numbers=("NCHW", "OIHW", "NCHW"))

    def bn(x, gamma, beta):
        mean = jnp.mean(x, axis=(0, 2, 3), keepdims=True)
        var = jnp.var(x, axis=(0, 2, 3), keepdims=True)
        return ((x - mean) * jax.lax.rsqrt(var + _EPS)
                * gamma[None, :, None, None] + beta[None, :, None, None])

    s = params["stride"]
    out = jax.nn.relu(bn(conv(x_nchw, params["conv1"], 1, 0), *params["bn1"]))
    out = jax.nn.relu(bn(conv(out, params["conv2"], s, 1), *params["bn2"]))
    out = bn(conv(out, params["conv3"], 1, 0), *params["bn3"])
    if "down_conv" in params:
        idn = bn(conv(x_nchw, params["down_conv"], s, 0), *params["down_bn"])
    else:
        idn = x_nchw
    return jax.nn.relu(out + idn)


if __name__ == "__main__":
    def run_case(case_key, batch, cin, cout, spatial, stride):
        kp, kx = jax.random.split(case_key)
        params = init_bottleneck_params(kp, cin, cout, stride)
        x = jax.random.normal(kx, (batch, cin, spatial, spatial), jnp.float32)

        fwd = jax.jit(functools.partial(bottleneck_forward, params))
        out = jax.block_until_ready(fwd(x))

        ho = (spatial + 2 - 3) // stride + 1
        assert out.shape == (batch, cout * 4, ho, ho), out.shape
        assert bool(jnp.all(jnp.isfinite(out)))

        ref = jax.jit(functools.partial(_reference_forward, params))(x)
        max_err = float(jnp.max(jnp.abs(out - ref)))
        mean_err = float(jnp.mean(jnp.abs(out - ref)))
        assert max_err < 0.8 and mean_err < 0.08, (max_err, mean_err)

    key = jax.random.PRNGKey(0)
    k1, k2 = jax.random.split(key)
    # downsample path (stride 2) and identity path (stride 1, in == 4*out)
    run_case(k1, batch=2, cin=64, cout=64, spatial=16, stride=2)
    run_case(k2, batch=2, cin=256, cout=64, spatial=32, stride=1)

    print("KERNEL_OK")
</pallas_src>

<mosaic_0001>
module attributes {stable_mosaic.version = 11 : i64} {
  func.func @_mm_stats_kernel(%arg0: i32, %arg1: i32, %arg2: i32, %arg3: memref<512x64xf32, #tpu.memory_space<vmem>>, %arg4: memref<64x64xbf16, #tpu.memory_space<vmem>>, %arg5: memref<1x64xf32, #tpu.memory_space<vmem>>, %arg6: memref<1x64xf32, #tpu.memory_space<vmem>>, %arg7: memref<512x64xbf16, #tpu.memory_space<vmem>>, %arg8: memref<1x2x64xf32, #tpu.memory_space<vmem>>, %arg9: memref<512x64xf32, #tpu.memory_space<vmem>>) attributes {dimension_semantics = [#tpu.dimension_semantics<parallel>, #tpu.dimension_semantics<parallel>, #tpu.dimension_semantics<arbitrary>], iteration_bounds = array<i64: 1, 1, 1>, scalar_prefetch = 0 : i64, scratch_operands = 1 : i64, tpu.core_type = #tpu.core_type<tc>, window_params = [{transform_indices = @transform_0, window_bounds = array<i64: 512, 64>}, {transform_indices = @transform_1, window_bounds = array<i64: 64, 64>}, {transform_indices = @transform_2, window_bounds = array<i64: 1, 64>}, {transform_indices = @transform_3, window_bounds = array<i64: 1, 64>}, {transform_indices = @transform_4, window_bounds = array<i64: 512, 64>}, {transform_indices = @transform_5, window_bounds = array<i64: 1, 2, 64>}]} {
    %c0_i32 = arith.constant 0 : i32
    %0 = arith.cmpi eq, %arg2, %c0_i32 : i32
    %1 = arith.extui %0 : i1 to i32
    %c0_i32_0 = arith.constant 0 : i32
    %2 = arith.cmpi ne, %1, %c0_i32_0 : i32
    scf.if %2 {
      %cst_10 = arith.constant 0.000000e+00 : f32
      %13 = vector.broadcast %cst_10 : f32 to vector<512x64xf32>
      %c0_11 = arith.constant 0 : index
      %c0_12 = arith.constant 0 : index
      %14 = vector.load %arg9[%c0_11, %c0_12] : memref<512x64xf32, #tpu.memory_space<vmem>>, vector<512x64xf32>
      tpu.vector_store %arg9[%c0_11, %c0_12], %13 {strides = array<i32>} : memref<512x64xf32, #tpu.memory_space<vmem>>, vector<512x64xf32>,
    } else {
    }
    %c0 = arith.constant 0 : index
    %c0_1 = arith.constant 0 : index
    %3 = vector.load %arg3[%c0, %c0_1] : memref<512x64xf32, #tpu.memory_space<vmem>>, vector<512x64xf32>
    %c0_2 = arith.constant 0 : index
    %c0_3 = arith.constant 0 : index
    %4 = vector.load %arg9[%c0_2, %c0_3] : memref<512x64xf32, #tpu.memory_space<vmem>>, vector<512x64xf32>
    %5 = arith.truncf %3 : vector<512x64xf32> to vector<512x64xbf16>
    %c0_4 = arith.constant 0 : index
    %c0_5 = arith.constant 0 : index
    %6 = vector.load %arg4[%c0_4, %c0_5] : memref<64x64xbf16, #tpu.memory_space<vmem>>, vector<64x64xbf16>
    %cst = arith.constant dense<0.000000e+00> : vector<512x64xf32>
    %7 = tpu.matmul %5, %6, %cst {dimension_numbers = #tpu.dot_dimension_numbers<[1], [0], [0], [1], [0, 0, 1, 1], [], []>} : vector<512x64xbf16>, vector<64x64xbf16>, vector<512x64xf32> -> vector<512x64xf32>
    %8 = arith.addf %4, %7 : vector<512x64xf32>
    %c0_6 = arith.constant 0 : index
    %c0_7 = arith.constant 0 : index
    %9 = vector.load %arg9[%c0_6, %c0_7] : memref<512x64xf32, #tpu.memory_space<vmem>>, vector<512x64xf32>
    tpu.vector_store %arg9[%c0_6, %c0_7], %8 {strides = array<i32>} : memref<512x64xf32, #tpu.memory_space<vmem>>, vector<512x64xf32>,
    %c0_i32_8 = arith.constant 0 : i32
    %10 = arith.cmpi eq, %arg2, %c0_i32_8 : i32
    %11 = arith.extui %10 : i1 to i32
    %c0_i32_9 = arith.constant 0 : i32
    %12 = arith.cmpi ne, %11, %c0_i32_9 : i32
    scf.if %12 {
      %c0_10 = arith.constant 0 : index
      %c0_11 = arith.constant 0 : index
      %13 = vector.load %arg9[%c0_10, %c0_11] : memref<512x64xf32, #tpu.memory_space<vmem>>, vector<512x64xf32>
      %14 = arith.truncf %13 : vector<512x64xf32> to vector<512x64xbf16>
      %c0_12 = arith.constant 0 : index
      %c0_13 = arith.constant 0 : index
      %15 = vector.load %arg7[%c0_12, %c0_13] : memref<512x64xbf16, #tpu.memory_space<vmem>>, vector<512x64xbf16>
      tpu.vector_store %arg7[%c0_12, %c0_13], %14 {strides = array<i32>} : memref<512x64xbf16, #tpu.memory_space<vmem>>, vector<512x64xbf16>,
      %cst_14 = arith.constant dense<0.000000e+00> : vector<64xf32>
      %16 = vector.multi_reduction <add>, %13, %cst_14 [0] : vector<512x64xf32> to vector<64xf32>
      %17 = vector.shape_cast %16 : vector<64xf32> to vector<1x64xf32>
      %18 = arith.mulf %13, %13 : vector<512x64xf32>
      %cst_15 = arith.constant dense<0.000000e+00> : vector<64xf32>
      %19 = vector.multi_reduction <add>, %18, %cst_15 [0] : vector<512x64xf32> to vector<64xf32>
      %20 = vector.shape_cast %19 : vector<64xf32> to vector<1x64xf32>
      %21 = tpu.concatenate %17, %20 in 0 : vector<1x64xf32>, vector<1x64xf32> -> vector<2x64xf32>
      %c0_16 = arith.constant 0 : index
      %c0_17 = arith.constant 0 : index
      %c0_18 = arith.constant 0 : index
      %22 = vector.load %arg8[%c0_16, %c0_17, %c0_18] : memref<1x2x64xf32, #tpu.memory_space<vmem>>, vector<1x2x64xf32>
      %23 = vector.shape_cast %22 : vector<1x2x64xf32> to vector<2x64xf32>
      %24 = vector.shape_cast %21 : vector<2x64xf32> to vector<1x2x64xf32>
      tpu.vector_store %arg8[%c0_16, %c0_17, %c0_18], %24 {strides = array<i32>} : memref<1x2x64xf32, #tpu.memory_space<vmem>>, vector<1x2x64xf32>,
    } else {
    }
    return
  }
  func.func @transform_0(%arg0: i32, %arg1: i32, %arg2: i32) -> (i32, i32) {
    %c0_i32 = arith.constant 0 : i32
    return %arg0, %arg2 : i32, i32
  }
  func.func @transform_1(%arg0: i32, %arg1: i32, %arg2: i32) -> (i32, i32) {
    %c0_i32 = arith.constant 0 : i32
    return %arg2, %arg1 : i32, i32
  }
  func.func @transform_2(%arg0: i32, %arg1: i32, %arg2: i32) -> (i32, i32) {
    %c0_i32 = arith.constant 0 : i32
    %c0_i32_0 = arith.constant 0 : i32
    return %c0_i32, %arg2 : i32, i32
  }
  func.func @transform_3(%arg0: i32, %arg1: i32, %arg2: i32) -> (i32, i32) {
    %c0_i32 = arith.constant 0 : i32
    %c0_i32_0 = arith.constant 0 : i32
    return %c0_i32, %arg2 : i32, i32
  }
  func.func @transform_4(%arg0: i32, %arg1: i32, %arg2: i32) -> (i32, i32) {
    %c0_i32 = arith.constant 0 : i32
    return %arg0, %arg1 : i32, i32
  }
  func.func @transform_5(%arg0: i32, %arg1: i32, %arg2: i32) -> (i32, i32, i32) {
    %c0_i32 = arith.constant 0 : i32
    %c0_i32_0 = arith.constant 0 : i32
    return %arg0, %c0_i32, %arg1 : i32, i32, i32
  }
}

module attributes {stable_mosaic.version = 11 : i64} {
  func.func @_conv3x3_kernel(%arg0: i32, %arg1: i32, %arg2: memref<4x9x9x64xbf16, #tpu.memory_space<vmem>>, %arg3: memref<4x9x9x1xbf16, #tpu.memory_space<vmem>>, %arg4: memref<9x64x64xbf16, #tpu.memory_space<vmem>>, %arg5: memref<1x64xf32, #tpu.memory_space<vmem>>, %arg6: memref<1x64xf32, #tpu.memory_space<vmem>>, %arg7: memref<1x64x64xbf16, #tpu.memory_space<vmem>>, %arg8: memref<1x2x64xf32, #tpu.memory_space<vmem>>, %arg9: memref<64x64xf32, #tpu.memory_space<vmem>>) attributes {dimension_semantics = [#tpu.dimension_semantics<parallel>, #tpu.dimension_semantics<parallel>], iteration_bounds = array<i64: 2, 1>, scalar_prefetch = 0 : i64, scratch_operands = 1 : i64, tpu.core_type = #tpu.core_type<tc>, window_params = [{transform_indices = @transform_0, window_bounds = array<i64: 4, 9, 9, 64>}, {pipeline_mode = #tpu.pipeline_mode<synchronous>, transform_indices = @transform_1, window_bounds = array<i64: 4, 9, 9, 1>}, {pipeline_mode = #tpu.pipeline_mode<synchronous>, transform_indices = @transform_2, window_bounds = array<i64: 9, 64, 64>}, {pipeline_mode = #tpu.pipeline_mode<synchronous>, transform_indices = @transform_3, window_bounds = array<i64: 1, 64>}, {pipeline_mode = #tpu.pipeline_mode<synchronous>, transform_indices = @transform_4, window_bounds = array<i64: 1, 64>}, {transform_indices = @transform_5, window_bounds = array<i64: 1, 64, 64>}, {transform_indices = @transform_6, window_bounds = array<i64: 1, 2, 64>}]} {
    %c8_i32 = arith.constant 8 : i32
    %0 = arith.muli %arg1, %c8_i32 : i32
    %c0 = arith.constant 0 : index
    %1 = arith.index_cast %0 : i32 to index
    %c0_0 = arith.constant 0 : index
    %c0_1 = arith.constant 0 : index
    %2 = vector.load %arg2[%c0, %1, %c0_0, %c0_1] : memref<4x9x9x64xbf16, #tpu.memory_space<vmem>>, vector<4x9x9x64xbf16>
    %3 = arith.extf %2 : vector<4x9x9x64xbf16> to vector<4x9x9x64xf32>
    %c0_2 = arith.constant 0 : index
    %4 = arith.index_cast %0 : i32 to index
    %c0_3 = arith.constant 0 : index
    %c0_4 = arith.constant 0 : index
    %5 = vector.load %arg3[%c0_2, %4, %c0_3, %c0_4] : memref<4x9x9x1xbf16, #tpu.memory_space<vmem>>, vector<4x9x9x1xbf16>
    %6 = arith.extf %5 : vector<4x9x9x1xbf16> to vector<4x9x9x1xf32>
    %c0_5 = arith.constant 0 : index
    %c0_6 = arith.constant 0 : index
    %7 = vector.load %arg5[%c0_5, %c0_6] : memref<1x64xf32, #tpu.memory_space<vmem>>, vector<1x64xf32>
    %8 = vector.shape_cast %7 : vector<1x64xf32> to vector<64xf32>
    %9 = vector.shape_cast %8 : vector<64xf32> to vector<1x1x1x64xf32>
    %10 = vector.broadcast %9 : vector<1x1x1x64xf32> to vector<4x9x9x64xf32>
    %11 = arith.mulf %3, %10 : vector<4x9x9x64xf32>
    %c0_7 = arith.constant 0 : index
    %c0_8 = arith.constant 0 : index
    %12 = vector.load %arg6[%c0_7, %c0_8] : memref<1x64xf32, #tpu.memory_space<vmem>>, vector<1x64xf32>
    %13 = vector.shape_cast %12 : vector<1x64xf32> to vector<64xf32>
    %14 = vector.shape_cast %13 : vector<64xf32> to vector<1x1x1x64xf32>
    %15 = vector.broadcast %14 : vector<1x1x1x64xf32> to vector<4x9x9x64xf32>
    %16 = arith.addf %11, %15 : vector<4x9x9x64xf32>
    %cst = arith.constant 0.000000e+00 : f32
    %17 = vector.broadcast %cst : f32 to vector<4x9x9x64xf32>
    %18 = arith.maximumf %16, %17 : vector<4x9x9x64xf32>
    %19 = vector.broadcast %6 : vector<4x9x9x1xf32> to vector<4x9x9x64xf32>
    %20 = arith.mulf %18, %19 : vector<4x9x9x64xf32>
    %21 = arith.truncf %20 : vector<4x9x9x64xf32> to vector<4x9x9x64xbf16>
    %cst_9 = arith.constant 0.000000e+00 : f32
    %22 = vector.broadcast %cst_9 : f32 to vector<64x64xf32>
    %c0_10 = arith.constant 0 : index
    %c0_11 = arith.constant 0 : index
    %23 = vector.load %arg9[%c0_10, %c0_11] : memref<64x64xf32, #tpu.memory_space<vmem>>, vector<64x64xf32>
    tpu.vector_store %arg9[%c0_10, %c0_11], %22 {strides = array<i32>} : memref<64x64xf32, #tpu.memory_space<vmem>>, vector<64x64xf32>,
    %24 = vector.extract_strided_slice %21 {offsets = [0, 0, 0, 0], sizes = [1, 8, 8, 64], strides = [1, 1, 1, 1]} : vector<4x9x9x64xbf16> to vector<1x8x8x64xbf16>
    %25 = vector.shape_cast %24 : vector<1x8x8x64xbf16> to vector<8x8x64xbf16>
    %26 = vector.shape_cast %25 : vector<8x8x64xbf16> to vector<64x64xbf16>
    %c0_12 = arith.constant 0 : index
    %c0_13 = arith.constant 0 : index
    %27 = vector.load %arg9[%c0_12, %c0_13] : memref<64x64xf32, #tpu.memory_space<vmem>>, vector<64x64xf32>
    %c0_14 = arith.constant 0 : index
    %c0_15 = arith.constant 0 : index
    %c0_16 = arith.constant 0 : index
    %28 = vector.load %arg4[%c0_14, %c0_15, %c0_16] : memref<9x64x64xbf16, #tpu.memory_space<vmem>>, vector<1x64x64xbf16>
    %29 = vector.shape_cast %28 : vector<1x64x64xbf16> to vector<64x64xbf16>
    %cst_17 = arith.constant dense<0.000000e+00> : vector<64x64xf32>
    %30 = tpu.matmul %26, %29, %cst_17 {dimension_numbers = #tpu.dot_dimension_numbers<[1], [0], [0], [1], [0, 0, 1, 1], [], []>} : vector<64x64xbf16>, vector<64x64xbf16>, vector<64x64xf32> -> vector<64x64xf32>
    %31 = arith.addf %27, %30 : vector<64x64xf32>
    %c0_18 = arith.constant 0 : index
    %c0_19 = arith.constant 0 : index
    %32 = vector.load %arg9[%c0_18, %c0_19] : memref<64x64xf32, #tpu.memory_space<vmem>>, vector<64x64xf32>
    tpu.vector_store %arg9[%c0_18, %c0_19], %31 {strides = array<i32>} : memref<64x64xf32, #tpu.memory_space<vmem>>, vector<64x64xf32>,
    %33 = vector.extract_strided_slice %21 {offsets = [1, 0, 0, 0], sizes = [1, 8, 8, 64], strides = [1, 1, 1, 1]} : vector<4x9x9x64xbf16> to vector<1x8x8x64xbf16>
    %34 = vector.shape_cast %33 : vector<1x8x8x64xbf16> to vector<8x8x64xbf16>
    %35 = vector.shape_cast %34 : vector<8x8x64xbf16> to vector<64x64xbf16>
    %c0_20 = arith.constant 0 : index
    %c0_21 = arith.constant 0 : index
    %36 = vector.load %arg9[%c0_20, %c0_21] : memref<64x64xf32, #tpu.memory_space<vmem>>, vector<64x64xf32>
    %c1 = arith.constant 1 : index
    %c0_22 = arith.constant 0 : index
    %c0_23 = arith.constant 0 : index
    %37 = vector.load %arg4[%c1, %c0_22, %c0_23] : memref<9x64x64xbf16, #tpu.memory_space<vmem>>, vector<1x64x64xbf16>
    %38 = vector.shape_cast %37 : vector<1x64x64xbf16> to vector<64x64xbf16>
    %cst_24 = arith.constant dense<0.000000e+00> : vector<64x64xf32>
    %39 = tpu.matmul %35, %38, %cst_24 {dimension_numbers = #tpu.dot_dimension_numbers<[1], [0], [0], [1], [0, 0, 1, 1], [], []>} : vector<64x64xbf16>, vector<64x64xbf16>, vector<64x64xf32> -> vector<64x64xf32>
    %40 = arith.addf %36, %39 : vector<64x64xf32>
    %c0_25 = arith.constant 0 : index
    %c0_26 = arith.constant 0 : index
    %41 = vector.load %arg9[%c0_25, %c0_26] : memref<64x64xf32, #tpu.memory_space<vmem>>, vector<64x64xf32>
    tpu.vector_store %arg9[%c0_25, %c0_26], %40 {strides = array<i32>} : memref<64x64xf32, #tpu.memory_space<vmem>>, vector<64x64xf32>,
    %42 = vector.extract_strided_slice %21 {offsets = [0, 0, 1, 0], sizes = [1, 8, 8, 64], strides = [1, 1, 1, 1]} : vector<4x9x9x64xbf16> to vector<1x8x8x64xbf16>
    %43 = vector.shape_cast %42 : vector<1x8x8x64xbf16> to vector<8x8x64xbf16>
    %44 = vector.shape_cast %43 : vector<8x8x64xbf16> to vector<64x64xbf16>
    %c0_27 = arith.constant 0 : index
    %c0_28 = arith.constant 0 : index
    %45 = vector.load %arg9[%c0_27, %c0_28] : memref<64x64xf32, #tpu.memory_space<vmem>>, vector<64x64xf32>
    %c2 = arith.constant 2 : index
    %c0_29 = arith.constant 0 : index
    %c0_30 = arith.constant 0 : index
    %46 = vector.load %arg4[%c2, %c0_29, %c0_30] : memref<9x64x64xbf16, #tpu.memory_space<vmem>>, vector<1x64x64xbf16>
    %47 = vector.shape_cast %46 : vector<1x64x64xbf16> to vector<64x64xbf16>
    %cst_31 = arith.constant dense<0.000000e+00> : vector<64x64xf32>
    %48 = tpu.matmul %44, %47, %cst_31 {dimension_numbers = #tpu.dot_dimension_numbers<[1], [0], [0], [1], [0, 0, 1, 1], [], []>} : vector<64x64xbf16>, vector<64x64xbf16>, vector<64x64xf32> -> vector<64x64xf32>
    %49 = arith.addf %45, %48 : vector<64x64xf32>
    %c0_32 = arith.constant 0 : index
    %c0_33 = arith.constant 0 : index
    %50 = vector.load %arg9[%c0_32, %c0_33] : memref<64x64xf32, #tpu.memory_space<vmem>>, vector<64x64xf32>
    tpu.vector_store %arg9[%c0_32, %c0_33], %49 {strides = array<i32>} : memref<64x64xf32, #tpu.memory_space<vmem>>, vector<64x64xf32>,
    %51 = vector.extract_strided_slice %21 {offsets = [2, 0, 0, 0], sizes = [1, 8, 8, 64], strides = [1, 1, 1, 1]} : vector<4x9x9x64xbf16> to vector<1x8x8x64xbf16>
    %52 = vector.shape_cast %51 : vector<1x8x8x64xbf16> to vector<8x8x64xbf16>
    %53 = vector.shape_cast %52 : vector<8x8x64xbf16> to vector<64x64xbf16>
    %c0_34 = arith.constant 0 : index
    %c0_35 = arith.constant 0 : index
    %54 = vector.load %arg9[%c0_34, %c0_35] : memref<64x64xf32, #tpu.memory_space<vmem>>, vector<64x64xf32>
    %c3 = arith.constant 3 : index
    %c0_36 = arith.constant 0 : index
    %c0_37 = arith.constant 0 : index
    %55 = vector.load %arg4[%c3, %c0_36, %c0_37] : memref<9x64x64xbf16, #tpu.memory_space<vmem>>, vector<1x64x64xbf16>
    %56 = vector.shape_cast %55 : vector<1x64x64xbf16> to vector<64x64xbf16>
    %cst_38 = arith.constant dense<0.000000e+00> : vector<64x64xf32>
    %57 = tpu.matmul %53, %56, %cst_38 {dimension_numbers = #tpu.dot_dimension_numbers<[1], [0], [0], [1], [0, 0, 1, 1], [], []>} : vector<64x64xbf16>, vector<64x64xbf16>, vector<64x64xf32> -> vector<64x64xf32>
    %58 = arith.addf %54, %57 : vector<64x64xf32>
    %c0_39 = arith.constant 0 : index
    %c0_40 = arith.constant 0 : index
    %59 = vector.load %arg9[%c0_39, %c0_40] : memref<64x64xf32, #tpu.memory_space<vmem>>, vector<64x64xf32>
    tpu.vector_store %arg9[%c0_39, %c0_40], %58 {strides = array<i32>} : memref<64x64xf32, #tpu.memory_space<vmem>>, vector<64x64xf32>,
    %60 = vector.extract_strided_slice %21 {offsets = [3, 0, 0, 0], sizes = [1, 8, 8, 64], strides = [1, 1, 1, 1]} : vector<4x9x9x64xbf16> to vector<1x8x8x64xbf16>
    %61 = vector.shape_cast %60 : vector<1x8x8x64xbf16> to vector<8x8x64xbf16>
    %62 = vector.shape_cast %61 : vector<8x8x64xbf16> to vector<64x64xbf16>
    %c0_41 = arith.constant 0 : index
    %c0_42 = arith.constant 0 : index
    %63 = vector.load %arg9[%c0_41, %c0_42] : memref<64x64xf32, #tpu.memory_space<vmem>>, vector<64x64xf32>
    %c4 = arith.constant 4 : index
    %c0_43 = arith.constant 0 : index
    %c0_44 = arith.constant 0 : index
    %64 = vector.load %arg4[%c4, %c0_43, %c0_44] : memref<9x64x64xbf16, #tpu.memory_space<vmem>>, vector<1x64x64xbf16>
    %65 = vector.shape_cast %64 : vector<1x64x64xbf16> to vector<64x64xbf16>
    %cst_45 = arith.constant dense<0.000000e+00> : vector<64x64xf32>
    %66 = tpu.matmul %62, %65, %cst_45 {dimension_numbers = #tpu.dot_dimension_numbers<[1], [0], [0], [1], [0, 0, 1, 1], [], []>} : vector<64x64xbf16>, vector<64x64xbf16>, vector<64x64xf32> -> vector<64x64xf32>
    %67 = arith.addf %63, %66 : vector<64x64xf32>
    %c0_46 = arith.constant 0 : index
    %c0_47 = arith.constant 0 : index
    %68 = vector.load %arg9[%c0_46, %c0_47] : memref<64x64xf32, #tpu.memory_space<vmem>>, vector<64x64xf32>
    tpu.vector_store %arg9[%c0_46, %c0_47], %67 {strides = array<i32>} : memref<64x64xf32, #tpu.memory_space<vmem>>, vector<64x64xf32>,
    %69 = vector.extract_strided_slice %21 {offsets = [2, 0, 1, 0], sizes = [1, 8, 8, 64], strides = [1, 1, 1, 1]} : vector<4x9x9x64xbf16> to vector<1x8x8x64xbf16>
    %70 = vector.shape_cast %69 : vector<1x8x8x64xbf16> to vector<8x8x64xbf16>
    %71 = vector.shape_cast %70 : vector<8x8x64xbf16> to vector<64x64xbf16>
    %c0_48 = arith.constant 0 : index
    %c0_49 = arith.constant 0 : index
    %72 = vector.load %arg9[%c0_48, %c0_49] : memref<64x64xf32, #tpu.memory_space<vmem>>, vector<64x64xf32>
    %c5 = arith.constant 5 : index
    %c0_50 = arith.constant 0 : index
    %c0_51 = arith.constant 0 : index
    %73 = vector.load %arg4[%c5, %c0_50, %c0_51] : memref<9x64x64xbf16, #tpu.memory_space<vmem>>, vector<1x64x64xbf16>
    %74 = vector.shape_cast %73 : vector<1x64x64xbf16> to vector<64x64xbf16>
    %cst_52 = arith.constant dense<0.000000e+00> : vector<64x64xf32>
    %75 = tpu.matmul %71, %74, %cst_52 {dimension_numbers = #tpu.dot_dimension_numbers<[1], [0], [0], [1], [0, 0, 1, 1], [], []>} : vector<64x64xbf16>, vector<64x64xbf16>, vector<64x64xf32> -> vector<64x64xf32>
    %76 = arith.addf %72, %75 : vector<64x64xf32>
    %c0_53 = arith.constant 0 : index
    %c0_54 = arith.constant 0 : index
    %77 = vector.load %arg9[%c0_53, %c0_54] : memref<64x64xf32, #tpu.memory_space<vmem>>, vector<64x64xf32>
    tpu.vector_store %arg9[%c0_53, %c0_54], %76 {strides = array<i32>} : memref<64x64xf32, #tpu.memory_space<vmem>>, vector<64x64xf32>,
    %78 = vector.extract_strided_slice %21 {offsets = [0, 1, 0, 0], sizes = [1, 8, 8, 64], strides = [1, 1, 1, 1]} : vector<4x9x9x64xbf16> to vector<1x8x8x64xbf16>
    %79 = vector.shape_cast %78 : vector<1x8x8x64xbf16> to vector<8x8x64xbf16>
    %80 = vector.shape_cast %79 : vector<8x8x64xbf16> to vector<64x64xbf16>
    %c0_55 = arith.constant 0 : index
    %c0_56 = arith.constant 0 : index
    %81 = vector.load %arg9[%c0_55, %c0_56] : memref<64x64xf32, #tpu.memory_space<vmem>>, vector<64x64xf32>
    %c6 = arith.constant 6 : index
    %c0_57 = arith.constant 0 : index
    %c0_58 = arith.constant 0 : index
    %82 = vector.load %arg4[%c6, %c0_57, %c0_58] : memref<9x64x64xbf16, #tpu.memory_space<vmem>>, vector<1x64x64xbf16>
    %83 = vector.shape_cast %82 : vector<1x64x64xbf16> to vector<64x64xbf16>
    %cst_59 = arith.constant dense<0.000000e+00> : vector<64x64xf32>
    %84 = tpu.matmul %80, %83, %cst_59 {dimension_numbers = #tpu.dot_dimension_numbers<[1], [0], [0], [1], [0, 0, 1, 1], [], []>} : vector<64x64xbf16>, vector<64x64xbf16>, vector<64x64xf32> -> vector<64x64xf32>
    %85 = arith.addf %81, %84 : vector<64x64xf32>
    %c0_60 = arith.constant 0 : index
    %c0_61 = arith.constant 0 : index
    %86 = vector.load %arg9[%c0_60, %c0_61] : memref<64x64xf32, #tpu.memory_space<vmem>>, vector<64x64xf32>
    tpu.vector_store %arg9[%c0_60, %c0_61], %85 {strides = array<i32>} : memref<64x64xf32, #tpu.memory_space<vmem>>, vector<64x64xf32>,
    %87 = vector.extract_strided_slice %21 {offsets = [1, 1, 0, 0], sizes = [1, 8, 8, 64], strides = [1, 1, 1, 1]} : vector<4x9x9x64xbf16> to vector<1x8x8x64xbf16>
    %88 = vector.shape_cast %87 : vector<1x8x8x64xbf16> to vector<8x8x64xbf16>
    %89 = vector.shape_cast %88 : vector<8x8x64xbf16> to vector<64x64xbf16>
    %c0_62 = arith.constant 0 : index
    %c0_63 = arith.constant 0 : index
    %90 = vector.load %arg9[%c0_62, %c0_63] : memref<64x64xf32, #tpu.memory_space<vmem>>, vector<64x64xf32>
    %c7 = arith.constant 7 : index
    %c0_64 = arith.constant 0 : index
    %c0_65 = arith.constant 0 : index
    %91 = vector.load %arg4[%c7, %c0_64, %c0_65] : memref<9x64x64xbf16, #tpu.memory_space<vmem>>, vector<1x64x64xbf16>
    %92 = vector.shape_cast %91 : vector<1x64x64xbf16> to vector<64x64xbf16>
    %cst_66 = arith.constant dense<0.000000e+00> : vector<64x64xf32>
    %93 = tpu.matmul %89, %92, %cst_66 {dimension_numbers = #tpu.dot_dimension_numbers<[1], [0], [0], [1], [0, 0, 1, 1], [], []>} : vector<64x64xbf16>, vector<64x64xbf16>, vector<64x64xf32> -> vector<64x64xf32>
    %94 = arith.addf %90, %93 : vector<64x64xf32>
    %c0_67 = arith.constant 0 : index
    %c0_68 = arith.constant 0 : index
    %95 = vector.load %arg9[%c0_67, %c0_68] : memref<64x64xf32, #tpu.memory_space<vmem>>, vector<64x64xf32>
    tpu.vector_store %arg9[%c0_67, %c0_68], %94 {strides = array<i32>} : memref<64x64xf32, #tpu.memory_space<vmem>>, vector<64x64xf32>,
    %96 = vector.extract_strided_slice %21 {offsets = [0, 1, 1, 0], sizes = [1, 8, 8, 64], strides = [1, 1, 1, 1]} : vector<4x9x9x64xbf16> to vector<1x8x8x64xbf16>
    %97 = vector.shape_cast %96 : vector<1x8x8x64xbf16> to vector<8x8x64xbf16>
    %98 = vector.shape_cast %97 : vector<8x8x64xbf16> to vector<64x64xbf16>
    %c0_69 = arith.constant 0 : index
    %c0_70 = arith.constant 0 : index
    %99 = vector.load %arg9[%c0_69, %c0_70] : memref<64x64xf32, #tpu.memory_space<vmem>>, vector<64x64xf32>
    %c8 = arith.constant 8 : index
    %c0_71 = arith.constant 0 : index
    %c0_72 = arith.constant 0 : index
    %100 = vector.load %arg4[%c8, %c0_71, %c0_72] : memref<9x64x64xbf16, #tpu.memory_space<vmem>>, vector<1x64x64xbf16>
    %101 = vector.shape_cast %100 : vector<1x64x64xbf16> to vector<64x64xbf16>
    %cst_73 = arith.constant dense<0.000000e+00> : vector<64x64xf32>
    %102 = tpu.matmul %98, %101, %cst_73 {dimension_numbers = #tpu.dot_dimension_numbers<[1], [0], [0], [1], [0, 0, 1, 1], [], []>} : vector<64x64xbf16>, vector<64x64xbf16>, vector<64x64xf32> -> vector<64x64xf32>
    %103 = arith.addf %99, %102 : vector<64x64xf32>
    %c0_74 = arith.constant 0 : index
    %c0_75 = arith.constant 0 : index
    %104 = vector.load %arg9[%c0_74, %c0_75] : memref<64x64xf32, #tpu.memory_space<vmem>>, vector<64x64xf32>
    tpu.vector_store %arg9[%c0_74, %c0_75], %103 {strides = array<i32>} : memref<64x64xf32, #tpu.memory_space<vmem>>, vector<64x64xf32>,
    %c0_76 = arith.constant 0 : index
    %c0_77 = arith.constant 0 : index
    %105 = vector.load %arg9[%c0_76, %c0_77] : memref<64x64xf32, #tpu.memory_space<vmem>>, vector<64x64xf32>
    %106 = arith.truncf %105 : vector<64x64xf32> to vector<64x64xbf16>
    %c0_78 = arith.constant 0 : index
    %c0_79 = arith.constant 0 : index
    %c0_80 = arith.constant 0 : index
    %107 = vector.load %arg7[%c0_78, %c0_79, %c0_80] : memref<1x64x64xbf16, #tpu.memory_space<vmem>>, vector<1x64x64xbf16>
    %108 = vector.shape_cast %107 : vector<1x64x64xbf16> to vector<64x64xbf16>
    %109 = vector.shape_cast %106 : vector<64x64xbf16> to vector<1x64x64xbf16>
    tpu.vector_store %arg7[%c0_78, %c0_79, %c0_80], %109 {strides = array<i32>} : memref<1x64x64xbf16, #tpu.memory_space<vmem>>, vector<1x64x64xbf16>,
    %cst_81 = arith.constant dense<0.000000e+00> : vector<64xf32>
    %110 = vector.multi_reduction <add>, %105, %cst_81 [0] : vector<64x64xf32> to vector<64xf32>
    %111 = vector.shape_cast %110 : vector<64xf32> to vector<1x64xf32>
    %112 = arith.mulf %105, %105 : vector<64x64xf32>
    %cst_82 = arith.constant dense<0.000000e+00> : vector<64xf32>
    %113 = vector.multi_reduction <add>, %112, %cst_82 [0] : vector<64x64xf32> to vector<64xf32>
    %114 = vector.shape_cast %113 : vector<64xf32> to vector<1x64xf32>
    %115 = tpu.concatenate %111, %114 in 0 : vector<1x64xf32>, vector<1x64xf32> -> vector<2x64xf32>
    %c0_83 = arith.constant 0 : index
    %c0_84 = arith.constant 0 : index
    %c0_85 = arith.constant 0 : index
    %116 = vector.load %arg8[%c0_83, %c0_84, %c0_85] : memref<1x2x64xf32, #tpu.memory_space<vmem>>, vector<1x2x64xf32>
    %117 = vector.shape_cast %116 : vector<1x2x64xf32> to vector<2x64xf32>
    %118 = vector.shape_cast %115 : vector<2x64xf32> to vector<1x2x64xf32>
    tpu.vector_store %arg8[%c0_83, %c0_84, %c0_85], %118 {strides = array<i32>} : memref<1x2x64xf32, #tpu.memory_space<vmem>>, vector<1x2x64xf32>,
    return
  }
  func.func @transform_0(%arg0: i32, %arg1: i32) -> (i32, i32, i32, i32) {
    %c0_i32 = arith.constant 0 : i32
    %c0_i32_0 = arith.constant 0 : i32
    %c0_i32_1 = arith.constant 0 : i32
    %c0_i32_2 = arith.constant 0 : i32
    return %arg0, %c0_i32, %c0_i32_0, %c0_i32_1 : i32, i32, i32, i32
  }
  func.func @transform_1(%arg0: i32, %arg1: i32) -> (i32, i32, i32, i32) {
    %c0_i32 = arith.constant 0 : i32
    %c0_i32_0 = arith.constant 0 : i32
    %c0_i32_1 = arith.constant 0 : i32
    %c0_i32_2 = arith.constant 0 : i32
    %c0_i32_3 = arith.constant 0 : i32
    return %c0_i32, %c0_i32_0, %c0_i32_1, %c0_i32_2 : i32, i32, i32, i32
  }
  func.func @transform_2(%arg0: i32, %arg1: i32) -> (i32, i32, i32) {
    %c0_i32 = arith.constant 0 : i32
    %c0_i32_0 = arith.constant 0 : i32
    %c0_i32_1 = arith.constant 0 : i32
    %c0_i32_2 = arith.constant 0 : i32
    return %c0_i32, %c0_i32_0, %c0_i32_1 : i32, i32, i32
  }
  func.func @transform_3(%arg0: i32, %arg1: i32) -> (i32, i32) {
    %c0_i32 = arith.constant 0 : i32
    %c0_i32_0 = arith.constant 0 : i32
    %c0_i32_1 = arith.constant 0 : i32
    return %c0_i32, %c0_i32_0 : i32, i32
  }
  func.func @transform_4(%arg0: i32, %arg1: i32) -> (i32, i32) {
    %c0_i32 = arith.constant 0 : i32
    %c0_i32_0 = arith.constant 0 : i32
    %c0_i32_1 = arith.constant 0 : i32
    return %c0_i32, %c0_i32_0 : i32, i32
  }
  func.func @transform_5(%arg0: i32, %arg1: i32) -> (i32, i32, i32) {
    %c0_i32 = arith.constant 0 : i32
    %c0_i32_0 = arith.constant 0 : i32
    return %arg0, %arg1, %c0_i32 : i32, i32, i32
  }
  func.func @transform_6(%arg0: i32, %arg1: i32) -> (i32, i32, i32) {
    %c1_i32 = arith.constant 1 : i32
    %0 = arith.muli %arg0, %c1_i32 : i32
    %1 = arith.addi %0, %arg1 : i32
    %c0_i32 = arith.constant 0 : i32
    %c0_i32_0 = arith.constant 0 : i32
    %c0_i32_1 = arith.constant 0 : i32
    return %1, %c0_i32, %c0_i32_0 : i32, i32, i32
  }
}

module attributes {stable_mosaic.version = 11 : i64} {
  func.func @_mm_stats_kernel(%arg0: i32, %arg1: i32, %arg2: i32, %arg3: memref<128x64xbf16, #tpu.memory_space<vmem>>, %arg4: memref<64x256xbf16, #tpu.memory_space<vmem>>, %arg5: memref<1x64xf32, #tpu.memory_space<vmem>>, %arg6: memref<1x64xf32, #tpu.memory_space<vmem>>, %arg7: memref<128x256xbf16, #tpu.memory_space<vmem>>, %arg8: memref<1x2x256xf32, #tpu.memory_space<vmem>>, %arg9: memref<128x256xf32, #tpu.memory_space<vmem>>) attributes {dimension_semantics = [#tpu.dimension_semantics<parallel>, #tpu.dimension_semantics<parallel>, #tpu.dimension_semantics<arbitrary>], iteration_bounds = array<i64: 1, 1, 1>, scalar_prefetch = 0 : i64, scratch_operands = 1 : i64, tpu.core_type = #tpu.core_type<tc>, window_params = [{transform_indices = @transform_0, window_bounds = array<i64: 128, 64>}, {transform_indices = @transform_1, window_bounds = array<i64: 64, 256>}, {transform_indices = @transform_2, window_bounds = array<i64: 1, 64>}, {transform_indices = @transform_3, window_bounds = array<i64: 1, 64>}, {transform_indices = @transform_4, window_bounds = array<i64: 128, 256>}, {transform_indices = @transform_5, window_bounds = array<i64: 1, 2, 256>}]} {
    %c0_i32 = arith.constant 0 : i32
    %0 = arith.cmpi eq, %arg2, %c0_i32 : i32
    %1 = arith.extui %0 : i1 to i32
    %c0_i32_0 = arith.constant 0 : i32
    %2 = arith.cmpi ne, %1, %c0_i32_0 : i32
    scf.if %2 {
      %cst_15 = arith.constant 0.000000e+00 : f32
      %22 = vector.broadcast %cst_15 : f32 to vector<128x256xf32>
      %c0_16 = arith.constant 0 : index
      %c0_17 = arith.constant 0 : index
      %23 = vector.load %arg9[%c0_16, %c0_17] : memref<128x256xf32, #tpu.memory_space<vmem>>, vector<128x256xf32>
      tpu.vector_store %arg9[%c0_16, %c0_17], %22 {strides = array<i32>} : memref<128x256xf32, #tpu.memory_space<vmem>>, vector<128x256xf32>,
    } else {
    }
    %c0 = arith.constant 0 : index
    %c0_1 = arith.constant 0 : index
    %3 = vector.load %arg3[%c0, %c0_1] : memref<128x64xbf16, #tpu.memory_space<vmem>>, vector<128x64xbf16>
    %4 = arith.extf %3 : vector<128x64xbf16> to vector<128x64xf32>
    %c0_2 = arith.constant 0 : index
    %c0_3 = arith.constant 0 : index
    %5 = vector.load %arg5[%c0_2, %c0_3] : memref<1x64xf32, #tpu.memory_space<vmem>>, vector<1x64xf32>
    %6 = vector.broadcast %5 : vector<1x64xf32> to vector<128x64xf32>
    %7 = arith.mulf %4, %6 : vector<128x64xf32>
    %c0_4 = arith.constant 0 : index
    %c0_5 = arith.constant 0 : index
    %8 = vector.load %arg6[%c0_4, %c0_5] : memref<1x64xf32, #tpu.memory_space<vmem>>, vector<1x64xf32>
    %9 = vector.broadcast %8 : vector<1x64xf32> to vector<128x64xf32>
    %10 = arith.addf %7, %9 : vector<128x64xf32>
    %cst = arith.constant 0.000000e+00 : f32
    %11 = vector.broadcast %cst : f32 to vector<128x64xf32>
    %12 = arith.maximumf %10, %11 : vector<128x64xf32>
    %c0_6 = arith.constant 0 : index
    %c0_7 = arith.constant 0 : index
    %13 = vector.load %arg9[%c0_6, %c0_7] : memref<128x256xf32, #tpu.memory_space<vmem>>, vector<128x256xf32>
    %14 = arith.truncf %12 : vector<128x64xf32> to vector<128x64xbf16>
    %c0_8 = arith.constant 0 : index
    %c0_9 = arith.constant 0 : index
    %15 = vector.load %arg4[%c0_8, %c0_9] : memref<64x256xbf16, #tpu.memory_space<vmem>>, vector<64x256xbf16>
    %cst_10 = arith.constant dense<0.000000e+00> : vector<128x256xf32>
    %16 = tpu.matmul %14, %15, %cst_10 {dimension_numbers = #tpu.dot_dimension_numbers<[1], [0], [0], [1], [0, 0, 1, 1], [], []>} : vector<128x64xbf16>, vector<64x256xbf16>, vector<128x256xf32> -> vector<128x256xf32>
    %17 = arith.addf %13, %16 : vector<128x256xf32>
    %c0_11 = arith.constant 0 : index
    %c0_12 = arith.constant 0 : index
    %18 = vector.load %arg9[%c0_11, %c0_12] : memref<128x256xf32, #tpu.memory_space<vmem>>, vector<128x256xf32>
    tpu.vector_store %arg9[%c0_11, %c0_12], %17 {strides = array<i32>} : memref<128x256xf32, #tpu.memory_space<vmem>>, vector<128x256xf32>,
    %c0_i32_13 = arith.constant 0 : i32
    %19 = arith.cmpi eq, %arg2, %c0_i32_13 : i32
    %20 = arith.extui %19 : i1 to i32
    %c0_i32_14 = arith.constant 0 : i32
    %21 = arith.cmpi ne, %20, %c0_i32_14 : i32
    scf.if %21 {
      %c0_15 = arith.constant 0 : index
      %c0_16 = arith.constant 0 : index
      %22 = vector.load %arg9[%c0_15, %c0_16] : memref<128x256xf32, #tpu.memory_space<vmem>>, vector<128x256xf32>
      %23 = arith.truncf %22 : vector<128x256xf32> to vector<128x256xbf16>
      %c0_17 = arith.constant 0 : index
      %c0_18 = arith.constant 0 : index
      %24 = vector.load %arg7[%c0_17, %c0_18] : memref<128x256xbf16, #tpu.memory_space<vmem>>, vector<128x256xbf16>
      tpu.vector_store %arg7[%c0_17, %c0_18], %23 {strides = array<i32>} : memref<128x256xbf16, #tpu.memory_space<vmem>>, vector<128x256xbf16>,
      %cst_19 = arith.constant dense<0.000000e+00> : vector<256xf32>
      %25 = vector.multi_reduction <add>, %22, %cst_19 [0] : vector<128x256xf32> to vector<256xf32>
      %26 = vector.shape_cast %25 : vector<256xf32> to vector<1x256xf32>
      %27 = arith.mulf %22, %22 : vector<128x256xf32>
      %cst_20 = arith.constant dense<0.000000e+00> : vector<256xf32>
      %28 = vector.multi_reduction <add>, %27, %cst_20 [0] : vector<128x256xf32> to vector<256xf32>
      %29 = vector.shape_cast %28 : vector<256xf32> to vector<1x256xf32>
      %30 = tpu.concatenate %26, %29 in 0 : vector<1x256xf32>, vector<1x256xf32> -> vector<2x256xf32>
      %c0_21 = arith.constant 0 : index
      %c0_22 = arith.constant 0 : index
      %c0_23 = arith.constant 0 : index
      %31 = vector.load %arg8[%c0_21, %c0_22, %c0_23] : memref<1x2x256xf32, #tpu.memory_space<vmem>>, vector<1x2x256xf32>
      %32 = vector.shape_cast %31 : vector<1x2x256xf32> to vector<2x256xf32>
      %33 = vector.shape_cast %30 : vector<2x256xf32> to vector<1x2x256xf32>
      tpu.vector_store %arg8[%c0_21, %c0_22, %c0_23], %33 {strides = array<i32>} : memref<1x2x256xf32, #tpu.memory_space<vmem>>, vector<1x2x256xf32>,
    } else {
    }
    return
  }
  func.func @transform_0(%arg0: i32, %arg1: i32, %arg2: i32) -> (i32, i32) {
    %c0_i32 = arith.constant 0 : i32
    return %arg0, %arg2 : i32, i32
  }
  func.func @transform_1(%arg0: i32, %arg1: i32, %arg2: i32) -> (i32, i32) {
    %c0_i32 = arith.constant 0 : i32
    return %arg2, %arg1 : i32, i32
  }
  func.func @transform_2(%arg0: i32, %arg1: i32, %arg2: i32) -> (i32, i32) {
    %c0_i32 = arith.constant 0 : i32
    %c0_i32_0 = arith.constant 0 : i32
    return %c0_i32, %arg2 : i32, i32
  }
  func.func @transform_3(%arg0: i32, %arg1: i32, %arg2: i32) -> (i32, i32) {
    %c0_i32 = arith.constant 0 : i32
    %c0_i32_0 = arith.constant 0 : i32
    return %c0_i32, %arg2 : i32, i32
  }
  func.func @transform_4(%arg0: i32, %arg1: i32, %arg2: i32) -> (i32, i32) {
    %c0_i32 = arith.constant 0 : i32
    return %arg0, %arg1 : i32, i32
  }
  func.func @transform_5(%arg0: i32, %arg1: i32, %arg2: i32) -> (i32, i32, i32) {
    %c0_i32 = arith.constant 0 : i32
    %c0_i32_0 = arith.constant 0 : i32
    return %arg0, %c0_i32, %arg1 : i32, i32, i32
  }
}

module attributes {stable_mosaic.version = 11 : i64} {
  func.func @_mm_stats_kernel(%arg0: i32, %arg1: i32, %arg2: i32, %arg3: memref<128x64xbf16, #tpu.memory_space<vmem>>, %arg4: memref<64x256xbf16, #tpu.memory_space<vmem>>, %arg5: memref<1x64xf32, #tpu.memory_space<vmem>>, %arg6: memref<1x64xf32, #tpu.memory_space<vmem>>, %arg7: memref<128x256xbf16, #tpu.memory_space<vmem>>, %arg8: memref<1x2x256xf32, #tpu.memory_space<vmem>>, %arg9: memref<128x256xf32, #tpu.memory_space<vmem>>) attributes {dimension_semantics = [#tpu.dimension_semantics<parallel>, #tpu.dimension_semantics<parallel>, #tpu.dimension_semantics<arbitrary>], iteration_bounds = array<i64: 1, 1, 1>, scalar_prefetch = 0 : i64, scratch_operands = 1 : i64, tpu.core_type = #tpu.core_type<tc>, window_params = [{transform_indices = @transform_0, window_bounds = array<i64: 128, 64>}, {transform_indices = @transform_1, window_bounds = array<i64: 64, 256>}, {transform_indices = @transform_2, window_bounds = array<i64: 1, 64>}, {transform_indices = @transform_3, window_bounds = array<i64: 1, 64>}, {transform_indices = @transform_4, window_bounds = array<i64: 128, 256>}, {transform_indices = @transform_5, window_bounds = array<i64: 1, 2, 256>}]} {
    %c0_i32 = arith.constant 0 : i32
    %0 = arith.cmpi eq, %arg2, %c0_i32 : i32
    %1 = arith.extui %0 : i1 to i32
    %c0_i32_0 = arith.constant 0 : i32
    %2 = arith.cmpi ne, %1, %c0_i32_0 : i32
    scf.if %2 {
      %cst_10 = arith.constant 0.000000e+00 : f32
      %12 = vector.broadcast %cst_10 : f32 to vector<128x256xf32>
      %c0_11 = arith.constant 0 : index
      %c0_12 = arith.constant 0 : index
      %13 = vector.load %arg9[%c0_11, %c0_12] : memref<128x256xf32, #tpu.memory_space<vmem>>, vector<128x256xf32>
      tpu.vector_store %arg9[%c0_11, %c0_12], %12 {strides = array<i32>} : memref<128x256xf32, #tpu.memory_space<vmem>>, vector<128x256xf32>,
    } else {
    }
    %c0 = arith.constant 0 : index
    %c0_1 = arith.constant 0 : index
    %3 = vector.load %arg3[%c0, %c0_1] : memref<128x64xbf16, #tpu.memory_space<vmem>>, vector<128x64xbf16>
    %c0_2 = arith.constant 0 : index
    %c0_3 = arith.constant 0 : index
    %4 = vector.load %arg9[%c0_2, %c0_3] : memref<128x256xf32, #tpu.memory_space<vmem>>, vector<128x256xf32>
    %c0_4 = arith.constant 0 : index
    %c0_5 = arith.constant 0 : index
    %5 = vector.load %arg4[%c0_4, %c0_5] : memref<64x256xbf16, #tpu.memory_space<vmem>>, vector<64x256xbf16>
    %cst = arith.constant dense<0.000000e+00> : vector<128x256xf32>
    %6 = tpu.matmul %3, %5, %cst {dimension_numbers = #tpu.dot_dimension_numbers<[1], [0], [0], [1], [0, 0, 1, 1], [], []>} : vector<128x64xbf16>, vector<64x256xbf16>, vector<128x256xf32> -> vector<128x256xf32>
    %7 = arith.addf %4, %6 : vector<128x256xf32>
    %c0_6 = arith.constant 0 : index
    %c0_7 = arith.constant 0 : index
    %8 = vector.load %arg9[%c0_6, %c0_7] : memref<128x256xf32, #tpu.memory_space<vmem>>, vector<128x256xf32>
    tpu.vector_store %arg9[%c0_6, %c0_7], %7 {strides = array<i32>} : memref<128x256xf32, #tpu.memory_space<vmem>>, vector<128x256xf32>,
    %c0_i32_8 = arith.constant 0 : i32
    %9 = arith.cmpi eq, %arg2, %c0_i32_8 : i32
    %10 = arith.extui %9 : i1 to i32
    %c0_i32_9 = arith.constant 0 : i32
    %11 = arith.cmpi ne, %10, %c0_i32_9 : i32
    scf.if %11 {
      %c0_10 = arith.constant 0 : index
      %c0_11 = arith.constant 0 : index
      %12 = vector.load %arg9[%c0_10, %c0_11] : memref<128x256xf32, #tpu.memory_space<vmem>>, vector<128x256xf32>
      %13 = arith.truncf %12 : vector<128x256xf32> to vector<128x256xbf16>
      %c0_12 = arith.constant 0 : index
      %c0_13 = arith.constant 0 : index
      %14 = vector.load %arg7[%c0_12, %c0_13] : memref<128x256xbf16, #tpu.memory_space<vmem>>, vector<128x256xbf16>
      tpu.vector_store %arg7[%c0_12, %c0_13], %13 {strides = array<i32>} : memref<128x256xbf16, #tpu.memory_space<vmem>>, vector<128x256xbf16>,
      %cst_14 = arith.constant dense<0.000000e+00> : vector<256xf32>
      %15 = vector.multi_reduction <add>, %12, %cst_14 [0] : vector<128x256xf32> to vector<256xf32>
      %16 = vector.shape_cast %15 : vector<256xf32> to vector<1x256xf32>
      %17 = arith.mulf %12, %12 : vector<128x256xf32>
      %cst_15 = arith.constant dense<0.000000e+00> : vector<256xf32>
      %18 = vector.multi_reduction <add>, %17, %cst_15 [0] : vector<128x256xf32> to vector<256xf32>
      %19 = vector.shape_cast %18 : vector<256xf32> to vector<1x256xf32>
      %20 = tpu.concatenate %16, %19 in 0 : vector<1x256xf32>, vector<1x256xf32> -> vector<2x256xf32>
      %c0_16 = arith.constant 0 : index
      %c0_17 = arith.constant 0 : index
      %c0_18 = arith.constant 0 : index
      %21 = vector.load %arg8[%c0_16, %c0_17, %c0_18] : memref<1x2x256xf32, #tpu.memory_space<vmem>>, vector<1x2x256xf32>
      %22 = vector.shape_cast %21 : vector<1x2x256xf32> to vector<2x256xf32>
      %23 = vector.shape_cast %20 : vector<2x256xf32> to vector<1x2x256xf32>
      tpu.vector_store %arg8[%c0_16, %c0_17, %c0_18], %23 {strides = array<i32>} : memref<1x2x256xf32, #tpu.memory_space<vmem>>, vector<1x2x256xf32>,
    } else {
    }
    return
  }
  func.func @transform_0(%arg0: i32, %arg1: i32, %arg2: i32) -> (i32, i32) {
    %c0_i32 = arith.constant 0 : i32
    return %arg0, %arg2 : i32, i32
  }
  func.func @transform_1(%arg0: i32, %arg1: i32, %arg2: i32) -> (i32, i32) {
    %c0_i32 = arith.constant 0 : i32
    return %arg2, %arg1 : i32, i32
  }
  func.func @transform_2(%arg0: i32, %arg1: i32, %arg2: i32) -> (i32, i32) {
    %c0_i32 = arith.constant 0 : i32
    %c0_i32_0 = arith.constant 0 : i32
    return %c0_i32, %arg2 : i32, i32
  }
  func.func @transform_3(%arg0: i32, %arg1: i32, %arg2: i32) -> (i32, i32) {
    %c0_i32 = arith.constant 0 : i32
    %c0_i32_0 = arith.constant 0 : i32
    return %c0_i32, %arg2 : i32, i32
  }
  func.func @transform_4(%arg0: i32, %arg1: i32, %arg2: i32) -> (i32, i32) {
    %c0_i32 = arith.constant 0 : i32
    return %arg0, %arg1 : i32, i32
  }
  func.func @transform_5(%arg0: i32, %arg1: i32, %arg2: i32) -> (i32, i32, i32) {
    %c0_i32 = arith.constant 0 : i32
    %c0_i32_0 = arith.constant 0 : i32
    return %arg0, %c0_i32, %arg1 : i32, i32, i32
  }
}

module attributes {stable_mosaic.version = 11 : i64} {
  func.func @_bn_add_relu_kernel(%arg0: i32, %arg1: memref<128x256xbf16, #tpu.memory_space<vmem>>, %arg2: memref<128x256xbf16, #tpu.memory_space<vmem>>, %arg3: memref<1x256xf32, #tpu.memory_space<vmem>>, %arg4: memref<1x256xf32, #tpu.memory_space<vmem>>, %arg5: memref<1x256xf32, #tpu.memory_space<vmem>>, %arg6: memref<1x256xf32, #tpu.memory_space<vmem>>, %arg7: memref<128x256xf32, #tpu.memory_space<vmem>>) attributes {dimension_semantics = [#tpu.dimension_semantics<parallel>], iteration_bounds = array<i64: 1>, scalar_prefetch = 0 : i64, scratch_operands = 0 : i64, tpu.core_type = #tpu.core_type<tc>, window_params = [{transform_indices = @transform_0, window_bounds = array<i64: 128, 256>}, {transform_indices = @transform_1, window_bounds = array<i64: 128, 256>}, {pipeline_mode = #tpu.pipeline_mode<synchronous>, transform_indices = @transform_2, window_bounds = array<i64: 1, 256>}, {pipeline_mode = #tpu.pipeline_mode<synchronous>, transform_indices = @transform_3, window_bounds = array<i64: 1, 256>}, {pipeline_mode = #tpu.pipeline_mode<synchronous>, transform_indices = @transform_4, window_bounds = array<i64: 1, 256>}, {pipeline_mode = #tpu.pipeline_mode<synchronous>, transform_indices = @transform_5, window_bounds = array<i64: 1, 256>}, {transform_indices = @transform_6, window_bounds = array<i64: 128, 256>}]} {
    %c0 = arith.constant 0 : index
    %c0_0 = arith.constant 0 : index
    %0 = vector.load %arg1[%c0, %c0_0] : memref<128x256xbf16, #tpu.memory_space<vmem>>, vector<128x256xbf16>
    %1 = arith.extf %0 : vector<128x256xbf16> to vector<128x256xf32>
    %c0_1 = arith.constant 0 : index
    %c0_2 = arith.constant 0 : index
    %2 = vector.load %arg3[%c0_1, %c0_2] : memref<1x256xf32, #tpu.memory_space<vmem>>, vector<1x256xf32>
    %3 = vector.broadcast %2 : vector<1x256xf32> to vector<128x256xf32>
    %4 = arith.mulf %1, %3 : vector<128x256xf32>
    %c0_3 = arith.constant 0 : index
    %c0_4 = arith.constant 0 : index
    %5 = vector.load %arg4[%c0_3, %c0_4] : memref<1x256xf32, #tpu.memory_space<vmem>>, vector<1x256xf32>
    %6 = vector.broadcast %5 : vector<1x256xf32> to vector<128x256xf32>
    %7 = arith.addf %4, %6 : vector<128x256xf32>
    %c0_5 = arith.constant 0 : index
    %c0_6 = arith.constant 0 : index
    %8 = vector.load %arg2[%c0_5, %c0_6] : memref<128x256xbf16, #tpu.memory_space<vmem>>, vector<128x256xbf16>
    %9 = arith.extf %8 : vector<128x256xbf16> to vector<128x256xf32>
    %c0_7 = arith.constant 0 : index
    %c0_8 = arith.constant 0 : index
    %10 = vector.load %arg5[%c0_7, %c0_8] : memref<1x256xf32, #tpu.memory_space<vmem>>, vector<1x256xf32>
    %11 = vector.broadcast %10 : vector<1x256xf32> to vector<128x256xf32>
    %12 = arith.mulf %9, %11 : vector<128x256xf32>
    %c0_9 = arith.constant 0 : index
    %c0_10 = arith.constant 0 : index
    %13 = vector.load %arg6[%c0_9, %c0_10] : memref<1x256xf32, #tpu.memory_space<vmem>>, vector<1x256xf32>
    %14 = vector.broadcast %13 : vector<1x256xf32> to vector<128x256xf32>
    %15 = arith.addf %12, %14 : vector<128x256xf32>
    %16 = arith.addf %7, %15 : vector<128x256xf32>
    %cst = arith.constant 0.000000e+00 : f32
    %17 = vector.broadcast %cst : f32 to vector<128x256xf32>
    %18 = arith.maximumf %16, %17 : vector<128x256xf32>
    %c0_11 = arith.constant 0 : index
    %c0_12 = arith.constant 0 : index
    %19 = vector.load %arg7[%c0_11, %c0_12] : memref<128x256xf32, #tpu.memory_space<vmem>>, vector<128x256xf32>
    tpu.vector_store %arg7[%c0_11, %c0_12], %18 {strides = array<i32>} : memref<128x256xf32, #tpu.memory_space<vmem>>, vector<128x256xf32>,
    return
  }
  func.func @transform_0(%arg0: i32) -> (i32, i32) {
    %c0_i32 = arith.constant 0 : i32
    %c0_i32_0 = arith.constant 0 : i32
    return %arg0, %c0_i32 : i32, i32
  }
  func.func @transform_1(%arg0: i32) -> (i32, i32) {
    %c0_i32 = arith.constant 0 : i32
    %c0_i32_0 = arith.constant 0 : i32
    return %arg0, %c0_i32 : i32, i32
  }
  func.func @transform_2(%arg0: i32) -> (i32, i32) {
    %c0_i32 = arith.constant 0 : i32
    %c0_i32_0 = arith.constant 0 : i32
    %c0_i32_1 = arith.constant 0 : i32
    return %c0_i32, %c0_i32_0 : i32, i32
  }
  func.func @transform_3(%arg0: i32) -> (i32, i32) {
    %c0_i32 = arith.constant 0 : i32
    %c0_i32_0 = arith.constant 0 : i32
    %c0_i32_1 = arith.constant 0 : i32
    return %c0_i32, %c0_i32_0 : i32, i32
  }
  func.func @transform_4(%arg0: i32) -> (i32, i32) {
    %c0_i32 = arith.constant 0 : i32
    %c0_i32_0 = arith.constant 0 : i32
    %c0_i32_1 = arith.constant 0 : i32
    return %c0_i32, %c0_i32_0 : i32, i32
  }
  func.func @transform_5(%arg0: i32) -> (i32, i32) {
    %c0_i32 = arith.constant 0 : i32
    %c0_i32_0 = arith.constant 0 : i32
    %c0_i32_1 = arith.constant 0 : i32
    return %c0_i32, %c0_i32_0 : i32, i32
  }
  func.func @transform_6(%arg0: i32) -> (i32, i32) {
    %c0_i32 = arith.constant 0 : i32
    %c0_i32_0 = arith.constant 0 : i32
    return %arg0, %c0_i32 : i32, i32
  }
}

</mosaic_0001>

<llo_original>
// kernel: bottleneck_forward.5
$region0: #{bottleneck_forward.5}
  #allocation0 [shape = 'u32[]', space=smem, size = 0x4, offset = 0x4, fixed_abs, tag = 'smem constant byte address 0x4 - core index']
  #allocation1 [shape = 'u32[72,128]{1,0:T(1,128)}', space=vmem, size = 0x9000, scoped, tag = 'internal scratch']
  #allocation2 [shape = 'f32[512,64]{1,0:T(8,128)}', space=vmem, size = 0x40000, scoped, tag = 'scratch operand']
  %s0 = inlined_call_operand.hbm [shape: f32[512,64], index: 0, kind: input, shape index: {}]
  %s1 = inlined_call_operand.hbm [shape: bf16[64,64], index: 1, kind: input, shape index: {}]
  %s2 = inlined_call_operand.vmem [shape: f32[1,64], index: 2, kind: input, shape index: {}]
  %s3 = inlined_call_operand.vmem [shape: f32[1,64], index: 3, kind: input, shape index: {}]
  %s4 = inlined_call_operand.vmem [shape: bf16[512,64], index: 4, kind: output, shape index: {0}]
  %s5 = inlined_call_operand.vmem [shape: f32[1,2,64], index: 5, kind: output, shape index: {1}]
  %6 = xla_tuple %s4, %s5
  %s7 = sld [smem:[#allocation0]]
  $region50: #{bottleneck_forward.5} parent=0
    _
  %s9 = ssub.s32 1, %s7
  %s10 = scalar_select 0, %s9, %s7
  $region1: #{bottleneck_forward.5} parent=0
    #allocation3 [shape = 'u8[262144]{0}', space=vmem, size = 0x40000, scoped, tag = 'input window, operand 0, single buffered']
    #allocation4 [shape = 's32[1]{0}', space=sflag, size = 0x4, scoped, tag = 'scoped memory for bottleneck_forward.5']
    #allocation5 [shape = 'u8[16384]{0}', space=vmem, size = 0x4000, scoped, tag = 'input window, operand 1, single buffered']
    #allocation6 [shape = 's32[1]{0}', space=sflag, size = 0x4, scoped, tag = 'scoped memory for bottleneck_forward.5']
    %11 = vsyncpa [#allocation4], 0
    %12 = vsyncpa [#allocation6], 0
    // Predicated region
    $region2: #{bottleneck_forward.5} parent=1 // pred_check
      _
    $region3: #{bottleneck_forward.5} parent=1 // pred_check_branch
      %14 = sbr.rel (0) target = $region5
    $region4: #{bottleneck_forward.5} parent=1 // pred_region
      %16 = vsyncadd [#allocation4], 0
      %s17 = sshll.u32 %s0, 4
      %s18 = int_to_ptr.hbm [resolvable:$true] %s17
      %s19 = sshll.u32 [#allocation3], 4
      %s20 = int_to_ptr.vmem [resolvable:$true] %s19
      %25 = dma.hbm_to_vmem [thread:$0]  %s18, 8192, %s20, [#allocation4], 128, 128, 8
    $region5: #{bottleneck_forward.5} parent=1 // pred_fallthru
      _
    // Predicated region
    $region6: #{bottleneck_forward.5} parent=1 // pred_check
      _
    $region7: #{bottleneck_forward.5} parent=1 // pred_check_branch
      %27 = sbr.rel (0) target = $region9
    $region8: #{bottleneck_forward.5} parent=1 // pred_region
      %29 = vsyncadd [#allocation6], 0
      %s30 = sshll.u32 %s1, 4
      %s31 = int_to_ptr.hbm [resolvable:$true] %s30
      %s32 = sshll.u32 [#allocation5], 4
      %s33 = int_to_ptr.vmem [resolvable:$true] %s32
      %38 = dma.hbm_to_vmem [thread:$0]  %s31, 512, %s33, [#allocation6], 64, 64, 4
    $region9: #{bottleneck_forward.5} parent=1 // pred_fallthru
      _
    // Predicated region
    $region10: #{bottleneck_forward.5} parent=1 // pred_check
      _
    $region11: #{bottleneck_forward.5} parent=1 // pred_check_branch
      %40 = sbr.rel (0) target = $region13
    $region12: #{bottleneck_forward.5} parent=1 // pred_region
      _
    $region13: #{bottleneck_forward.5} parent=1 // pred_fallthru
      _
    // Predicated region
    $region14: #{bottleneck_forward.5} parent=1 // pred_check
      _
    $region15: #{bottleneck_forward.5} parent=1 // pred_check_branch
      %42 = sbr.rel (0) target = $region17
    $region16: #{bottleneck_forward.5} parent=1 // pred_region
      _
    $region17: #{bottleneck_forward.5} parent=1 // pred_fallthru
      _
    // Predicated region
    $region18: #{bottleneck_forward.5} parent=1 // pred_check
      _
    $region19: #{bottleneck_forward.5} parent=1 // pred_check_branch
      %44 = sbr.rel (0) target = $region21
    $region20: #{bottleneck_forward.5} parent=1 // pred_region
      %46 = dma.done [#allocation4], 8192
    $region21: #{bottleneck_forward.5} parent=1 // pred_fallthru
      _
    // Predicated region
    $region22: #{bottleneck_forward.5} parent=1 // pred_check
      _
    $region23: #{bottleneck_forward.5} parent=1 // pred_check_branch
      %48 = sbr.rel (0) target = $region25
    $region24: #{bottleneck_forward.5} parent=1 // pred_region
      %50 = dma.done [#allocation6], 512
    $region25: #{bottleneck_forward.5} parent=1 // pred_fallthru
      _
    %p52 = scmp.eq.s32.totalorder 0, 0
    // Predicated region
    $region26: #{bottleneck_forward.5} parent=1 // pred_check
      %p53 = pneg %p52
    $region27: #{bottleneck_forward.5} parent=1 // pred_check_branch
      %55 = sbr.rel (%p53) target = $region29
    $region28: #{bottleneck_forward.5} parent=1 // pred_region
      %vm56 = vcmask 523264
      %57 = vst.msk [vmem:[#allocation2] sm:$0xff] %vm56, 0.0
      %58 = vst.msk [vmem:[#allocation2 + $0x8] sm:$0xff] %vm56, 0.0
      %59 = vst.msk [vmem:[#allocation2 + $0x10] sm:$0xff] %vm56, 0.0
      %60 = vst.msk [vmem:[#allocation2 + $0x18] sm:$0xff] %vm56, 0.0
      %61 = vst.msk [vmem:[#allocation2 + $0x20] sm:$0xff] %vm56, 0.0
      %62 = vst.msk [vmem:[#allocation2 + $0x28] sm:$0xff] %vm56, 0.0
      %63 = vst.msk [vmem:[#allocation2 + $0x30] sm:$0xff] %vm56, 0.0
      %64 = vst.msk [vmem:[#allocation2 + $0x38] sm:$0xff] %vm56, 0.0
      %65 = vst.msk [vmem:[#allocation2 + $0x40] sm:$0xff] %vm56, 0.0
      %66 = vst.msk [vmem:[#allocation2 + $0x48] sm:$0xff] %vm56, 0.0
      %67 = vst.msk [vmem:[#allocation2 + $0x50] sm:$0xff] %vm56, 0.0
      %68 = vst.msk [vmem:[#allocation2 + $0x58] sm:$0xff] %vm56, 0.0
      %69 = vst.msk [vmem:[#allocation2 + $0x60] sm:$0xff] %vm56, 0.0
      %70 = vst.msk [vmem:[#allocation2 + $0x68] sm:$0xff] %vm56, 0.0
      %71 = vst.msk [vmem:[#allocation2 + $0x70] sm:$0xff] %vm56, 0.0
      %72 = vst.msk [vmem:[#allocation2 + $0x78] sm:$0xff] %vm56, 0.0
      %73 = vst.msk [vmem:[#allocation2 + $0x80] sm:$0xff] %vm56, 0.0
      %74 = vst.msk [vmem:[#allocation2 + $0x88] sm:$0xff] %vm56, 0.0
      %75 = vst.msk [vmem:[#allocation2 + $0x90] sm:$0xff] %vm56, 0.0
      %76 = vst.msk [vmem:[#allocation2 + $0x98] sm:$0xff] %vm56, 0.0
      %77 = vst.msk [vmem:[#allocation2 + $0xa0] sm:$0xff] %vm56, 0.0
      %78 = vst.msk [vmem:[#allocation2 + $0xa8] sm:$0xff] %vm56, 0.0
      %79 = vst.msk [vmem:[#allocation2 + $0xb0] sm:$0xff] %vm56, 0.0
      %80 = vst.msk [vmem:[#allocation2 + $0xb8] sm:$0xff] %vm56, 0.0
      %81 = vst.msk [vmem:[#allocation2 + $0xc0] sm:$0xff] %vm56, 0.0
      %82 = vst.msk [vmem:[#allocation2 + $0xc8] sm:$0xff] %vm56, 0.0
      %83 = vst.msk [vmem:[#allocation2 + $0xd0] sm:$0xff] %vm56, 0.0
      %84 = vst.msk [vmem:[#allocation2 + $0xd8] sm:$0xff] %vm56, 0.0
      %85 = vst.msk [vmem:[#allocation2 + $0xe0] sm:$0xff] %vm56, 0.0
      %86 = vst.msk [vmem:[#allocation2 + $0xe8] sm:$0xff] %vm56, 0.0
      %87 = vst.msk [vmem:[#allocation2 + $0xf0] sm:$0xff] %vm56, 0.0
      %88 = vst.msk [vmem:[#allocation2 + $0xf8] sm:$0xff] %vm56, 0.0
      %89 = vst.msk [vmem:[#allocation2 + $0x100] sm:$0xff] %vm56, 0.0
      %90 = vst.msk [vmem:[#allocation2 + $0x108] sm:$0xff] %vm56, 0.0
      %91 = vst.msk [vmem:[#allocation2 + $0x110] sm:$0xff] %vm56, 0.0
      %92 = vst.msk [vmem:[#allocation2 + $0x118] sm:$0xff] %vm56, 0.0
      %93 = vst.msk [vmem:[#allocation2 + $0x120] sm:$0xff] %vm56, 0.0
      %94 = vst.msk [vmem:[#allocation2 + $0x128] sm:$0xff] %vm56, 0.0
      %95 = vst.msk [vmem:[#allocation2 + $0x130] sm:$0xff] %vm56, 0.0
      %96 = vst.msk [vmem:[#allocation2 + $0x138] sm:$0xff] %vm56, 0.0
      %97 = vst.msk [vmem:[#allocation2 + $0x140] sm:$0xff] %vm56, 0.0
      %98 = vst.msk [vmem:[#allocation2 + $0x148] sm:$0xff] %vm56, 0.0
      %99 = vst.msk [vmem:[#allocation2 + $0x150] sm:$0xff] %vm56, 0.0
      %100 = vst.msk [vmem:[#allocation2 + $0x158] sm:$0xff] %vm56, 0.0
      %101 = vst.msk [vmem:[#allocation2 + $0x160] sm:$0xff] %vm56, 0.0
      %102 = vst.msk [vmem:[#allocation2 + $0x168] sm:$0xff] %vm56, 0.0
      %103 = vst.msk [vmem:[#allocation2 + $0x170] sm:$0xff] %vm56, 0.0
      %104 = vst.msk [vmem:[#allocation2 + $0x178] sm:$0xff] %vm56, 0.0
      %105 = vst.msk [vmem:[#allocation2 + $0x180] sm:$0xff] %vm56, 0.0
      %106 = vst.msk [vmem:[#allocation2 + $0x188] sm:$0xff] %vm56, 0.0
      %107 = vst.msk [vmem:[#allocation2 + $0x190] sm:$0xff] %vm56, 0.0
      %108 = vst.msk [vmem:[#allocation2 + $0x198] sm:$0xff] %vm56, 0.0
      %109 = vst.msk [vmem:[#allocation2 + $0x1a0] sm:$0xff] %vm56, 0.0
      %110 = vst.msk [vmem:[#allocation2 + $0x1a8] sm:$0xff] %vm56, 0.0
      %111 = vst.msk [vmem:[#allocation2 + $0x1b0] sm:$0xff] %vm56, 0.0
      %112 = vst.msk [vmem:[#allocation2 + $0x1b8] sm:$0xff] %vm56, 0.0
      %113 = vst.msk [vmem:[#allocation2 + $0x1c0] sm:$0xff] %vm56, 0.0
      %114 = vst.msk [vmem:[#allocation2 + $0x1c8] sm:$0xff] %vm56, 0.0
      %115 = vst.msk [vmem:[#allocation2 + $0x1d0] sm:$0xff] %vm56, 0.0
      %116 = vst.msk [vmem:[#allocation2 + $0x1d8] sm:$0xff] %vm56, 0.0
      %117 = vst.msk [vmem:[#allocation2 + $0x1e0] sm:$0xff] %vm56, 0.0
      %118 = vst.msk [vmem:[#allocation2 + $0x1e8] sm:$0xff] %vm56, 0.0
      %119 = vst.msk [vmem:[#allocation2 + $0x1f0] sm:$0xff] %vm56, 0.0
      %120 = vst.msk [vmem:[#allocation2 + $0x1f8] sm:$0xff] %vm56, 0.0
    $region29: #{bottleneck_forward.5} parent=1 // pred_fallthru
      _
    %v121 = vld [vmem:[#allocation3] sm:$0xff]
    %v122 = vld [vmem:[#allocation3 + $0x8] sm:$0xff]
    %v123 = vld [vmem:[#allocation3 + $0x10] sm:$0xff]
    %v124 = vld [vmem:[#allocation3 + $0x18] sm:$0xff]
    %v125 = vld [vmem:[#allocation3 + $0x20] sm:$0xff]
    %v126 = vld [vmem:[#allocation3 + $0x28] sm:$0xff]
    %v127 = vld [vmem:[#allocation3 + $0x30] sm:$0xff]
    %v128 = vld [vmem:[#allocation3 + $0x38] sm:$0xff]
    %v129 = vld [vmem:[#allocation3 + $0x40] sm:$0xff]
    %v130 = vld [vmem:[#allocation3 + $0x48] sm:$0xff]
    %v131 = vld [vmem:[#allocation3 + $0x50] sm:$0xff]
    %v132 = vld [vmem:[#allocation3 + $0x58] sm:$0xff]
    %v133 = vld [vmem:[#allocation3 + $0x60] sm:$0xff]
    %v134 = vld [vmem:[#allocation3 + $0x68] sm:$0xff]
    %v135 = vld [vmem:[#allocation3 + $0x70] sm:$0xff]
    %v136 = vld [vmem:[#allocation3 + $0x78] sm:$0xff]
    %v137 = vld [vmem:[#allocation3 + $0x80] sm:$0xff]
    %v138 = vld [vmem:[#allocation3 + $0x88] sm:$0xff]
    %v139 = vld [vmem:[#allocation3 + $0x90] sm:$0xff]
    %v140 = vld [vmem:[#allocation3 + $0x98] sm:$0xff]
    %v141 = vld [vmem:[#allocation3 + $0xa0] sm:$0xff]
    %v142 = vld [vmem:[#allocation3 + $0xa8] sm:$0xff]
    %v143 = vld [vmem:[#allocation3 + $0xb0] sm:$0xff]
    %v144 = vld [vmem:[#allocation3 + $0xb8] sm:$0xff]
    %v145 = vld [vmem:[#allocation3 + $0xc0] sm:$0xff]
    %v146 = vld [vmem:[#allocation3 + $0xc8] sm:$0xff]
    %v147 = vld [vmem:[#allocation3 + $0xd0] sm:$0xff]
    %v148 = vld [vmem:[#allocation3 + $0xd8] sm:$0xff]
    %v149 = vld [vmem:[#allocation3 + $0xe0] sm:$0xff]
    %v150 = vld [vmem:[#allocation3 + $0xe8] sm:$0xff]
    %v151 = vld [vmem:[#allocation3 + $0xf0] sm:$0xff]
    %v152 = vld [vmem:[#allocation3 + $0xf8] sm:$0xff]
    %v153 = vld [vmem:[#allocation3 + $0x100] sm:$0xff]
    %v154 = vld [vmem:[#allocation3 + $0x108] sm:$0xff]
    %v155 = vld [vmem:[#allocation3 + $0x110] sm:$0xff]
    %v156 = vld [vmem:[#allocation3 + $0x118] sm:$0xff]
    %v157 = vld [vmem:[#allocation3 + $0x120] sm:$0xff]
    %v158 = vld [vmem:[#allocation3 + $0x128] sm:$0xff]
    %v159 = vld [vmem:[#allocation3 + $0x130] sm:$0xff]
    %v160 = vld [vmem:[#allocation3 + $0x138] sm:$0xff]
    %v161 = vld [vmem:[#allocation3 + $0x140] sm:$0xff]
    %v162 = vld [vmem:[#allocation3 + $0x148] sm:$0xff]
    %v163 = vld [vmem:[#allocation3 + $0x150] sm:$0xff]
    %v164 = vld [vmem:[#allocation3 + $0x158] sm:$0xff]
    %v165 = vld [vmem:[#allocation3 + $0x160] sm:$0xff]
    %v166 = vld [vmem:[#allocation3 + $0x168] sm:$0xff]
    %v167 = vld [vmem:[#allocation3 + $0x170] sm:$0xff]
    %v168 = vld [vmem:[#allocation3 + $0x178] sm:$0xff]
    %v169 = vld [vmem:[#allocation3 + $0x180] sm:$0xff]
    %v170 = vld [vmem:[#allocation3 + $0x188] sm:$0xff]
    %v171 = vld [vmem:[#allocation3 + $0x190] sm:$0xff]
    %v172 = vld [vmem:[#allocation3 + $0x198] sm:$0xff]
    %v173 = vld [vmem:[#allocation3 + $0x1a0] sm:$0xff]
    %v174 = vld [vmem:[#allocation3 + $0x1a8] sm:$0xff]
    %v175 = vld [vmem:[#allocation3 + $0x1b0] sm:$0xff]
    %v176 = vld [vmem:[#allocation3 + $0x1b8] sm:$0xff]
    %v177 = vld [vmem:[#allocation3 + $0x1c0] sm:$0xff]
    %v178 = vld [vmem:[#allocation3 + $0x1c8] sm:$0xff]
    %v179 = vld [vmem:[#allocation3 + $0x1d0] sm:$0xff]
    %v180 = vld [vmem:[#allocation3 + $0x1d8] sm:$0xff]
    %v181 = vld [vmem:[#allocation3 + $0x1e0] sm:$0xff]
    %v182 = vld [vmem:[#allocation3 + $0x1e8] sm:$0xff]
    %v183 = vld [vmem:[#allocation3 + $0x1f0] sm:$0xff]
    %v184 = vld [vmem:[#allocation3 + $0x1f8] sm:$0xff]
    %v185 = vld [vmem:[#allocation2] sm:$0xff]
    %v186 = vld [vmem:[#allocation2 + $0x8] sm:$0xff]
    %v187 = vld [vmem:[#allocation2 + $0x10] sm:$0xff]
    %v188 = vld [vmem:[#allocation2 + $0x18] sm:$0xff]
    %v189 = vld [vmem:[#allocation2 + $0x20] sm:$0xff]
    %v190 = vld [vmem:[#allocation2 + $0x28] sm:$0xff]
    %v191 = vld [vmem:[#allocation2 + $0x30] sm:$0xff]
    %v192 = vld [vmem:[#allocation2 + $0x38] sm:$0xff]
    %v193 = vld [vmem:[#allocation2 + $0x40] sm:$0xff]
    %v194 = vld [vmem:[#allocation2 + $0x48] sm:$0xff]
    %v195 = vld [vmem:[#allocation2 + $0x50] sm:$0xff]
    %v196 = vld [vmem:[#allocation2 + $0x58] sm:$0xff]
    %v197 = vld [vmem:[#allocation2 + $0x60] sm:$0xff]
    %v198 = vld [vmem:[#allocation2 + $0x68] sm:$0xff]
    %v199 = vld [vmem:[#allocation2 + $0x70] sm:$0xff]
    %v200 = vld [vmem:[#allocation2 + $0x78] sm:$0xff]
    %v201 = vld [vmem:[#allocation2 + $0x80] sm:$0xff]
    %v202 = vld [vmem:[#allocation2 + $0x88] sm:$0xff]
    %v203 = vld [vmem:[#allocation2 + $0x90] sm:$0xff]
    %v204 = vld [vmem:[#allocation2 + $0x98] sm:$0xff]
    %v205 = vld [vmem:[#allocation2 + $0xa0] sm:$0xff]
    %v206 = vld [vmem:[#allocation2 + $0xa8] sm:$0xff]
    %v207 = vld [vmem:[#allocation2 + $0xb0] sm:$0xff]
    %v208 = vld [vmem:[#allocation2 + $0xb8] sm:$0xff]
    %v209 = vld [vmem:[#allocation2 + $0xc0] sm:$0xff]
    %v210 = vld [vmem:[#allocation2 + $0xc8] sm:$0xff]
    %v211 = vld [vmem:[#allocation2 + $0xd0] sm:$0xff]
    %v212 = vld [vmem:[#allocation2 + $0xd8] sm:$0xff]
    %v213 = vld [vmem:[#allocation2 + $0xe0] sm:$0xff]
    %v214 = vld [vmem:[#allocation2 + $0xe8] sm:$0xff]
    %v215 = vld [vmem:[#allocation2 + $0xf0] sm:$0xff]
    %v216 = vld [vmem:[#allocation2 + $0xf8] sm:$0xff]
    %v217 = vld [vmem:[#allocation2 + $0x100] sm:$0xff]
    %v218 = vld [vmem:[#allocation2 + $0x108] sm:$0xff]
    %v219 = vld [vmem:[#allocation2 + $0x110] sm:$0xff]
    %v220 = vld [vmem:[#allocation2 + $0x118] sm:$0xff]
    %v221 = vld [vmem:[#allocation2 + $0x120] sm:$0xff]
    %v222 = vld [vmem:[#allocation2 + $0x128] sm:$0xff]
    %v223 = vld [vmem:[#allocation2 + $0x130] sm:$0xff]
    %v224 = vld [vmem:[#allocation2 + $0x138] sm:$0xff]
    %v225 = vld [vmem:[#allocation2 + $0x140] sm:$0xff]
    %v226 = vld [vmem:[#allocation2 + $0x148] sm:$0xff]
    %v227 = vld [vmem:[#allocation2 + $0x150] sm:$0xff]
    %v228 = vld [vmem:[#allocation2 + $0x158] sm:$0xff]
    %v229 = vld [vmem:[#allocation2 + $0x160] sm:$0xff]
    %v230 = vld [vmem:[#allocation2 + $0x168] sm:$0xff]
    %v231 = vld [vmem:[#allocation2 + $0x170] sm:$0xff]
    %v232 = vld [vmem:[#allocation2 + $0x178] sm:$0xff]
    %v233 = vld [vmem:[#allocation2 + $0x180] sm:$0xff]
    %v234 = vld [vmem:[#allocation2 + $0x188] sm:$0xff]
    %v235 = vld [vmem:[#allocation2 + $0x190] sm:$0xff]
    %v236 = vld [vmem:[#allocation2 + $0x198] sm:$0xff]
    %v237 = vld [vmem:[#allocation2 + $0x1a0] sm:$0xff]
    %v238 = vld [vmem:[#allocation2 + $0x1a8] sm:$0xff]
    %v239 = vld [vmem:[#allocation2 + $0x1b0] sm:$0xff]
    %v240 = vld [vmem:[#allocation2 + $0x1b8] sm:$0xff]
    %v241 = vld [vmem:[#allocation2 + $0x1c0] sm:$0xff]
    %v242 = vld [vmem:[#allocation2 + $0x1c8] sm:$0xff]
    %v243 = vld [vmem:[#allocation2 + $0x1d0] sm:$0xff]
    %v244 = vld [vmem:[#allocation2 + $0x1d8] sm:$0xff]
    %v245 = vld [vmem:[#allocation2 + $0x1e0] sm:$0xff]
    %v246 = vld [vmem:[#allocation2 + $0x1e8] sm:$0xff]
    %v247 = vld [vmem:[#allocation2 + $0x1f0] sm:$0xff]
    %v248 = vld [vmem:[#allocation2 + $0x1f8] sm:$0xff]
    %v249 = vpack.c.bf16 %v122, %v121
    %v250 = vpack.c.bf16 %v124, %v123
    %v251 = vpack.c.bf16 %v126, %v125
    %v252 = vpack.c.bf16 %v128, %v127
    %v253 = vpack.c.bf16 %v130, %v129
    %v254 = vpack.c.bf16 %v132, %v131
    %v255 = vpack.c.bf16 %v134, %v133
    %v256 = vpack.c.bf16 %v136, %v135
    %v257 = vpack.c.bf16 %v138, %v137
    %v258 = vpack.c.bf16 %v140, %v139
    %v259 = vpack.c.bf16 %v142, %v141
    %v260 = vpack.c.bf16 %v144, %v143
    %v261 = vpack.c.bf16 %v146, %v145
    %v262 = vpack.c.bf16 %v148, %v147
    %v263 = vpack.c.bf16 %v150, %v149
    %v264 = vpack.c.bf16 %v152, %v151
    %v265 = vpack.c.bf16 %v154, %v153
    %v266 = vpack.c.bf16 %v156, %v155
    %v267 = vpack.c.bf16 %v158, %v157
    %v268 = vpack.c.bf16 %v160, %v159
    %v269 = vpack.c.bf16 %v162, %v161
    %v270 = vpack.c.bf16 %v164, %v163
    %v271 = vpack.c.bf16 %v166, %v165
    %v272 = vpack.c.bf16 %v168, %v167
    %v273 = vpack.c.bf16 %v170, %v169
    %v274 = vpack.c.bf16 %v172, %v171
    %v275 = vpack.c.bf16 %v174, %v173
    %v276 = vpack.c.bf16 %v176, %v175
    %v277 = vpack.c.bf16 %v178, %v177
    %v278 = vpack.c.bf16 %v180, %v179
    %v279 = vpack.c.bf16 %v182, %v181
    %v280 = vpack.c.bf16 %v184, %v183
    %v281 = vld [vmem:[#allocation5] sm:$0xf]
    %v282 = vld [vmem:[#allocation5 + $0x4] sm:$0xf]
    %v283 = vld [vmem:[#allocation5 + $0x8] sm:$0xf]
    %v284 = vld [vmem:[#allocation5 + $0xc] sm:$0xf]
    %v285 = vld [vmem:[#allocation5 + $0x10] sm:$0xf]
    %v286 = vld [vmem:[#allocation5 + $0x14] sm:$0xf]
    %v287 = vld [vmem:[#allocation5 + $0x18] sm:$0xf]
    %v288 = vld [vmem:[#allocation5 + $0x1c] sm:$0xf]
    %v297 = vunpack.c.l.b16 %v281
    %v298 = vunpack.c.l.b16 %v282
    %v299 = vunpack.c.l.b16 %v283
    %v300 = vunpack.c.l.b16 %v284
    %v301 = vunpack.c.l.b16 %v285
    %v302 = vunpack.c.l.b16 %v286
    %v303 = vunpack.c.l.b16 %v287
    %v304 = vunpack.c.l.b16 %v288
    %v305 = vpack.c.b16 %v298, %v297
    %v306 = vpack.c.b16 %v300, %v299
    %v307 = vpack.c.b16 %v302, %v301
    %v308 = vpack.c.b16 %v304, %v303
    %vm313 = vcmask 523264
    %v315 = vsel %vm313, %v249, 0
    %v318 = vsel %vm313, %v250, 0
    %v321 = vsel %vm313, %v251, 0
    %v324 = vsel %vm313, %v252, 0
    %v327 = vsel %vm313, %v253, 0
    %v330 = vsel %vm313, %v254, 0
    %v333 = vsel %vm313, %v255, 0
    %v336 = vsel %vm313, %v256, 0
    %v339 = vsel %vm313, %v257, 0
    %v342 = vsel %vm313, %v258, 0
    %v345 = vsel %vm313, %v259, 0
    %v348 = vsel %vm313, %v260, 0
    %v351 = vsel %vm313, %v261, 0
    %v354 = vsel %vm313, %v262, 0
    %v357 = vsel %vm313, %v263, 0
    %v360 = vsel %vm313, %v264, 0
    %v363 = vsel %vm313, %v265, 0
    %v366 = vsel %vm313, %v266, 0
    %v369 = vsel %vm313, %v267, 0
    %v372 = vsel %vm313, %v268, 0
    %v375 = vsel %vm313, %v269, 0
    %v378 = vsel %vm313, %v270, 0
    %v381 = vsel %vm313, %v271, 0
    %v384 = vsel %vm313, %v272, 0
    %v387 = vsel %vm313, %v273, 0
    %v390 = vsel %vm313, %v274, 0
    %v393 = vsel %vm313, %v275, 0
    %v396 = vsel %vm313, %v276, 0
    %v399 = vsel %vm313, %v277, 0
    %v402 = vsel %vm313, %v278, 0
    %v405 = vsel %vm313, %v279, 0
    %v408 = vsel %vm313, %v280, 0
    %410 = vmatpush.bf16.msra.mxu0 0
    %411 = vmatpush.bf16.msra.mxu0 0
    %412 = vmatpush.bf16.msra.mxu0 0
    %413 = vmatpush.bf16.msra.mxu0 0
    %414 = vmatpush.bf16.msra.mxu0 %v308
    %415 = vmatpush.bf16.msra.mxu0 %v307
    %416 = vmatpush.bf16.msra.mxu0 %v306
    %417 = vmatpush.bf16.msra.mxu0 %v305
    %418 = vmatmul.bf16.gmra.mxu0 %v315
    %v419 = vpop.f32.mrf.mxu0
    %v420 = vadd.f32 0.0, %v419
    %v421 = vpop.f32.mrf.mxu0
    %v422 = vadd.f32 0.0, %v421
    %423 = vmatmul.bf16.gmra.mxu0 %v318
    %v424 = vpop.f32.mrf.mxu0
    %v425 = vadd.f32 0.0, %v424
    %v426 = vpop.f32.mrf.mxu0
    %v427 = vadd.f32 0.0, %v426
    %428 = vmatmul.bf16.gmra.mxu0 %v321
    %v429 = vpop.f32.mrf.mxu0
    %v430 = vadd.f32 0.0, %v429
    %v431 = vpop.f32.mrf.mxu0
    %v432 = vadd.f32 0.0, %v431
    %433 = vmatmul.bf16.gmra.mxu0 %v324
    %v434 = vpop.f32.mrf.mxu0
    %v435 = vadd.f32 0.0, %v434
    %v436 = vpop.f32.mrf.mxu0
    %v437 = vadd.f32 0.0, %v436
    %438 = vmatmul.bf16.gmra.mxu0 %v327
    %v439 = vpop.f32.mrf.mxu0
    %v440 = vadd.f32 0.0, %v439
    %v441 = vpop.f32.mrf.mxu0
    %v442 = vadd.f32 0.0, %v441
    %443 = vmatmul.bf16.gmra.mxu0 %v330
    %v444 = vpop.f32.mrf.mxu0
    %v445 = vadd.f32 0.0, %v444
    %v446 = vpop.f32.mrf.mxu0
    %v447 = vadd.f32 0.0, %v446
    %448 = vmatmul.bf16.gmra.mxu0 %v333
    %v449 = vpop.f32.mrf.mxu0
    %v450 = vadd.f32 0.0, %v449
    %v451 = vpop.f32.mrf.mxu0
    %v452 = vadd.f32 0.0, %v451
    %453 = vmatmul.bf16.gmra.mxu0 %v336
    %v454 = vpop.f32.mrf.mxu0
    %v455 = vadd.f32 0.0, %v454
    %v456 = vpop.f32.mrf.mxu0
    %v457 = vadd.f32 0.0, %v456
    %458 = vmatmul.bf16.gmra.mxu0 %v339
    %v459 = vpop.f32.mrf.mxu0
    %v460 = vadd.f32 0.0, %v459
    %v461 = vpop.f32.mrf.mxu0
    %v462 = vadd.f32 0.0, %v461
    %463 = vmatmul.bf16.gmra.mxu0 %v342
    %v464 = vpop.f32.mrf.mxu0
    %v465 = vadd.f32 0.0, %v464
    %v466 = vpop.f32.mrf.mxu0
    %v467 = vadd.f32 0.0, %v466
    %468 = vmatmul.bf16.gmra.mxu0 %v345
    %v469 = vpop.f32.mrf.mxu0
    %v470 = vadd.f32 0.0, %v469
    %v471 = vpop.f32.mrf.mxu0
    %v472 = vadd.f32 0.0, %v471
    %473 = vmatmul.bf16.gmra.mxu0 %v348
    %v474 = vpop.f32.mrf.mxu0
    %v475 = vadd.f32 0.0, %v474
    %v476 = vpop.f32.mrf.mxu0
    %v477 = vadd.f32 0.0, %v476
    %478 = vmatmul.bf16.gmra.mxu0 %v351
    %v479 = vpop.f32.mrf.mxu0
    %v480 = vadd.f32 0.0, %v479
    %v481 = vpop.f32.mrf.mxu0
    %v482 = vadd.f32 0.0, %v481
    %483 = vmatmul.bf16.gmra.mxu0 %v354
    %v484 = vpop.f32.mrf.mxu0
    %v485 = vadd.f32 0.0, %v484
    %v486 = vpop.f32.mrf.mxu0
    %v487 = vadd.f32 0.0, %v486
    %488 = vmatmul.bf16.gmra.mxu0 %v357
    %v489 = vpop.f32.mrf.mxu0
    %v490 = vadd.f32 0.0, %v489
    %v491 = vpop.f32.mrf.mxu0
    %v492 = vadd.f32 0.0, %v491
    %493 = vmatmul.bf16.gmra.mxu0 %v360
    %v494 = vpop.f32.mrf.mxu0
    %v495 = vadd.f32 0.0, %v494
    %v496 = vpop.f32.mrf.mxu0
    %v497 = vadd.f32 0.0, %v496
    %498 = vmatmul.bf16.gmra.mxu0 %v363
    %v499 = vpop.f32.mrf.mxu0
    %v500 = vadd.f32 0.0, %v499
    %v501 = vpop.f32.mrf.mxu0
    %v502 = vadd.f32 0.0, %v501
    %503 = vmatmul.bf16.gmra.mxu0 %v366
    %v504 = vpop.f32.mrf.mxu0
    %v505 = vadd.f32 0.0, %v504
    %v506 = vpop.f32.mrf.mxu0
    %v507 = vadd.f32 0.0, %v506
    %508 = vmatmul.bf16.gmra.mxu0 %v369
    %v509 = vpop.f32.mrf.mxu0
    %v510 = vadd.f32 0.0, %v509
    %v511 = vpop.f32.mrf.mxu0
    %v512 = vadd.f32 0.0, %v511
    %513 = vmatmul.bf16.gmra.mxu0 %v372
    %v514 = vpop.f32.mrf.mxu0
    %v515 = vadd.f32 0.0, %v514
    %v516 = vpop.f32.mrf.mxu0
    %v517 = vadd.f32 0.0, %v516
    %518 = vmatmul.bf16.gmra.mxu0 %v375
    %v519 = vpop.f32.mrf.mxu0
    %v520 = vadd.f32 0.0, %v519
    %v521 = vpop.f32.mrf.mxu0
    %v522 = vadd.f32 0.0, %v521
    %523 = vmatmul.bf16.gmra.mxu0 %v378
    %v524 = vpop.f32.mrf.mxu0
    %v525 = vadd.f32 0.0, %v524
    %v526 = vpop.f32.mrf.mxu0
    %v527 = vadd.f32 0.0, %v526
    %528 = vmatmul.bf16.gmra.mxu0 %v381
    %v529 = vpop.f32.mrf.mxu0
    %v530 = vadd.f32 0.0, %v529
    %v531 = vpop.f32.mrf.mxu0
    %v532 = vadd.f32 0.0, %v531
    %533 = vmatmul.bf16.gmra.mxu0 %v384
    %v534 = vpop.f32.mrf.mxu0
    %v535 = vadd.f32 0.0, %v534
    %v536 = vpop.f32.mrf.mxu0
    %v537 = vadd.f32 0.0, %v536
    %538 = vmatmul.bf16.gmra.mxu0 %v387
    %v539 = vpop.f32.mrf.mxu0
    %v540 = vadd.f32 0.0, %v539
    %v541 = vpop.f32.mrf.mxu0
    %v542 = vadd.f32 0.0, %v541
    %543 = vmatmul.bf16.gmra.mxu0 %v390
    %v544 = vpop.f32.mrf.mxu0
    %v545 = vadd.f32 0.0, %v544
    %v546 = vpop.f32.mrf.mxu0
    %v547 = vadd.f32 0.0, %v546
    %548 = vmatmul.bf16.gmra.mxu0 %v393
    %v549 = vpop.f32.mrf.mxu0
    %v550 = vadd.f32 0.0, %v549
    %v551 = vpop.f32.mrf.mxu0
    %v552 = vadd.f32 0.0, %v551
    %553 = vmatmul.bf16.gmra.mxu0 %v396
    %v554 = vpop.f32.mrf.mxu0
    %v555 = vadd.f32 0.0, %v554
    %v556 = vpop.f32.mrf.mxu0
    %v557 = vadd.f32 0.0, %v556
    %558 = vmatmul.bf16.gmra.mxu0 %v399
    %v559 = vpop.f32.mrf.mxu0
    %v560 = vadd.f32 0.0, %v559
    %v561 = vpop.f32.mrf.mxu0
    %v562 = vadd.f32 0.0, %v561
    %563 = vmatmul.bf16.gmra.mxu0 %v402
    %v564 = vpop.f32.mrf.mxu0
    %v565 = vadd.f32 0.0, %v564
    %v566 = vpop.f32.mrf.mxu0
    %v567 = vadd.f32 0.0, %v566
    %568 = vmatmul.bf16.gmra.mxu0 %v405
    %v569 = vpop.f32.mrf.mxu0
    %v570 = vadd.f32 0.0, %v569
    %v571 = vpop.f32.mrf.mxu0
    %v572 = vadd.f32 0.0, %v571
    %573 = vmatmul.bf16.gmra.mxu0 %v408
    %v574 = vpop.f32.mrf.mxu0
    %v575 = vadd.f32 0.0, %v574
    %v576 = vpop.f32.mrf.mxu0
    %v577 = vadd.f32 0.0, %v576
    %578 = vdwg.mxu0
    %v579 = vadd.f32 %v185, %v420
    %v580 = vadd.f32 %v186, %v422
    %v581 = vadd.f32 %v187, %v425
    %v582 = vadd.f32 %v188, %v427
    %v583 = vadd.f32 %v189, %v430
    %v584 = vadd.f32 %v190, %v432
    %v585 = vadd.f32 %v191, %v435
    %v586 = vadd.f32 %v192, %v437
    %v587 = vadd.f32 %v193, %v440
    %v588 = vadd.f32 %v194, %v442
    %v589 = vadd.f32 %v195, %v445
    %v590 = vadd.f32 %v196, %v447
    %v591 = vadd.f32 %v197, %v450
    %v592 = vadd.f32 %v198, %v452
    %v593 = vadd.f32 %v199, %v455
    %v594 = vadd.f32 %v200, %v457
    %v595 = vadd.f32 %v201, %v460
    %v596 = vadd.f32 %v202, %v462
    %v597 = vadd.f32 %v203, %v465
    %v598 = vadd.f32 %v204, %v467
    %v599 = vadd.f32 %v205, %v470
    %v600 = vadd.f32 %v206, %v472
    %v601 = vadd.f32 %v207, %v475
    %v602 = vadd.f32 %v208, %v477
    %v603 = vadd.f32 %v209, %v480
    %v604 = vadd.f32 %v210, %v482
    %v605 = vadd.f32 %v211, %v485
    %v606 = vadd.f32 %v212, %v487
    %v607 = vadd.f32 %v213, %v490
    %v608 = vadd.f32 %v214, %v492
    %v609 = vadd.f32 %v215, %v495
    %v610 = vadd.f32 %v216, %v497
    %v611 = vadd.f32 %v217, %v500
    %v612 = vadd.f32 %v218, %v502
    %v613 = vadd.f32 %v219, %v505
    %v614 = vadd.f32 %v220, %v507
    %v615 = vadd.f32 %v221, %v510
    %v616 = vadd.f32 %v222, %v512
    %v617 = vadd.f32 %v223, %v515
    %v618 = vadd.f32 %v224, %v517
    %v619 = vadd.f32 %v225, %v520
    %v620 = vadd.f32 %v226, %v522
    %v621 = vadd.f32 %v227, %v525
    %v622 = vadd.f32 %v228, %v527
    %v623 = vadd.f32 %v229, %v530
    %v624 = vadd.f32 %v230, %v532
    %v625 = vadd.f32 %v231, %v535
    %v626 = vadd.f32 %v232, %v537
    %v627 = vadd.f32 %v233, %v540
    %v628 = vadd.f32 %v234, %v542
    %v629 = vadd.f32 %v235, %v545
    %v630 = vadd.f32 %v236, %v547
    %v631 = vadd.f32 %v237, %v550
    %v632 = vadd.f32 %v238, %v552
    %v633 = vadd.f32 %v239, %v555
    %v634 = vadd.f32 %v240, %v557
    %v635 = vadd.f32 %v241, %v560
    %v636 = vadd.f32 %v242, %v562
    %v637 = vadd.f32 %v243, %v565
    %v638 = vadd.f32 %v244, %v567
    %v639 = vadd.f32 %v245, %v570
    %v640 = vadd.f32 %v246, %v572
    %v641 = vadd.f32 %v247, %v575
    %v642 = vadd.f32 %v248, %v577
    %643 = vst.msk [vmem:[#allocation2] sm:$0xff] %vm313, %v579
    %644 = vst.msk [vmem:[#allocation2 + $0x8] sm:$0xff] %vm313, %v580
    %645 = vst.msk [vmem:[#allocation2 + $0x10] sm:$0xff] %vm313, %v581
    %646 = vst.msk [vmem:[#allocation2 + $0x18] sm:$0xff] %vm313, %v582
    %647 = vst.msk [vmem:[#allocation2 + $0x20] sm:$0xff] %vm313, %v583
    %648 = vst.msk [vmem:[#allocation2 + $0x28] sm:$0xff] %vm313, %v584
    %649 = vst.msk [vmem:[#allocation2 + $0x30] sm:$0xff] %vm313, %v585
    %650 = vst.msk [vmem:[#allocation2 + $0x38] sm:$0xff] %vm313, %v586
    %651 = vst.msk [vmem:[#allocation2 + $0x40] sm:$0xff] %vm313, %v587
    %652 = vst.msk [vmem:[#allocation2 + $0x48] sm:$0xff] %vm313, %v588
    %653 = vst.msk [vmem:[#allocation2 + $0x50] sm:$0xff] %vm313, %v589
    %654 = vst.msk [vmem:[#allocation2 + $0x58] sm:$0xff] %vm313, %v590
    %655 = vst.msk [vmem:[#allocation2 + $0x60] sm:$0xff] %vm313, %v591
    %656 = vst.msk [vmem:[#allocation2 + $0x68] sm:$0xff] %vm313, %v592
    %657 = vst.msk [vmem:[#allocation2 + $0x70] sm:$0xff] %vm313, %v593
    %658 = vst.msk [vmem:[#allocation2 + $0x78] sm:$0xff] %vm313, %v594
    %659 = vst.msk [vmem:[#allocation2 + $0x80] sm:$0xff] %vm313, %v595
    %660 = vst.msk [vmem:[#allocation2 + $0x88] sm:$0xff] %vm313, %v596
    %661 = vst.msk [vmem:[#allocation2 + $0x90] sm:$0xff] %vm313, %v597
    %662 = vst.msk [vmem:[#allocation2 + $0x98] sm:$0xff] %vm313, %v598
    %663 = vst.msk [vmem:[#allocation2 + $0xa0] sm:$0xff] %vm313, %v599
    %664 = vst.msk [vmem:[#allocation2 + $0xa8] sm:$0xff] %vm313, %v600
    %665 = vst.msk [vmem:[#allocation2 + $0xb0] sm:$0xff] %vm313, %v601
    %666 = vst.msk [vmem:[#allocation2 + $0xb8] sm:$0xff] %vm313, %v602
    %667 = vst.msk [vmem:[#allocation2 + $0xc0] sm:$0xff] %vm313, %v603
    %668 = vst.msk [vmem:[#allocation2 + $0xc8] sm:$0xff] %vm313, %v604
    %669 = vst.msk [vmem:[#allocation2 + $0xd0] sm:$0xff] %vm313, %v605
    %670 = vst.msk [vmem:[#allocation2 + $0xd8] sm:$0xff] %vm313, %v606
    %671 = vst.msk [vmem:[#allocation2 + $0xe0] sm:$0xff] %vm313, %v607
    %672 = vst.msk [vmem:[#allocation2 + $0xe8] sm:$0xff] %vm313, %v608
    %673 = vst.msk [vmem:[#allocation2 + $0xf0] sm:$0xff] %vm313, %v609
    %674 = vst.msk [vmem:[#allocation2 + $0xf8] sm:$0xff] %vm313, %v610
    %675 = vst.msk [vmem:[#allocation2 + $0x100] sm:$0xff] %vm313, %v611
    %676 = vst.msk [vmem:[#allocation2 + $0x108] sm:$0xff] %vm313, %v612
    %677 = vst.msk [vmem:[#allocation2 + $0x110] sm:$0xff] %vm313, %v613
    %678 = vst.msk [vmem:[#allocation2 + $0x118] sm:$0xff] %vm313, %v614
    %679 = vst.msk [vmem:[#allocation2 + $0x120] sm:$0xff] %vm313, %v615
    %680 = vst.msk [vmem:[#allocation2 + $0x128] sm:$0xff] %vm313, %v616
    %681 = vst.msk [vmem:[#allocation2 + $0x130] sm:$0xff] %vm313, %v617
    %682 = vst.msk [vmem:[#allocation2 + $0x138] sm:$0xff] %vm313, %v618
    %683 = vst.msk [vmem:[#allocation2 + $0x140] sm:$0xff] %vm313, %v619
    %684 = vst.msk [vmem:[#allocation2 + $0x148] sm:$0xff] %vm313, %v620
    %685 = vst.msk [vmem:[#allocation2 + $0x150] sm:$0xff] %vm313, %v621
    %686 = vst.msk [vmem:[#allocation2 + $0x158] sm:$0xff] %vm313, %v622
    %687 = vst.msk [vmem:[#allocation2 + $0x160] sm:$0xff] %vm313, %v623
    %688 = vst.msk [vmem:[#allocation2 + $0x168] sm:$0xff] %vm313, %v624
    %689 = vst.msk [vmem:[#allocation2 + $0x170] sm:$0xff] %vm313, %v625
    %690 = vst.msk [vmem:[#allocation2 + $0x178] sm:$0xff] %vm313, %v626
    %691 = vst.msk [vmem:[#allocation2 + $0x180] sm:$0xff] %vm313, %v627
    %692 = vst.msk [vmem:[#allocation2 + $0x188] sm:$0xff] %vm313, %v628
    %693 = vst.msk [vmem:[#allocation2 + $0x190] sm:$0xff] %vm313, %v629
    %694 = vst.msk [vmem:[#allocation2 + $0x198] sm:$0xff] %vm313, %v630
    %695 = vst.msk [vmem:[#allocation2 + $0x1a0] sm:$0xff] %vm313, %v631
    %696 = vst.msk [vmem:[#allocation2 + $0x1a8] sm:$0xff] %vm313, %v632
    %697 = vst.msk [vmem:[#allocation2 + $0x1b0] sm:$0xff] %vm313, %v633
    %698 = vst.msk [vmem:[#allocation2 + $0x1b8] sm:$0xff] %vm313, %v634
    %699 = vst.msk [vmem:[#allocation2 + $0x1c0] sm:$0xff] %vm313, %v635
    %700 = vst.msk [vmem:[#allocation2 + $0x1c8] sm:$0xff] %vm313, %v636
    %701 = vst.msk [vmem:[#allocation2 + $0x1d0] sm:$0xff] %vm313, %v637
    %702 = vst.msk [vmem:[#allocation2 + $0x1d8] sm:$0xff] %vm313, %v638
    %703 = vst.msk [vmem:[#allocation2 + $0x1e0] sm:$0xff] %vm313, %v639
    %704 = vst.msk [vmem:[#allocation2 + $0x1e8] sm:$0xff] %vm313, %v640
    %705 = vst.msk [vmem:[#allocation2 + $0x1f0] sm:$0xff] %vm313, %v641
    %706 = vst.msk [vmem:[#allocation2 + $0x1f8] sm:$0xff] %vm313, %v642
    // Predicated region
    $region30: #{bottleneck_forward.5} parent=1 // pred_check
      %p707 = pneg %p52
    $region31: #{bottleneck_forward.5} parent=1 // pred_check_branch
      %709 = sbr.rel (%p707) target = $region33
    $region32: #{bottleneck_forward.5} parent=1 // pred_region
      %v710 = vld [vmem:[#allocation2] sm:$0xff]
      %v711 = vld [vmem:[#allocation2 + $0x8] sm:$0xff]
      %v712 = vld [vmem:[#allocation2 + $0x10] sm:$0xff]
      %v713 = vld [vmem:[#allocation2 + $0x18] sm:$0xff]
      %v714 = vld [vmem:[#allocation2 + $0x20] sm:$0xff]
      %v715 = vld [vmem:[#allocation2 + $0x28] sm:$0xff]
      %v716 = vld [vmem:[#allocation2 + $0x30] sm:$0xff]
      %v717 = vld [vmem:[#allocation2 + $0x38] sm:$0xff]
      %v718 = vld [vmem:[#allocation2 + $0x40] sm:$0xff]
      %v719 = vld [vmem:[#allocation2 + $0x48] sm:$0xff]
      %v720 = vld [vmem:[#allocation2 + $0x50] sm:$0xff]
      %v721 = vld [vmem:[#allocation2 + $0x58] sm:$0xff]
      %v722 = vld [vmem:[#allocation2 + $0x60] sm:$0xff]
      %v723 = vld [vmem:[#allocation2 + $0x68] sm:$0xff]
      %v724 = vld [vmem:[#allocation2 + $0x70] sm:$0xff]
      %v725 = vld [vmem:[#allocation2 + $0x78] sm:$0xff]
      %v726 = vld [vmem:[#allocation2 + $0x80] sm:$0xff]
      %v727 = vld [vmem:[#allocation2 + $0x88] sm:$0xff]
      %v728 = vld [vmem:[#allocation2 + $0x90] sm:$0xff]
      %v729 = vld [vmem:[#allocation2 + $0x98] sm:$0xff]
      %v730 = vld [vmem:[#allocation2 + $0xa0] sm:$0xff]
      %v731 = vld [vmem:[#allocation2 + $0xa8] sm:$0xff]
      %v732 = vld [vmem:[#allocation2 + $0xb0] sm:$0xff]
      %v733 = vld [vmem:[#allocation2 + $0xb8] sm:$0xff]
      %v734 = vld [vmem:[#allocation2 + $0xc0] sm:$0xff]
      %v735 = vld [vmem:[#allocation2 + $0xc8] sm:$0xff]
      %v736 = vld [vmem:[#allocation2 + $0xd0] sm:$0xff]
      %v737 = vld [vmem:[#allocation2 + $0xd8] sm:$0xff]
      %v738 = vld [vmem:[#allocation2 + $0xe0] sm:$0xff]
      %v739 = vld [vmem:[#allocation2 + $0xe8] sm:$0xff]
      %v740 = vld [vmem:[#allocation2 + $0xf0] sm:$0xff]
      %v741 = vld [vmem:[#allocation2 + $0xf8] sm:$0xff]
      %v742 = vld [vmem:[#allocation2 + $0x100] sm:$0xff]
      %v743 = vld [vmem:[#allocation2 + $0x108] sm:$0xff]
      %v744 = vld [vmem:[#allocation2 + $0x110] sm:$0xff]
      %v745 = vld [vmem:[#allocation2 + $0x118] sm:$0xff]
      %v746 = vld [vmem:[#allocation2 + $0x120] sm:$0xff]
      %v747 = vld [vmem:[#allocation2 + $0x128] sm:$0xff]
      %v748 = vld [vmem:[#allocation2 + $0x130] sm:$0xff]
      %v749 = vld [vmem:[#allocation2 + $0x138] sm:$0xff]
      %v750 = vld [vmem:[#allocation2 + $0x140] sm:$0xff]
      %v751 = vld [vmem:[#allocation2 + $0x148] sm:$0xff]
      %v752 = vld [vmem:[#allocation2 + $0x150] sm:$0xff]
      %v753 = vld [vmem:[#allocation2 + $0x158] sm:$0xff]
      %v754 = vld [vmem:[#allocation2 + $0x160] sm:$0xff]
      %v755 = vld [vmem:[#allocation2 + $0x168] sm:$0xff]
      %v756 = vld [vmem:[#allocation2 + $0x170] sm:$0xff]
      %v757 = vld [vmem:[#allocation2 + $0x178] sm:$0xff]
      %v758 = vld [vmem:[#allocation2 + $0x180] sm:$0xff]
      %v759 = vld [vmem:[#allocation2 + $0x188] sm:$0xff]
      %v760 = vld [vmem:[#allocation2 + $0x190] sm:$0xff]
      %v761 = vld [vmem:[#allocation2 + $0x198] sm:$0xff]
      %v762 = vld [vmem:[#allocation2 + $0x1a0] sm:$0xff]
      %v763 = vld [vmem:[#allocation2 + $0x1a8] sm:$0xff]
      %v764 = vld [vmem:[#allocation2 + $0x1b0] sm:$0xff]
      %v765 = vld [vmem:[#allocation2 + $0x1b8] sm:$0xff]
      %v766 = vld [vmem:[#allocation2 + $0x1c0] sm:$0xff]
      %v767 = vld [vmem:[#allocation2 + $0x1c8] sm:$0xff]
      %v768 = vld [vmem:[#allocation2 + $0x1d0] sm:$0xff]
      %v769 = vld [vmem:[#allocation2 + $0x1d8] sm:$0xff]
      %v770 = vld [vmem:[#allocation2 + $0x1e0] sm:$0xff]
      %v771 = vld [vmem:[#allocation2 + $0x1e8] sm:$0xff]
      %v772 = vld [vmem:[#allocation2 + $0x1f0] sm:$0xff]
      %v773 = vld [vmem:[#allocation2 + $0x1f8] sm:$0xff]
      %v774 = vpack.c.bf16 %v710, %v710
      %v775 = vpack.c.bf16 %v711, %v711
      %v776 = vpack.c.bf16 %v712, %v712
      %v777 = vpack.c.bf16 %v713, %v713
      %v778 = vpack.c.bf16 %v714, %v714
      %v779 = vpack.c.bf16 %v715, %v715
      %v780 = vpack.c.bf16 %v716, %v716
      %v781 = vpack.c.bf16 %v717, %v717
      %v782 = vpack.c.bf16 %v718, %v718
      %v783 = vpack.c.bf16 %v719, %v719
      %v784 = vpack.c.bf16 %v720, %v720
      %v785 = vpack.c.bf16 %v721, %v721
      %v786 = vpack.c.bf16 %v722, %v722
      %v787 = vpack.c.bf16 %v723, %v723
      %v788 = vpack.c.bf16 %v724, %v724
      %v789 = vpack.c.bf16 %v725, %v725
      %v790 = vpack.c.bf16 %v726, %v726
      %v791 = vpack.c.bf16 %v727, %v727
      %v792 = vpack.c.bf16 %v728, %v728
      %v793 = vpack.c.bf16 %v729, %v729
      %v794 = vpack.c.bf16 %v730, %v730
      %v795 = vpack.c.bf16 %v731, %v731
      %v796 = vpack.c.bf16 %v732, %v732
      %v797 = vpack.c.bf16 %v733, %v733
      %v798 = vpack.c.bf16 %v734, %v734
      %v799 = vpack.c.bf16 %v735, %v735
      %v800 = vpack.c.bf16 %v736, %v736
      %v801 = vpack.c.bf16 %v737, %v737
      %v802 = vpack.c.bf16 %v738, %v738
      %v803 = vpack.c.bf16 %v739, %v739
      %v804 = vpack.c.bf16 %v740, %v740
      %v805 = vpack.c.bf16 %v741, %v741
      %v806 = vpack.c.bf16 %v742, %v742
      %v807 = vpack.c.bf16 %v743, %v743
      %v808 = vpack.c.bf16 %v744, %v744
      %v809 = vpack.c.bf16 %v745, %v745
      %v810 = vpack.c.bf16 %v746, %v746
      %v811 = vpack.c.bf16 %v747, %v747
      %v812 = vpack.c.bf16 %v748, %v748
      %v813 = vpack.c.bf16 %v749, %v749
      %v814 = vpack.c.bf16 %v750, %v750
      %v815 = vpack.c.bf16 %v751, %v751
      %v816 = vpack.c.bf16 %v752, %v752
      %v817 = vpack.c.bf16 %v753, %v753
      %v818 = vpack.c.bf16 %v754, %v754
      %v819 = vpack.c.bf16 %v755, %v755
      %v820 = vpack.c.bf16 %v756, %v756
      %v821 = vpack.c.bf16 %v757, %v757
      %v822 = vpack.c.bf16 %v758, %v758
      %v823 = vpack.c.bf16 %v759, %v759
      %v824 = vpack.c.bf16 %v760, %v760
      %v825 = vpack.c.bf16 %v761, %v761
      %v826 = vpack.c.bf16 %v762, %v762
      %v827 = vpack.c.bf16 %v763, %v763
      %v828 = vpack.c.bf16 %v764, %v764
      %v829 = vpack.c.bf16 %v765, %v765
      %v830 = vpack.c.bf16 %v766, %v766
      %v831 = vpack.c.bf16 %v767, %v767
      %v832 = vpack.c.bf16 %v768, %v768
      %v833 = vpack.c.bf16 %v769, %v769
      %v834 = vpack.c.bf16 %v770, %v770
      %v835 = vpack.c.bf16 %v771, %v771
      %v836 = vpack.c.bf16 %v772, %v772
      %v837 = vpack.c.bf16 %v773, %v773
      %vm838 = vcmask 519168
      %839 = vst.msk [vmem:[%s4] sm:$0xf] %vm838, %v774
      %840 = vst.msk [vmem:[%s4 + $0x4] sm:$0xf] %vm838, %v775
      %841 = vst.msk [vmem:[%s4 + $0x8] sm:$0xf] %vm838, %v776
      %842 = vst.msk [vmem:[%s4 + $0xc] sm:$0xf] %vm838, %v777
      %843 = vst.msk [vmem:[%s4 + $0x10] sm:$0xf] %vm838, %v778
      %844 = vst.msk [vmem:[%s4 + $0x14] sm:$0xf] %vm838, %v779
      %845 = vst.msk [vmem:[%s4 + $0x18] sm:$0xf] %vm838, %v780
      %846 = vst.msk [vmem:[%s4 + $0x1c] sm:$0xf] %vm838, %v781
      %847 = vst.msk [vmem:[%s4 + $0x20] sm:$0xf] %vm838, %v782
      %848 = vst.msk [vmem:[%s4 + $0x24] sm:$0xf] %vm838, %v783
      %849 = vst.msk [vmem:[%s4 + $0x28] sm:$0xf] %vm838, %v784
      %850 = vst.msk [vmem:[%s4 + $0x2c] sm:$0xf] %vm838, %v785
      %851 = vst.msk [vmem:[%s4 + $0x30] sm:$0xf] %vm838, %v786
      %852 = vst.msk [vmem:[%s4 + $0x34] sm:$0xf] %vm838, %v787
      %853 = vst.msk [vmem:[%s4 + $0x38] sm:$0xf] %vm838, %v788
      %854 = vst.msk [vmem:[%s4 + $0x3c] sm:$0xf] %vm838, %v789
      %855 = vst.msk [vmem:[%s4 + $0x40] sm:$0xf] %vm838, %v790
      %856 = vst.msk [vmem:[%s4 + $0x44] sm:$0xf] %vm838, %v791
      %857 = vst.msk [vmem:[%s4 + $0x48] sm:$0xf] %vm838, %v792
      %858 = vst.msk [vmem:[%s4 + $0x4c] sm:$0xf] %vm838, %v793
      %859 = vst.msk [vmem:[%s4 + $0x50] sm:$0xf] %vm838, %v794
      %860 = vst.msk [vmem:[%s4 + $0x54] sm:$0xf] %vm838, %v795
      %861 = vst.msk [vmem:[%s4 + $0x58] sm:$0xf] %vm838, %v796
      %862 = vst.msk [vmem:[%s4 + $0x5c] sm:$0xf] %vm838, %v797
      %863 = vst.msk [vmem:[%s4 + $0x60] sm:$0xf] %vm838, %v798
      %864 = vst.msk [vmem:[%s4 + $0x64] sm:$0xf] %vm838, %v799
      %865 = vst.msk [vmem:[%s4 + $0x68] sm:$0xf] %vm838, %v800
      %866 = vst.msk [vmem:[%s4 + $0x6c] sm:$0xf] %vm838, %v801
      %867 = vst.msk [vmem:[%s4 + $0x70] sm:$0xf] %vm838, %v802
      %868 = vst.msk [vmem:[%s4 + $0x74] sm:$0xf] %vm838, %v803
      %869 = vst.msk [vmem:[%s4 + $0x78] sm:$0xf] %vm838, %v804
      %870 = vst.msk [vmem:[%s4 + $0x7c] sm:$0xf] %vm838, %v805
      %871 = vst.msk [vmem:[%s4 + $0x80] sm:$0xf] %vm838, %v806
      %872 = vst.msk [vmem:[%s4 + $0x84] sm:$0xf] %vm838, %v807
      %873 = vst.msk [vmem:[%s4 + $0x88] sm:$0xf] %vm838, %v808
      %874 = vst.msk [vmem:[%s4 + $0x8c] sm:$0xf] %vm838, %v809
      %875 = vst.msk [vmem:[%s4 + $0x90] sm:$0xf] %vm838, %v810
      %876 = vst.msk [vmem:[%s4 + $0x94] sm:$0xf] %vm838, %v811
      %877 = vst.msk [vmem:[%s4 + $0x98] sm:$0xf] %vm838, %v812
      %878 = vst.msk [vmem:[%s4 + $0x9c] sm:$0xf] %vm838, %v813
      %879 = vst.msk [vmem:[%s4 + $0xa0] sm:$0xf] %vm838, %v814
      %880 = vst.msk [vmem:[%s4 + $0xa4] sm:$0xf] %vm838, %v815
      %881 = vst.msk [vmem:[%s4 + $0xa8] sm:$0xf] %vm838, %v816
      %882 = vst.msk [vmem:[%s4 + $0xac] sm:$0xf] %vm838, %v817
      %883 = vst.msk [vmem:[%s4 + $0xb0] sm:$0xf] %vm838, %v818
      %884 = vst.msk [vmem:[%s4 + $0xb4] sm:$0xf] %vm838, %v819
      %885 = vst.msk [vmem:[%s4 + $0xb8] sm:$0xf] %vm838, %v820
      %886 = vst.msk [vmem:[%s4 + $0xbc] sm:$0xf] %vm838, %v821
      %887 = vst.msk [vmem:[%s4 + $0xc0] sm:$0xf] %vm838, %v822
      %888 = vst.msk [vmem:[%s4 + $0xc4] sm:$0xf] %vm838, %v823
      %889 = vst.msk [vmem:[%s4 + $0xc8] sm:$0xf] %vm838, %v824
      %890 = vst.msk [vmem:[%s4 + $0xcc] sm:$0xf] %vm838, %v825
      %891 = vst.msk [vmem:[%s4 + $0xd0] sm:$0xf] %vm838, %v826
      %892 = vst.msk [vmem:[%s4 + $0xd4] sm:$0xf] %vm838, %v827
      %893 = vst.msk [vmem:[%s4 + $0xd8] sm:$0xf] %vm838, %v828
      %894 = vst.msk [vmem:[%s4 + $0xdc] sm:$0xf] %vm838, %v829
      %895 = vst.msk [vmem:[%s4 + $0xe0] sm:$0xf] %vm838, %v830
      %896 = vst.msk [vmem:[%s4 + $0xe4] sm:$0xf] %vm838, %v831
      %897 = vst.msk [vmem:[%s4 + $0xe8] sm:$0xf] %vm838, %v832
      %898 = vst.msk [vmem:[%s4 + $0xec] sm:$0xf] %vm838, %v833
      %899 = vst.msk [vmem:[%s4 + $0xf0] sm:$0xf] %vm838, %v834
      %900 = vst.msk [vmem:[%s4 + $0xf4] sm:$0xf] %vm838, %v835
      %901 = vst.msk [vmem:[%s4 + $0xf8] sm:$0xf] %vm838, %v836
      %902 = vst.msk [vmem:[%s4 + $0xfc] sm:$0xf] %vm838, %v837
      %v903 = vsel %vm313, %v710, 0.0
      %v904 = vsel %vm313, %v711, 0.0
      %v905 = vadd.f32 %v903, %v904
      %v906 = vsel %vm313, %v712, 0.0
      %v907 = vadd.f32 %v905, %v906
      %v908 = vsel %vm313, %v713, 0.0
      %v909 = vadd.f32 %v907, %v908
      %v910 = vsel %vm313, %v714, 0.0
      %v911 = vadd.f32 %v909, %v910
      %v912 = vsel %vm313, %v715, 0.0
      %v913 = vadd.f32 %v911, %v912
      %v914 = vsel %vm313, %v716, 0.0
      %v915 = vadd.f32 %v913, %v914
      %v916 = vsel %vm313, %v717, 0.0
      %v917 = vadd.f32 %v915, %v916
      %v918 = vsel %vm313, %v718, 0.0
      %v919 = vadd.f32 %v917, %v918
      %v920 = vsel %vm313, %v719, 0.0
      %v921 = vadd.f32 %v919, %v920
      %v922 = vsel %vm313, %v720, 0.0
      %v923 = vadd.f32 %v921, %v922
      %v924 = vsel %vm313, %v721, 0.0
      %v925 = vadd.f32 %v923, %v924
      %v926 = vsel %vm313, %v722, 0.0
      %v927 = vadd.f32 %v925, %v926
      %v928 = vsel %vm313, %v723, 0.0
      %v929 = vadd.f32 %v927, %v928
      %v930 = vsel %vm313, %v724, 0.0
      %v931 = vadd.f32 %v929, %v930
      %v932 = vsel %vm313, %v725, 0.0
      %v933 = vadd.f32 %v931, %v932
      %v934 = vsel %vm313, %v726, 0.0
      %v935 = vadd.f32 %v933, %v934
      %v936 = vsel %vm313, %v727, 0.0
      %v937 = vadd.f32 %v935, %v936
      %v938 = vsel %vm313, %v728, 0.0
      %v939 = vadd.f32 %v937, %v938
      %v940 = vsel %vm313, %v729, 0.0
      %v941 = vadd.f32 %v939, %v940
      %v942 = vsel %vm313, %v730, 0.0
      %v943 = vadd.f32 %v941, %v942
      %v944 = vsel %vm313, %v731, 0.0
      %v945 = vadd.f32 %v943, %v944
      %v946 = vsel %vm313, %v732, 0.0
      %v947 = vadd.f32 %v945, %v946
      %v948 = vsel %vm313, %v733, 0.0
      %v949 = vadd.f32 %v947, %v948
      %v950 = vsel %vm313, %v734, 0.0
      %v951 = vadd.f32 %v949, %v950
      %v952 = vsel %vm313, %v735, 0.0
      %v953 = vadd.f32 %v951, %v952
      %v954 = vsel %vm313, %v736, 0.0
      %v955 = vadd.f32 %v953, %v954
      %v956 = vsel %vm313, %v737, 0.0
      %v957 = vadd.f32 %v955, %v956
      %v958 = vsel %vm313, %v738, 0.0
      %v959 = vadd.f32 %v957, %v958
      %v960 = vsel %vm313, %v739, 0.0
      %v961 = vadd.f32 %v959, %v960
      %v962 = vsel %vm313, %v740, 0.0
      %v963 = vadd.f32 %v961, %v962
      %v964 = vsel %vm313, %v741, 0.0
      %v965 = vadd.f32 %v963, %v964
      %v966 = vsel %vm313, %v742, 0.0
      %v967 = vadd.f32 %v965, %v966
      %v968 = vsel %vm313, %v743, 0.0
      %v969 = vadd.f32 %v967, %v968
      %v970 = vsel %vm313, %v744, 0.0
      %v971 = vadd.f32 %v969, %v970
      %v972 = vsel %vm313, %v745, 0.0
      %v973 = vadd.f32 %v971, %v972
      %v974 = vsel %vm313, %v746, 0.0
      %v975 = vadd.f32 %v973, %v974
      %v976 = vsel %vm313, %v747, 0.0
      %v977 = vadd.f32 %v975, %v976
      %v978 = vsel %vm313, %v748, 0.0
      %v979 = vadd.f32 %v977, %v978
      %v980 = vsel %vm313, %v749, 0.0
      %v981 = vadd.f32 %v979, %v980
      %v982 = vsel %vm313, %v750, 0.0
      %v983 = vadd.f32 %v981, %v982
      %v984 = vsel %vm313, %v751, 0.0
      %v985 = vadd.f32 %v983, %v984
      %v986 = vsel %vm313, %v752, 0.0
      %v987 = vadd.f32 %v985, %v986
      %v988 = vsel %vm313, %v753, 0.0
      %v989 = vadd.f32 %v987, %v988
      %v990 = vsel %vm313, %v754, 0.0
      %v991 = vadd.f32 %v989, %v990
      %v992 = vsel %vm313, %v755, 0.0
      %v993 = vadd.f32 %v991, %v992
      %v994 = vsel %vm313, %v756, 0.0
      %v995 = vadd.f32 %v993, %v994
      %v996 = vsel %vm313, %v757, 0.0
      %v997 = vadd.f32 %v995, %v996
      %v998 = vsel %vm313, %v758, 0.0
      %v999 = vadd.f32 %v997, %v998
      %v1000 = vsel %vm313, %v759, 0.0
      %v1001 = vadd.f32 %v999, %v1000
      %v1002 = vsel %vm313, %v760, 0.0
      %v1003 = vadd.f32 %v1001, %v1002
      %v1004 = vsel %vm313, %v761, 0.0
      %v1005 = vadd.f32 %v1003, %v1004
      %v1006 = vsel %vm313, %v762, 0.0
      %v1007 = vadd.f32 %v1005, %v1006
      %v1008 = vsel %vm313, %v763, 0.0
      %v1009 = vadd.f32 %v1007, %v1008
      %v1010 = vsel %vm313, %v764, 0.0
      %v1011 = vadd.f32 %v1009, %v1010
      %v1012 = vsel %vm313, %v765, 0.0
      %v1013 = vadd.f32 %v1011, %v1012
      %v1014 = vsel %vm313, %v766, 0.0
      %v1015 = vadd.f32 %v1013, %v1014
      %v1016 = vsel %vm313, %v767, 0.0
      %v1017 = vadd.f32 %v1015, %v1016
      %v1018 = vsel %vm313, %v768, 0.0
      %v1019 = vadd.f32 %v1017, %v1018
      %v1020 = vsel %vm313, %v769, 0.0
      %v1021 = vadd.f32 %v1019, %v1020
      %v1022 = vsel %vm313, %v770, 0.0
      %v1023 = vadd.f32 %v1021, %v1022
      %v1024 = vsel %vm313, %v771, 0.0
      %v1025 = vadd.f32 %v1023, %v1024
      %v1026 = vsel %vm313, %v772, 0.0
      %v1027 = vadd.f32 %v1025, %v1026
      %v1028 = vsel %vm313, %v773, 0.0
      %v1029 = vadd.f32 %v1027, %v1028
      %v1030 = vrot.slane %v1029, 4
      %v1031 = vadd.f32 %v1029, %v1030
      %v1032 = vrot.slane %v1031, 2
      %v1033 = vadd.f32 %v1031, %v1032
      %v1034 = vrot.slane %v1033, 1
      %v1035 = vadd.f32 %v1033, %v1034
      %v1036 = vmul.f32 %v710, %v710
      %v1037 = vmul.f32 %v711, %v711
      %v1038 = vmul.f32 %v712, %v712
      %v1039 = vmul.f32 %v713, %v713
      %v1040 = vmul.f32 %v714, %v714
      %v1041 = vmul.f32 %v715, %v715
      %v1042 = vmul.f32 %v716, %v716
      %v1043 = vmul.f32 %v717, %v717
      %v1044 = vmul.f32 %v718, %v718
      %v1045 = vmul.f32 %v719, %v719
      %v1046 = vmul.f32 %v720, %v720
      %v1047 = vmul.f32 %v721, %v721
      %v1048 = vmul.f32 %v722, %v722
      %v1049 = vmul.f32 %v723, %v723
      %v1050 = vmul.f32 %v724, %v724
      %v1051 = vmul.f32 %v725, %v725
      %v1052 = vmul.f32 %v726, %v726
      %v1053 = vmul.f32 %v727, %v727
      %v1054 = vmul.f32 %v728, %v728
      %v1055 = vmul.f32 %v729, %v729
      %v1056 = vmul.f32 %v730, %v730
      %v1057 = vmul.f32 %v731, %v731
      %v1058 = vmul.f32 %v732, %v732
      %v1059 = vmul.f32 %v733, %v733
      %v1060 = vmul.f32 %v734, %v734
      %v1061 = vmul.f32 %v735, %v735
      %v1062 = vmul.f32 %v736, %v736
      %v1063 = vmul.f32 %v737, %v737
      %v1064 = vmul.f32 %v738, %v738
      %v1065 = vmul.f32 %v739, %v739
      %v1066 = vmul.f32 %v740, %v740
      %v1067 = vmul.f32 %v741, %v741
      %v1068 = vmul.f32 %v742, %v742
      %v1069 = vmul.f32 %v743, %v743
      %v1070 = vmul.f32 %v744, %v744
      %v1071 = vmul.f32 %v745, %v745
      %v1072 = vmul.f32 %v746, %v746
      %v1073 = vmul.f32 %v747, %v747
      %v1074 = vmul.f32 %v748, %v748
      %v1075 = vmul.f32 %v749, %v749
      %v1076 = vmul.f32 %v750, %v750
      %v1077 = vmul.f32 %v751, %v751
      %v1078 = vmul.f32 %v752, %v752
      %v1079 = vmul.f32 %v753, %v753
      %v1080 = vmul.f32 %v754, %v754
      %v1081 = vmul.f32 %v755, %v755
      %v1082 = vmul.f32 %v756, %v756
      %v1083 = vmul.f32 %v757, %v757
      %v1084 = vmul.f32 %v758, %v758
      %v1085 = vmul.f32 %v759, %v759
      %v1086 = vmul.f32 %v760, %v760
      %v1087 = vmul.f32 %v761, %v761
      %v1088 = vmul.f32 %v762, %v762
      %v1089 = vmul.f32 %v763, %v763
      %v1090 = vmul.f32 %v764, %v764
      %v1091 = vmul.f32 %v765, %v765
      %v1092 = vmul.f32 %v766, %v766
      %v1093 = vmul.f32 %v767, %v767
      %v1094 = vmul.f32 %v768, %v768
      %v1095 = vmul.f32 %v769, %v769
      %v1096 = vmul.f32 %v770, %v770
      %v1097 = vmul.f32 %v771, %v771
      %v1098 = vmul.f32 %v772, %v772
      %v1099 = vmul.f32 %v773, %v773
      %v1100 = vsel %vm313, %v1036, 0.0
      %v1101 = vsel %vm313, %v1037, 0.0
      %v1102 = vadd.f32 %v1100, %v1101
      %v1103 = vsel %vm313, %v1038, 0.0
      %v1104 = vadd.f32 %v1102, %v1103
      %v1105 = vsel %vm313, %v1039, 0.0
      %v1106 = vadd.f32 %v1104, %v1105
      %v1107 = vsel %vm313, %v1040, 0.0
      %v1108 = vadd.f32 %v1106, %v1107
      %v1109 = vsel %vm313, %v1041, 0.0
      %v1110 = vadd.f32 %v1108, %v1109
      %v1111 = vsel %vm313, %v1042, 0.0
      %v1112 = vadd.f32 %v1110, %v1111
      %v1113 = vsel %vm313, %v1043, 0.0
      %v1114 = vadd.f32 %v1112, %v1113
      %v1115 = vsel %vm313, %v1044, 0.0
      %v1116 = vadd.f32 %v1114, %v1115
      %v1117 = vsel %vm313, %v1045, 0.0
      %v1118 = vadd.f32 %v1116, %v1117
      %v1119 = vsel %vm313, %v1046, 0.0
      %v1120 = vadd.f32 %v1118, %v1119
      %v1121 = vsel %vm313, %v1047, 0.0
      %v1122 = vadd.f32 %v1120, %v1121
      %v1123 = vsel %vm313, %v1048, 0.0
      %v1124 = vadd.f32 %v1122, %v1123
      %v1125 = vsel %vm313, %v1049, 0.0
      %v1126 = vadd.f32 %v1124, %v1125
      %v1127 = vsel %vm313, %v1050, 0.0
      %v1128 = vadd.f32 %v1126, %v1127
      %v1129 = vsel %vm313, %v1051, 0.0
      %v1130 = vadd.f32 %v1128, %v1129
      %v1131 = vsel %vm313, %v1052, 0.0
      %v1132 = vadd.f32 %v1130, %v1131
      %v1133 = vsel %vm313, %v1053, 0.0
      %v1134 = vadd.f32 %v1132, %v1133
      %v1135 = vsel %vm313, %v1054, 0.0
      %v1136 = vadd.f32 %v1134, %v1135
      %v1137 = vsel %vm313, %v1055, 0.0
      %v1138 = vadd.f32 %v1136, %v1137
      %v1139 = vsel %vm313, %v1056, 0.0
      %v1140 = vadd.f32 %v1138, %v1139
      %v1141 = vsel %vm313, %v1057, 0.0
      %v1142 = vadd.f32 %v1140, %v1141
      %v1143 = vsel %vm313, %v1058, 0.0
      %v1144 = vadd.f32 %v1142, %v1143
      %v1145 = vsel %vm313, %v1059, 0.0
      %v1146 = vadd.f32 %v1144, %v1145
      %v1147 = vsel %vm313, %v1060, 0.0
      %v1148 = vadd.f32 %v1146, %v1147
      %v1149 = vsel %vm313, %v1061, 0.0
      %v1150 = vadd.f32 %v1148, %v1149
      %v1151 = vsel %vm313, %v1062, 0.0
      %v1152 = vadd.f32 %v1150, %v1151
      %v1153 = vsel %vm313, %v1063, 0.0
      %v1154 = vadd.f32 %v1152, %v1153
      %v1155 = vsel %vm313, %v1064, 0.0
      %v1156 = vadd.f32 %v1154, %v1155
      %v1157 = vsel %vm313, %v1065, 0.0
      %v1158 = vadd.f32 %v1156, %v1157
      %v1159 = vsel %vm313, %v1066, 0.0
      %v1160 = vadd.f32 %v1158, %v1159
      %v1161 = vsel %vm313, %v1067, 0.0
      %v1162 = vadd.f32 %v1160, %v1161
      %v1163 = vsel %vm313, %v1068, 0.0
      %v1164 = vadd.f32 %v1162, %v1163
      %v1165 = vsel %vm313, %v1069, 0.0
      %v1166 = vadd.f32 %v1164, %v1165
      %v1167 = vsel %vm313, %v1070, 0.0
      %v1168 = vadd.f32 %v1166, %v1167
      %v1169 = vsel %vm313, %v1071, 0.0
      %v1170 = vadd.f32 %v1168, %v1169
      %v1171 = vsel %vm313, %v1072, 0.0
      %v1172 = vadd.f32 %v1170, %v1171
      %v1173 = vsel %vm313, %v1073, 0.0
      %v1174 = vadd.f32 %v1172, %v1173
      %v1175 = vsel %vm313, %v1074, 0.0
      %v1176 = vadd.f32 %v1174, %v1175
      %v1177 = vsel %vm313, %v1075, 0.0
      %v1178 = vadd.f32 %v1176, %v1177
      %v1179 = vsel %vm313, %v1076, 0.0
      %v1180 = vadd.f32 %v1178, %v1179
      %v1181 = vsel %vm313, %v1077, 0.0
      %v1182 = vadd.f32 %v1180, %v1181
      %v1183 = vsel %vm313, %v1078, 0.0
      %v1184 = vadd.f32 %v1182, %v1183
      %v1185 = vsel %vm313, %v1079, 0.0
      %v1186 = vadd.f32 %v1184, %v1185
      %v1187 = vsel %vm313, %v1080, 0.0
      %v1188 = vadd.f32 %v1186, %v1187
      %v1189 = vsel %vm313, %v1081, 0.0
      %v1190 = vadd.f32 %v1188, %v1189
      %v1191 = vsel %vm313, %v1082, 0.0
      %v1192 = vadd.f32 %v1190, %v1191
      %v1193 = vsel %vm313, %v1083, 0.0
      %v1194 = vadd.f32 %v1192, %v1193
      %v1195 = vsel %vm313, %v1084, 0.0
      %v1196 = vadd.f32 %v1194, %v1195
      %v1197 = vsel %vm313, %v1085, 0.0
      %v1198 = vadd.f32 %v1196, %v1197
      %v1199 = vsel %vm313, %v1086, 0.0
      %v1200 = vadd.f32 %v1198, %v1199
      %v1201 = vsel %vm313, %v1087, 0.0
      %v1202 = vadd.f32 %v1200, %v1201
      %v1203 = vsel %vm313, %v1088, 0.0
      %v1204 = vadd.f32 %v1202, %v1203
      %v1205 = vsel %vm313, %v1089, 0.0
      %v1206 = vadd.f32 %v1204, %v1205
      %v1207 = vsel %vm313, %v1090, 0.0
      %v1208 = vadd.f32 %v1206, %v1207
      %v1209 = vsel %vm313, %v1091, 0.0
      %v1210 = vadd.f32 %v1208, %v1209
      %v1211 = vsel %vm313, %v1092, 0.0
      %v1212 = vadd.f32 %v1210, %v1211
      %v1213 = vsel %vm313, %v1093, 0.0
      %v1214 = vadd.f32 %v1212, %v1213
      %v1215 = vsel %vm313, %v1094, 0.0
      %v1216 = vadd.f32 %v1214, %v1215
      %v1217 = vsel %vm313, %v1095, 0.0
      %v1218 = vadd.f32 %v1216, %v1217
      %v1219 = vsel %vm313, %v1096, 0.0
      %v1220 = vadd.f32 %v1218, %v1219
      %v1221 = vsel %vm313, %v1097, 0.0
      %v1222 = vadd.f32 %v1220, %v1221
      %v1223 = vsel %vm313, %v1098, 0.0
      %v1224 = vadd.f32 %v1222, %v1223
      %v1225 = vsel %vm313, %v1099, 0.0
      %v1226 = vadd.f32 %v1224, %v1225
      %v1227 = vrot.slane %v1226, 4
      %v1228 = vadd.f32 %v1226, %v1227
      %v1229 = vrot.slane %v1228, 2
      %v1230 = vadd.f32 %v1228, %v1229
      %v1231 = vrot.slane %v1230, 1
      %v1232 = vadd.f32 %v1230, %v1231
      %vm1233 = vcmask 1040384
      %v1234 = vsel %vm1233, %v1035, %v1232
      %vm1235 = vcmask 517120
      %1236 = vst.msk [vmem:[%s5] sm:$0x3] %vm1235, %v1234
    $region33: #{bottleneck_forward.5} parent=1 // pred_fallthru
      _
    // Predicated region
    $region34: #{bottleneck_forward.5} parent=1 // pred_check
      _
    $region35: #{bottleneck_forward.5} parent=1 // pred_check_branch
      %1238 = sbr.rel (0) target = $region37
    $region36: #{bottleneck_forward.5} parent=1 // pred_region
      _
    $region37: #{bottleneck_forward.5} parent=1 // pred_fallthru
      _
    // Predicated region
    $region38: #{bottleneck_forward.5} parent=1 // pred_check
      _
    $region39: #{bottleneck_forward.5} parent=1 // pred_check_branch
      %1240 = sbr.rel (0) target = $region41
    $region40: #{bottleneck_forward.5} parent=1 // pred_region
      _
    $region41: #{bottleneck_forward.5} parent=1 // pred_fallthru
      _
    // Predicated region
    $region42: #{bottleneck_forward.5} parent=1 // pred_check
      _
    $region43: #{bottleneck_forward.5} parent=1 // pred_check_branch
      %1242 = sbr.rel (0) target = $region45
    $region44: #{bottleneck_forward.5} parent=1 // pred_region
      _
    $region45: #{bottleneck_forward.5} parent=1 // pred_fallthru
      _
    // Predicated region
    $region46: #{bottleneck_forward.5} parent=1 // pred_check
      _
    $region47: #{bottleneck_forward.5} parent=1 // pred_check_branch
      %1244 = sbr.rel (0) target = $region49
    $region48: #{bottleneck_forward.5} parent=1 // pred_region
      _
    $region49: #{bottleneck_forward.5} parent=1 // pred_fallthru
      _
    %1245 = vsyncpa [#allocation4], 1
    %1246 = vsyncpa [#allocation6], 1

// kernel: bottleneck_forward.7
$region0: #{bottleneck_forward.7}
  #allocation0 [shape = 'u32[]', space=smem, size = 0x4, offset = 0x4, fixed_abs, tag = 'smem constant byte address 0x4 - core index']
  #allocation1 [shape = 'u32[72,128]{1,0:T(1,128)}', space=vmem, size = 0x9000, scoped, tag = 'internal scratch']
  #allocation2 [shape = 'f32[128,256]{1,0:T(8,128)}', space=vmem, size = 0x20000, scoped, tag = 'scratch operand']
  %s0 = inlined_call_operand.vmem [shape: bf16[128,64], index: 0, kind: input, shape index: {}]
  %s1 = inlined_call_operand.vmem [shape: bf16[64,256], index: 1, kind: input, shape index: {}]
  %s2 = inlined_call_operand.vmem [shape: f32[1,64], index: 2, kind: input, shape index: {}]
  %s3 = inlined_call_operand.vmem [shape: f32[1,64], index: 3, kind: input, shape index: {}]
  %s4 = inlined_call_operand.vmem [shape: bf16[128,256], index: 4, kind: output, shape index: {0}]
  %s5 = inlined_call_operand.vmem [shape: f32[1,2,256], index: 5, kind: output, shape index: {1}]
  %6 = xla_tuple %s4, %s5
  %s7 = sld [smem:[#allocation0]]
  $region42: #{bottleneck_forward.7} parent=0
    _
  %s9 = ssub.s32 1, %s7
  %s10 = scalar_select 0, %s9, %s7
  // Predicated region
  $region2: #{bottleneck_forward.7} parent=0 // pred_check
    _
  $region3: #{bottleneck_forward.7} parent=0 // pred_check_branch
    %12 = sbr.rel (0) target = $region5
  $region4: #{bottleneck_forward.7} parent=0 // pred_region
    _
  $region5: #{bottleneck_forward.7} parent=0 // pred_fallthru
    _
  // Predicated region
  $region6: #{bottleneck_forward.7} parent=0 // pred_check
    _
  $region7: #{bottleneck_forward.7} parent=0 // pred_check_branch
    %14 = sbr.rel (0) target = $region9
  $region8: #{bottleneck_forward.7} parent=0 // pred_region
    _
  $region9: #{bottleneck_forward.7} parent=0 // pred_fallthru
    _
  // Predicated region
  $region10: #{bottleneck_forward.7} parent=0 // pred_check
    _
  $region11: #{bottleneck_forward.7} parent=0 // pred_check_branch
    %16 = sbr.rel (0) target = $region13
  $region12: #{bottleneck_forward.7} parent=0 // pred_region
    _
  $region13: #{bottleneck_forward.7} parent=0 // pred_fallthru
    _
  // Predicated region
  $region14: #{bottleneck_forward.7} parent=0 // pred_check
    _
  $region15: #{bottleneck_forward.7} parent=0 // pred_check_branch
    %18 = sbr.rel (0) target = $region17
  $region16: #{bottleneck_forward.7} parent=0 // pred_region
    _
  $region17: #{bottleneck_forward.7} parent=0 // pred_fallthru
    _
  %p20 = scmp.eq.s32.totalorder 0, 0
  // Predicated region
  $region18: #{bottleneck_forward.7} parent=0 // pred_check
    %p21 = pneg %p20
  $region19: #{bottleneck_forward.7} parent=0 // pred_check_branch
    %23 = sbr.rel (%p21) target = $region21
  $region20: #{bottleneck_forward.7} parent=0 // pred_region
    %24 = vst [vmem:[#allocation2] sm:$0xff] 0.0
    %25 = vst [vmem:[#allocation2 + $0x8] sm:$0xff] 0.0
    %26 = vst [vmem:[#allocation2 + $0x10] sm:$0xff] 0.0
    %27 = vst [vmem:[#allocation2 + $0x18] sm:$0xff] 0.0
    %28 = vst [vmem:[#allocation2 + $0x20] sm:$0xff] 0.0
    %29 = vst [vmem:[#allocation2 + $0x28] sm:$0xff] 0.0
    %30 = vst [vmem:[#allocation2 + $0x30] sm:$0xff] 0.0
    %31 = vst [vmem:[#allocation2 + $0x38] sm:$0xff] 0.0
    %32 = vst [vmem:[#allocation2 + $0x40] sm:$0xff] 0.0
    %33 = vst [vmem:[#allocation2 + $0x48] sm:$0xff] 0.0
    %34 = vst [vmem:[#allocation2 + $0x50] sm:$0xff] 0.0
    %35 = vst [vmem:[#allocation2 + $0x58] sm:$0xff] 0.0
    %36 = vst [vmem:[#allocation2 + $0x60] sm:$0xff] 0.0
    %37 = vst [vmem:[#allocation2 + $0x68] sm:$0xff] 0.0
    %38 = vst [vmem:[#allocation2 + $0x70] sm:$0xff] 0.0
    %39 = vst [vmem:[#allocation2 + $0x78] sm:$0xff] 0.0
    %40 = vst [vmem:[#allocation2 + $0x80] sm:$0xff] 0.0
    %41 = vst [vmem:[#allocation2 + $0x88] sm:$0xff] 0.0
    %42 = vst [vmem:[#allocation2 + $0x90] sm:$0xff] 0.0
    %43 = vst [vmem:[#allocation2 + $0x98] sm:$0xff] 0.0
    %44 = vst [vmem:[#allocation2 + $0xa0] sm:$0xff] 0.0
    %45 = vst [vmem:[#allocation2 + $0xa8] sm:$0xff] 0.0
    %46 = vst [vmem:[#allocation2 + $0xb0] sm:$0xff] 0.0
    %47 = vst [vmem:[#allocation2 + $0xb8] sm:$0xff] 0.0
    %48 = vst [vmem:[#allocation2 + $0xc0] sm:$0xff] 0.0
    %49 = vst [vmem:[#allocation2 + $0xc8] sm:$0xff] 0.0
    %50 = vst [vmem:[#allocation2 + $0xd0] sm:$0xff] 0.0
    %51 = vst [vmem:[#allocation2 + $0xd8] sm:$0xff] 0.0
    %52 = vst [vmem:[#allocation2 + $0xe0] sm:$0xff] 0.0
    %53 = vst [vmem:[#allocation2 + $0xe8] sm:$0xff] 0.0
    %54 = vst [vmem:[#allocation2 + $0xf0] sm:$0xff] 0.0
    %55 = vst [vmem:[#allocation2 + $0xf8] sm:$0xff] 0.0
  $region21: #{bottleneck_forward.7} parent=0 // pred_fallthru
    _
  %v56 = vld [vmem:[%s0] sm:$0xf]
  %v57 = vld [vmem:[%s0 + $0x4] sm:$0xf]
  %v58 = vld [vmem:[%s0 + $0x8] sm:$0xf]
  %v59 = vld [vmem:[%s0 + $0xc] sm:$0xf]
  %v60 = vld [vmem:[%s0 + $0x10] sm:$0xf]
  %v61 = vld [vmem:[%s0 + $0x14] sm:$0xf]
  %v62 = vld [vmem:[%s0 + $0x18] sm:$0xf]
  %v63 = vld [vmem:[%s0 + $0x1c] sm:$0xf]
  %v64 = vld [vmem:[%s0 + $0x20] sm:$0xf]
  %v65 = vld [vmem:[%s0 + $0x24] sm:$0xf]
  %v66 = vld [vmem:[%s0 + $0x28] sm:$0xf]
  %v67 = vld [vmem:[%s0 + $0x2c] sm:$0xf]
  %v68 = vld [vmem:[%s0 + $0x30] sm:$0xf]
  %v69 = vld [vmem:[%s0 + $0x34] sm:$0xf]
  %v70 = vld [vmem:[%s0 + $0x38] sm:$0xf]
  %v71 = vld [vmem:[%s0 + $0x3c] sm:$0xf]
  %v72 = vunpack.c.l.bf16 %v56
  %v73 = vunpack.c.l.bf16 %v57
  %v74 = vunpack.c.l.bf16 %v58
  %v75 = vunpack.c.l.bf16 %v59
  %v76 = vunpack.c.l.bf16 %v60
  %v77 = vunpack.c.l.bf16 %v61
  %v78 = vunpack.c.l.bf16 %v62
  %v79 = vunpack.c.l.bf16 %v63
  %v80 = vunpack.c.l.bf16 %v64
  %v81 = vunpack.c.l.bf16 %v65
  %v82 = vunpack.c.l.bf16 %v66
  %v83 = vunpack.c.l.bf16 %v67
  %v84 = vunpack.c.l.bf16 %v68
  %v85 = vunpack.c.l.bf16 %v69
  %v86 = vunpack.c.l.bf16 %v70
  %v87 = vunpack.c.l.bf16 %v71
  %v88 = vld [vmem:[%s2] sm:$0x1]
  %v90 = vperm.slane %v88, 0
  %v92 = vmul.f32 %v72, %v90
  %v93 = vmul.f32 %v73, %v90
  %v94 = vmul.f32 %v74, %v90
  %v95 = vmul.f32 %v75, %v90
  %v96 = vmul.f32 %v76, %v90
  %v97 = vmul.f32 %v77, %v90
  %v98 = vmul.f32 %v78, %v90
  %v99 = vmul.f32 %v79, %v90
  %v100 = vmul.f32 %v80, %v90
  %v101 = vmul.f32 %v81, %v90
  %v102 = vmul.f32 %v82, %v90
  %v103 = vmul.f32 %v83, %v90
  %v104 = vmul.f32 %v84, %v90
  %v105 = vmul.f32 %v85, %v90
  %v106 = vmul.f32 %v86, %v90
  %v107 = vmul.f32 %v87, %v90
  %v108 = vld [vmem:[%s3] sm:$0x1]
  %v110 = vperm.slane %v108, 0
  %v112 = vadd.f32 %v92, %v110
  %v113 = vadd.f32 %v93, %v110
  %v114 = vadd.f32 %v94, %v110
  %v115 = vadd.f32 %v95, %v110
  %v116 = vadd.f32 %v96, %v110
  %v117 = vadd.f32 %v97, %v110
  %v118 = vadd.f32 %v98, %v110
  %v119 = vadd.f32 %v99, %v110
  %v120 = vadd.f32 %v100, %v110
  %v121 = vadd.f32 %v101, %v110
  %v122 = vadd.f32 %v102, %v110
  %v123 = vadd.f32 %v103, %v110
  %v124 = vadd.f32 %v104, %v110
  %v125 = vadd.f32 %v105, %v110
  %v126 = vadd.f32 %v106, %v110
  %v127 = vadd.f32 %v107, %v110
  %v128 = vmax.f32 %v112, 0.0
  %v129 = vmax.f32 %v113, 0.0
  %v130 = vmax.f32 %v114, 0.0
  %v131 = vmax.f32 %v115, 0.0
  %v132 = vmax.f32 %v116, 0.0
  %v133 = vmax.f32 %v117, 0.0
  %v134 = vmax.f32 %v118, 0.0
  %v135 = vmax.f32 %v119, 0.0
  %v136 = vmax.f32 %v120, 0.0
  %v137 = vmax.f32 %v121, 0.0
  %v138 = vmax.f32 %v122, 0.0
  %v139 = vmax.f32 %v123, 0.0
  %v140 = vmax.f32 %v124, 0.0
  %v141 = vmax.f32 %v125, 0.0
  %v142 = vmax.f32 %v126, 0.0
  %v143 = vmax.f32 %v127, 0.0
  %v144 = vld [vmem:[#allocation2] sm:$0xff]
  %v145 = vld [vmem:[#allocation2 + $0x8] sm:$0xff]
  %v146 = vld [vmem:[#allocation2 + $0x10] sm:$0xff]
  %v147 = vld [vmem:[#allocation2 + $0x18] sm:$0xff]
  %v148 = vld [vmem:[#allocation2 + $0x20] sm:$0xff]
  %v149 = vld [vmem:[#allocation2 + $0x28] sm:$0xff]
  %v150 = vld [vmem:[#allocation2 + $0x30] sm:$0xff]
  %v151 = vld [vmem:[#allocation2 + $0x38] sm:$0xff]
  %v152 = vld [vmem:[#allocation2 + $0x40] sm:$0xff]
  %v153 = vld [vmem:[#allocation2 + $0x48] sm:$0xff]
  %v154 = vld [vmem:[#allocation2 + $0x50] sm:$0xff]
  %v155 = vld [vmem:[#allocation2 + $0x58] sm:$0xff]
  %v156 = vld [vmem:[#allocation2 + $0x60] sm:$0xff]
  %v157 = vld [vmem:[#allocation2 + $0x68] sm:$0xff]
  %v158 = vld [vmem:[#allocation2 + $0x70] sm:$0xff]
  %v159 = vld [vmem:[#allocation2 + $0x78] sm:$0xff]
  %v160 = vld [vmem:[#allocation2 + $0x80] sm:$0xff]
  %v161 = vld [vmem:[#allocation2 + $0x88] sm:$0xff]
  %v162 = vld [vmem:[#allocation2 + $0x90] sm:$0xff]
  %v163 = vld [vmem:[#allocation2 + $0x98] sm:$0xff]
  %v164 = vld [vmem:[#allocation2 + $0xa0] sm:$0xff]
  %v165 = vld [vmem:[#allocation2 + $0xa8] sm:$0xff]
  %v166 = vld [vmem:[#allocation2 + $0xb0] sm:$0xff]
  %v167 = vld [vmem:[#allocation2 + $0xb8] sm:$0xff]
  %v168 = vld [vmem:[#allocation2 + $0xc0] sm:$0xff]
  %v169 = vld [vmem:[#allocation2 + $0xc8] sm:$0xff]
  %v170 = vld [vmem:[#allocation2 + $0xd0] sm:$0xff]
  %v171 = vld [vmem:[#allocation2 + $0xd8] sm:$0xff]
  %v172 = vld [vmem:[#allocation2 + $0xe0] sm:$0xff]
  %v173 = vld [vmem:[#allocation2 + $0xe8] sm:$0xff]
  %v174 = vld [vmem:[#allocation2 + $0xf0] sm:$0xff]
  %v175 = vld [vmem:[#allocation2 + $0xf8] sm:$0xff]
  %v176 = vpack.c.bf16 %v129, %v128
  %v177 = vpack.c.bf16 %v131, %v130
  %v178 = vpack.c.bf16 %v133, %v132
  %v179 = vpack.c.bf16 %v135, %v134
  %v180 = vpack.c.bf16 %v137, %v136
  %v181 = vpack.c.bf16 %v139, %v138
  %v182 = vpack.c.bf16 %v141, %v140
  %v183 = vpack.c.bf16 %v143, %v142
  %v184 = vld [vmem:[%s1] sm:$0xff]
  %v185 = vld [vmem:[%s1 + $0x8] sm:$0xff]
  %v186 = vld [vmem:[%s1 + $0x10] sm:$0xff]
  %v187 = vld [vmem:[%s1 + $0x18] sm:$0xff]
  %v188 = vld [vmem:[%s1 + $0x20] sm:$0xff]
  %v189 = vld [vmem:[%s1 + $0x28] sm:$0xff]
  %v190 = vld [vmem:[%s1 + $0x30] sm:$0xff]
  %v191 = vld [vmem:[%s1 + $0x38] sm:$0xff]
  %v200 = vunpack.c.l.b16 %v184
  %v201 = vunpack.c.h.b16 %v184
  %v202 = vunpack.c.l.b16 %v185
  %v203 = vunpack.c.h.b16 %v185
  %v204 = vunpack.c.l.b16 %v186
  %v205 = vunpack.c.h.b16 %v186
  %v206 = vunpack.c.l.b16 %v187
  %v207 = vunpack.c.h.b16 %v187
  %v208 = vunpack.c.l.b16 %v188
  %v209 = vunpack.c.h.b16 %v188
  %v210 = vunpack.c.l.b16 %v189
  %v211 = vunpack.c.h.b16 %v189
  %v212 = vunpack.c.l.b16 %v190
  %v213 = vunpack.c.h.b16 %v190
  %v214 = vunpack.c.l.b16 %v191
  %v215 = vunpack.c.h.b16 %v191
  %v216 = vpack.c.b16 %v202, %v200
  %v217 = vpack.c.b16 %v203, %v201
  %v218 = vpack.c.b16 %v206, %v204
  %v219 = vpack.c.b16 %v207, %v205
  %v220 = vpack.c.b16 %v210, %v208
  %v221 = vpack.c.b16 %v211, %v209
  %v222 = vpack.c.b16 %v214, %v212
  %v223 = vpack.c.b16 %v215, %v213
  %vm232 = vcmask 523264
  %v234 = vsel %vm232, %v176, 0
  %v237 = vsel %vm232, %v177, 0
  %v240 = vsel %vm232, %v178, 0
  %v243 = vsel %vm232, %v179, 0
  %v246 = vsel %vm232, %v180, 0
  %v249 = vsel %vm232, %v181, 0
  %v252 = vsel %vm232, %v182, 0
  %v255 = vsel %vm232, %v183, 0
  %257 = vmatpush.bf16.msra.mxu0 0
  %258 = vmatpush.bf16.msra.mxu0 0
  %259 = vmatpush.bf16.msra.mxu0 0
  %260 = vmatpush.bf16.msra.mxu0 0
  %261 = vmatpush.bf16.msra.mxu0 %v222
  %262 = vmatpush.bf16.msra.mxu0 %v220
  %263 = vmatpush.bf16.msra.mxu0 %v218
  %264 = vmatpush.bf16.msra.mxu0 %v216
  %265 = vmatmul.bf16.gmra.mxu0 %v234
  %v266 = vpop.f32.mrf.mxu0
  %v267 = vadd.f32 0.0, %v266
  %v268 = vpop.f32.mrf.mxu0
  %v269 = vadd.f32 0.0, %v268
  %270 = vmatmul.bf16.gmra.mxu0 %v237
  %v271 = vpop.f32.mrf.mxu0
  %v272 = vadd.f32 0.0, %v271
  %v273 = vpop.f32.mrf.mxu0
  %v274 = vadd.f32 0.0, %v273
  %275 = vmatmul.bf16.gmra.mxu0 %v240
  %v276 = vpop.f32.mrf.mxu0
  %v277 = vadd.f32 0.0, %v276
  %v278 = vpop.f32.mrf.mxu0
  %v279 = vadd.f32 0.0, %v278
  %280 = vmatmul.bf16.gmra.mxu0 %v243
  %v281 = vpop.f32.mrf.mxu0
  %v282 = vadd.f32 0.0, %v281
  %v283 = vpop.f32.mrf.mxu0
  %v284 = vadd.f32 0.0, %v283
  %285 = vmatmul.bf16.gmra.mxu0 %v246
  %v286 = vpop.f32.mrf.mxu0
  %v287 = vadd.f32 0.0, %v286
  %v288 = vpop.f32.mrf.mxu0
  %v289 = vadd.f32 0.0, %v288
  %290 = vmatmul.bf16.gmra.mxu0 %v249
  %v291 = vpop.f32.mrf.mxu0
  %v292 = vadd.f32 0.0, %v291
  %v293 = vpop.f32.mrf.mxu0
  %v294 = vadd.f32 0.0, %v293
  %295 = vmatmul.bf16.gmra.mxu0 %v252
  %v296 = vpop.f32.mrf.mxu0
  %v297 = vadd.f32 0.0, %v296
  %v298 = vpop.f32.mrf.mxu0
  %v299 = vadd.f32 0.0, %v298
  %300 = vmatmul.bf16.gmra.mxu0 %v255
  %v301 = vpop.f32.mrf.mxu0
  %v302 = vadd.f32 0.0, %v301
  %v303 = vpop.f32.mrf.mxu0
  %v304 = vadd.f32 0.0, %v303
  %305 = vdwg.mxu0
  %306 = vmatpush.bf16.msra.mxu0 0
  %307 = vmatpush.bf16.msra.mxu0 0
  %308 = vmatpush.bf16.msra.mxu0 0
  %309 = vmatpush.bf16.msra.mxu0 0
  %310 = vmatpush.bf16.msra.mxu0 %v223
  %311 = vmatpush.bf16.msra.mxu0 %v221
  %312 = vmatpush.bf16.msra.mxu0 %v219
  %313 = vmatpush.bf16.msra.mxu0 %v217
  %314 = vmatmul.bf16.gmra.mxu0 %v234
  %v315 = vpop.f32.mrf.mxu0
  %v316 = vadd.f32 0.0, %v315
  %v317 = vpop.f32.mrf.mxu0
  %v318 = vadd.f32 0.0, %v317
  %319 = vmatmul.bf16.gmra.mxu0 %v237
  %v320 = vpop.f32.mrf.mxu0
  %v321 = vadd.f32 0.0, %v320
  %v322 = vpop.f32.mrf.mxu0
  %v323 = vadd.f32 0.0, %v322
  %324 = vmatmul.bf16.gmra.mxu0 %v240
  %v325 = vpop.f32.mrf.mxu0
  %v326 = vadd.f32 0.0, %v325
  %v327 = vpop.f32.mrf.mxu0
  %v328 = vadd.f32 0.0, %v327
  %329 = vmatmul.bf16.gmra.mxu0 %v243
  %v330 = vpop.f32.mrf.mxu0
  %v331 = vadd.f32 0.0, %v330
  %v332 = vpop.f32.mrf.mxu0
  %v333 = vadd.f32 0.0, %v332
  %334 = vmatmul.bf16.gmra.mxu0 %v246
  %v335 = vpop.f32.mrf.mxu0
  %v336 = vadd.f32 0.0, %v335
  %v337 = vpop.f32.mrf.mxu0
  %v338 = vadd.f32 0.0, %v337
  %339 = vmatmul.bf16.gmra.mxu0 %v249
  %v340 = vpop.f32.mrf.mxu0
  %v341 = vadd.f32 0.0, %v340
  %v342 = vpop.f32.mrf.mxu0
  %v343 = vadd.f32 0.0, %v342
  %344 = vmatmul.bf16.gmra.mxu0 %v252
  %v345 = vpop.f32.mrf.mxu0
  %v346 = vadd.f32 0.0, %v345
  %v347 = vpop.f32.mrf.mxu0
  %v348 = vadd.f32 0.0, %v347
  %349 = vmatmul.bf16.gmra.mxu0 %v255
  %v350 = vpop.f32.mrf.mxu0
  %v351 = vadd.f32 0.0, %v350
  %v352 = vpop.f32.mrf.mxu0
  %v353 = vadd.f32 0.0, %v352
  %354 = vdwg.mxu0
  %v355 = vadd.f32 %v144, %v267
  %v356 = vadd.f32 %v145, %v316
  %v357 = vadd.f32 %v146, %v269
  %v358 = vadd.f32 %v147, %v318
  %v359 = vadd.f32 %v148, %v272
  %v360 = vadd.f32 %v149, %v321
  %v361 = vadd.f32 %v150, %v274
  %v362 = vadd.f32 %v151, %v323
  %v363 = vadd.f32 %v152, %v277
  %v364 = vadd.f32 %v153, %v326
  %v365 = vadd.f32 %v154, %v279
  %v366 = vadd.f32 %v155, %v328
  %v367 = vadd.f32 %v156, %v282
  %v368 = vadd.f32 %v157, %v331
  %v369 = vadd.f32 %v158, %v284
  %v370 = vadd.f32 %v159, %v333
  %v371 = vadd.f32 %v160, %v287
  %v372 = vadd.f32 %v161, %v336
  %v373 = vadd.f32 %v162, %v289
  %v374 = vadd.f32 %v163, %v338
  %v375 = vadd.f32 %v164, %v292
  %v376 = vadd.f32 %v165, %v341
  %v377 = vadd.f32 %v166, %v294
  %v378 = vadd.f32 %v167, %v343
  %v379 = vadd.f32 %v168, %v297
  %v380 = vadd.f32 %v169, %v346
  %v381 = vadd.f32 %v170, %v299
  %v382 = vadd.f32 %v171, %v348
  %v383 = vadd.f32 %v172, %v302
  %v384 = vadd.f32 %v173, %v351
  %v385 = vadd.f32 %v174, %v304
  %v386 = vadd.f32 %v175, %v353
  %387 = vst [vmem:[#allocation2] sm:$0xff] %v355
  %388 = vst [vmem:[#allocation2 + $0x8] sm:$0xff] %v356
  %389 = vst [vmem:[#allocation2 + $0x10] sm:$0xff] %v357
  %390 = vst [vmem:[#allocation2 + $0x18] sm:$0xff] %v358
  %391 = vst [vmem:[#allocation2 + $0x20] sm:$0xff] %v359
  %392 = vst [vmem:[#allocation2 + $0x28] sm:$0xff] %v360
  %393 = vst [vmem:[#allocation2 + $0x30] sm:$0xff] %v361
  %394 = vst [vmem:[#allocation2 + $0x38] sm:$0xff] %v362
  %395 = vst [vmem:[#allocation2 + $0x40] sm:$0xff] %v363
  %396 = vst [vmem:[#allocation2 + $0x48] sm:$0xff] %v364
  %397 = vst [vmem:[#allocation2 + $0x50] sm:$0xff] %v365
  %398 = vst [vmem:[#allocation2 + $0x58] sm:$0xff] %v366
  %399 = vst [vmem:[#allocation2 + $0x60] sm:$0xff] %v367
  %400 = vst [vmem:[#allocation2 + $0x68] sm:$0xff] %v368
  %401 = vst [vmem:[#allocation2 + $0x70] sm:$0xff] %v369
  %402 = vst [vmem:[#allocation2 + $0x78] sm:$0xff] %v370
  %403 = vst [vmem:[#allocation2 + $0x80] sm:$0xff] %v371
  %404 = vst [vmem:[#allocation2 + $0x88] sm:$0xff] %v372
  %405 = vst [vmem:[#allocation2 + $0x90] sm:$0xff] %v373
  %406 = vst [vmem:[#allocation2 + $0x98] sm:$0xff] %v374
  %407 = vst [vmem:[#allocation2 + $0xa0] sm:$0xff] %v375
  %408 = vst [vmem:[#allocation2 + $0xa8] sm:$0xff] %v376
  %409 = vst [vmem:[#allocation2 + $0xb0] sm:$0xff] %v377
  %410 = vst [vmem:[#allocation2 + $0xb8] sm:$0xff] %v378
  %411 = vst [vmem:[#allocation2 + $0xc0] sm:$0xff] %v379
  %412 = vst [vmem:[#allocation2 + $0xc8] sm:$0xff] %v380
  %413 = vst [vmem:[#allocation2 + $0xd0] sm:$0xff] %v381
  %414 = vst [vmem:[#allocation2 + $0xd8] sm:$0xff] %v382
  %415 = vst [vmem:[#allocation2 + $0xe0] sm:$0xff] %v383
  %416 = vst [vmem:[#allocation2 + $0xe8] sm:$0xff] %v384
  %417 = vst [vmem:[#allocation2 + $0xf0] sm:$0xff] %v385
  %418 = vst [vmem:[#allocation2 + $0xf8] sm:$0xff] %v386
  // Predicated region
  $region22: #{bottleneck_forward.7} parent=0 // pred_check
    %p419 = pneg %p20
  $region23: #{bottleneck_forward.7} parent=0 // pred_check_branch
    %421 = sbr.rel (%p419) target = $region25
  $region24: #{bottleneck_forward.7} parent=0 // pred_region
    %v422 = vld [vmem:[#allocation2] sm:$0xff]
    %v423 = vld [vmem:[#allocation2 + $0x8] sm:$0xff]
    %v424 = vld [vmem:[#allocation2 + $0x10] sm:$0xff]
    %v425 = vld [vmem:[#allocation2 + $0x18] sm:$0xff]
    %v426 = vld [vmem:[#allocation2 + $0x20] sm:$0xff]
    %v427 = vld [vmem:[#allocation2 + $0x28] sm:$0xff]
    %v428 = vld [vmem:[#allocation2 + $0x30] sm:$0xff]
    %v429 = vld [vmem:[#allocation2 + $0x38] sm:$0xff]
    %v430 = vld [vmem:[#allocation2 + $0x40] sm:$0xff]
    %v431 = vld [vmem:[#allocation2 + $0x48] sm:$0xff]
    %v432 = vld [vmem:[#allocation2 + $0x50] sm:$0xff]
    %v433 = vld [vmem:[#allocation2 + $0x58] sm:$0xff]
    %v434 = vld [vmem:[#allocation2 + $0x60] sm:$0xff]
    %v435 = vld [vmem:[#allocation2 + $0x68] sm:$0xff]
    %v436 = vld [vmem:[#allocation2 + $0x70] sm:$0xff]
    %v437 = vld [vmem:[#allocation2 + $0x78] sm:$0xff]
    %v438 = vld [vmem:[#allocation2 + $0x80] sm:$0xff]
    %v439 = vld [vmem:[#allocation2 + $0x88] sm:$0xff]
    %v440 = vld [vmem:[#allocation2 + $0x90] sm:$0xff]
    %v441 = vld [vmem:[#allocation2 + $0x98] sm:$0xff]
    %v442 = vld [vmem:[#allocation2 + $0xa0] sm:$0xff]
    %v443 = vld [vmem:[#allocation2 + $0xa8] sm:$0xff]
    %v444 = vld [vmem:[#allocation2 + $0xb0] sm:$0xff]
    %v445 = vld [vmem:[#allocation2 + $0xb8] sm:$0xff]
    %v446 = vld [vmem:[#allocation2 + $0xc0] sm:$0xff]
    %v447 = vld [vmem:[#allocation2 + $0xc8] sm:$0xff]
    %v448 = vld [vmem:[#allocation2 + $0xd0] sm:$0xff]
    %v449 = vld [vmem:[#allocation2 + $0xd8] sm:$0xff]
    %v450 = vld [vmem:[#allocation2 + $0xe0] sm:$0xff]
    %v451 = vld [vmem:[#allocation2 + $0xe8] sm:$0xff]
    %v452 = vld [vmem:[#allocation2 + $0xf0] sm:$0xff]
    %v453 = vld [vmem:[#allocation2 + $0xf8] sm:$0xff]
    %v454 = vpack.c.bf16 %v423, %v422
    %v455 = vpack.c.bf16 %v425, %v424
    %v456 = vpack.c.bf16 %v427, %v426
    %v457 = vpack.c.bf16 %v429, %v428
    %v458 = vpack.c.bf16 %v431, %v430
    %v459 = vpack.c.bf16 %v433, %v432
    %v460 = vpack.c.bf16 %v435, %v434
    %v461 = vpack.c.bf16 %v437, %v436
    %v462 = vpack.c.bf16 %v439, %v438
    %v463 = vpack.c.bf16 %v441, %v440
    %v464 = vpack.c.bf16 %v443, %v442
    %v465 = vpack.c.bf16 %v445, %v444
    %v466 = vpack.c.bf16 %v447, %v446
    %v467 = vpack.c.bf16 %v449, %v448
    %v468 = vpack.c.bf16 %v451, %v450
    %v469 = vpack.c.bf16 %v453, %v452
    %470 = vst [vmem:[%s4] sm:$0xff] %v454
    %471 = vst [vmem:[%s4 + $0x8] sm:$0xff] %v455
    %472 = vst [vmem:[%s4 + $0x10] sm:$0xff] %v456
    %473 = vst [vmem:[%s4 + $0x18] sm:$0xff] %v457
    %474 = vst [vmem:[%s4 + $0x20] sm:$0xff] %v458
    %475 = vst [vmem:[%s4 + $0x28] sm:$0xff] %v459
    %476 = vst [vmem:[%s4 + $0x30] sm:$0xff] %v460
    %477 = vst [vmem:[%s4 + $0x38] sm:$0xff] %v461
    %478 = vst [vmem:[%s4 + $0x40] sm:$0xff] %v462
    %479 = vst [vmem:[%s4 + $0x48] sm:$0xff] %v463
    %480 = vst [vmem:[%s4 + $0x50] sm:$0xff] %v464
    %481 = vst [vmem:[%s4 + $0x58] sm:$0xff] %v465
    %482 = vst [vmem:[%s4 + $0x60] sm:$0xff] %v466
    %483 = vst [vmem:[%s4 + $0x68] sm:$0xff] %v467
    %484 = vst [vmem:[%s4 + $0x70] sm:$0xff] %v468
    %485 = vst [vmem:[%s4 + $0x78] sm:$0xff] %v469
    %v486 = vadd.f32 %v422, %v424
    %v487 = vadd.f32 %v486, %v426
    %v488 = vadd.f32 %v487, %v428
    %v489 = vadd.f32 %v488, %v430
    %v490 = vadd.f32 %v489, %v432
    %v491 = vadd.f32 %v490, %v434
    %v492 = vadd.f32 %v491, %v436
    %v493 = vadd.f32 %v492, %v438
    %v494 = vadd.f32 %v493, %v440
    %v495 = vadd.f32 %v494, %v442
    %v496 = vadd.f32 %v495, %v444
    %v497 = vadd.f32 %v496, %v446
    %v498 = vadd.f32 %v497, %v448
    %v499 = vadd.f32 %v498, %v450
    %v500 = vadd.f32 %v499, %v452
    %v501 = vrot.slane %v500, 4
    %v502 = vadd.f32 %v500, %v501
    %v503 = vrot.slane %v502, 2
    %v504 = vadd.f32 %v502, %v503
    %v505 = vrot.slane %v504, 1
    %v506 = vadd.f32 %v504, %v505
    %v507 = vadd.f32 %v423, %v425
    %v508 = vadd.f32 %v507, %v427
    %v509 = vadd.f32 %v508, %v429
    %v510 = vadd.f32 %v509, %v431
    %v511 = vadd.f32 %v510, %v433
    %v512 = vadd.f32 %v511, %v435
    %v513 = vadd.f32 %v512, %v437
    %v514 = vadd.f32 %v513, %v439
    %v515 = vadd.f32 %v514, %v441
    %v516 = vadd.f32 %v515, %v443
    %v517 = vadd.f32 %v516, %v445
    %v518 = vadd.f32 %v517, %v447
    %v519 = vadd.f32 %v518, %v449
    %v520 = vadd.f32 %v519, %v451
    %v521 = vadd.f32 %v520, %v453
    %v522 = vrot.slane %v521, 4
    %v523 = vadd.f32 %v521, %v522
    %v524 = vrot.slane %v523, 2
    %v525 = vadd.f32 %v523, %v524
    %v526 = vrot.slane %v525, 1
    %v527 = vadd.f32 %v525, %v526
    %v528 = vmul.f32 %v422, %v422
    %v529 = vmul.f32 %v423, %v423
    %v530 = vmul.f32 %v424, %v424
    %v531 = vmul.f32 %v425, %v425
    %v532 = vmul.f32 %v426, %v426
    %v533 = vmul.f32 %v427, %v427
    %v534 = vmul.f32 %v428, %v428
    %v535 = vmul.f32 %v429, %v429
    %v536 = vmul.f32 %v430, %v430
    %v537 = vmul.f32 %v431, %v431
    %v538 = vmul.f32 %v432, %v432
    %v539 = vmul.f32 %v433, %v433
    %v540 = vmul.f32 %v434, %v434
    %v541 = vmul.f32 %v435, %v435
    %v542 = vmul.f32 %v436, %v436
    %v543 = vmul.f32 %v437, %v437
    %v544 = vmul.f32 %v438, %v438
    %v545 = vmul.f32 %v439, %v439
    %v546 = vmul.f32 %v440, %v440
    %v547 = vmul.f32 %v441, %v441
    %v548 = vmul.f32 %v442, %v442
    %v549 = vmul.f32 %v443, %v443
    %v550 = vmul.f32 %v444, %v444
    %v551 = vmul.f32 %v445, %v445
    %v552 = vmul.f32 %v446, %v446
    %v553 = vmul.f32 %v447, %v447
    %v554 = vmul.f32 %v448, %v448
    %v555 = vmul.f32 %v449, %v449
    %v556 = vmul.f32 %v450, %v450
    %v557 = vmul.f32 %v451, %v451
    %v558 = vmul.f32 %v452, %v452
    %v559 = vmul.f32 %v453, %v453
    %v560 = vadd.f32 %v528, %v530
    %v561 = vadd.f32 %v560, %v532
    %v562 = vadd.f32 %v561, %v534
    %v563 = vadd.f32 %v562, %v536
    %v564 = vadd.f32 %v563, %v538
    %v565 = vadd.f32 %v564, %v540
    %v566 = vadd.f32 %v565, %v542
    %v567 = vadd.f32 %v566, %v544
    %v568 = vadd.f32 %v567, %v546
    %v569 = vadd.f32 %v568, %v548
    %v570 = vadd.f32 %v569, %v550
    %v571 = vadd.f32 %v570, %v552
    %v572 = vadd.f32 %v571, %v554
    %v573 = vadd.f32 %v572, %v556
    %v574 = vadd.f32 %v573, %v558
    %v575 = vrot.slane %v574, 4
    %v576 = vadd.f32 %v574, %v575
    %v577 = vrot.slane %v576, 2
    %v578 = vadd.f32 %v576, %v577
    %v579 = vrot.slane %v578, 1
    %v580 = vadd.f32 %v578, %v579
    %v581 = vadd.f32 %v529, %v531
    %v582 = vadd.f32 %v581, %v533
    %v583 = vadd.f32 %v582, %v535
    %v584 = vadd.f32 %v583, %v537
    %v585 = vadd.f32 %v584, %v539
    %v586 = vadd.f32 %v585, %v541
    %v587 = vadd.f32 %v586, %v543
    %v588 = vadd.f32 %v587, %v545
    %v589 = vadd.f32 %v588, %v547
    %v590 = vadd.f32 %v589, %v549
    %v591 = vadd.f32 %v590, %v551
    %v592 = vadd.f32 %v591, %v553
    %v593 = vadd.f32 %v592, %v555
    %v594 = vadd.f32 %v593, %v557
    %v595 = vadd.f32 %v594, %v559
    %v596 = vrot.slane %v595, 4
    %v597 = vadd.f32 %v595, %v596
    %v598 = vrot.slane %v597, 2
    %v599 = vadd.f32 %v597, %v598
    %v600 = vrot.slane %v599, 1
    %v601 = vadd.f32 %v599, %v600
    %vm602 = vcmask 1040384
    %v603 = vsel %vm602, %v506, %v580
    %v604 = vsel %vm602, %v527, %v601
    %v607 = vrot.slane %v604, 6
    %vm608 = vcmask 1041408
    %v609 = vsel %vm608, %v603, %v607
    %611 = vst [vmem:[%s5] sm:$0xf] %v609
  $region25: #{bottleneck_forward.7} parent=0 // pred_fallthru
    _
  // Predicated region
  $region26: #{bottleneck_forward.7} parent=0 // pred_check
    _
  $region27: #{bottleneck_forward.7} parent=0 // pred_check_branch
    %613 = sbr.rel (0) target = $region29
  $region28: #{bottleneck_forward.7} parent=0 // pred_region
    _
  $region29: #{bottleneck_forward.7} parent=0 // pred_fallthru
    _
  // Predicated region
  $region30: #{bottleneck_forward.7} parent=0 // pred_check
    _
  $region31: #{bottleneck_forward.7} parent=0 // pred_check_branch
    %615 = sbr.rel (0) target = $region33
  $region32: #{bottleneck_forward.7} parent=0 // pred_region
    _
  $region33: #{bottleneck_forward.7} parent=0 // pred_fallthru
    _
  // Predicated region
  $region34: #{bottleneck_forward.7} parent=0 // pred_check
    _
  $region35: #{bottleneck_forward.7} parent=0 // pred_check_branch
    %617 = sbr.rel (0) target = $region37
  $region36: #{bottleneck_forward.7} parent=0 // pred_region
    _
  $region37: #{bottleneck_forward.7} parent=0 // pred_fallthru
    _
  // Predicated region
  $region38: #{bottleneck_forward.7} parent=0 // pred_check
    _
  $region39: #{bottleneck_forward.7} parent=0 // pred_check_branch
    %619 = sbr.rel (0) target = $region41
  $region40: #{bottleneck_forward.7} parent=0 // pred_region
    _
  $region41: #{bottleneck_forward.7} parent=0 // pred_fallthru
    _

// kernel: bottleneck_forward.8
$region0: #{bottleneck_forward.8}
  #allocation0 [shape = 'u32[]', space=smem, size = 0x4, offset = 0x4, fixed_abs, tag = 'smem constant byte address 0x4 - core index']
  #allocation1 [shape = 'u32[72,128]{1,0:T(1,128)}', space=vmem, size = 0x9000, scoped, tag = 'internal scratch']
  #allocation2 [shape = 'f32[128,256]{1,0:T(8,128)}', space=vmem, size = 0x20000, scoped, tag = 'scratch operand']
  %s0 = inlined_call_operand.vmem [shape: bf16[128,64], index: 0, kind: input, shape index: {}]
  %s1 = inlined_call_operand.vmem [shape: bf16[64,256], index: 1, kind: input, shape index: {}]
  %s2 = inlined_call_operand.vmem [shape: f32[1,64], index: 2, kind: input, shape index: {}]
  %s3 = inlined_call_operand.vmem [shape: f32[1,64], index: 3, kind: input, shape index: {}]
  %s4 = inlined_call_operand.vmem [shape: bf16[128,256], index: 4, kind: output, shape index: {0}]
  %s5 = inlined_call_operand.vmem [shape: f32[1,2,256], index: 5, kind: output, shape index: {1}]
  %6 = xla_tuple %s4, %s5
  %s7 = sld [smem:[#allocation0]]
  $region42: #{bottleneck_forward.8} parent=0
    _
  %s9 = ssub.s32 1, %s7
  %s10 = scalar_select 0, %s9, %s7
  // Predicated region
  $region2: #{bottleneck_forward.8} parent=0 // pred_check
    _
  $region3: #{bottleneck_forward.8} parent=0 // pred_check_branch
    %12 = sbr.rel (0) target = $region5
  $region4: #{bottleneck_forward.8} parent=0 // pred_region
    _
  $region5: #{bottleneck_forward.8} parent=0 // pred_fallthru
    _
  // Predicated region
  $region6: #{bottleneck_forward.8} parent=0 // pred_check
    _
  $region7: #{bottleneck_forward.8} parent=0 // pred_check_branch
    %14 = sbr.rel (0) target = $region9
  $region8: #{bottleneck_forward.8} parent=0 // pred_region
    _
  $region9: #{bottleneck_forward.8} parent=0 // pred_fallthru
    _
  // Predicated region
  $region10: #{bottleneck_forward.8} parent=0 // pred_check
    _
  $region11: #{bottleneck_forward.8} parent=0 // pred_check_branch
    %16 = sbr.rel (0) target = $region13
  $region12: #{bottleneck_forward.8} parent=0 // pred_region
    _
  $region13: #{bottleneck_forward.8} parent=0 // pred_fallthru
    _
  // Predicated region
  $region14: #{bottleneck_forward.8} parent=0 // pred_check
    _
  $region15: #{bottleneck_forward.8} parent=0 // pred_check_branch
    %18 = sbr.rel (0) target = $region17
  $region16: #{bottleneck_forward.8} parent=0 // pred_region
    _
  $region17: #{bottleneck_forward.8} parent=0 // pred_fallthru
    _
  %p20 = scmp.eq.s32.totalorder 0, 0
  // Predicated region
  $region18: #{bottleneck_forward.8} parent=0 // pred_check
    %p21 = pneg %p20
  $region19: #{bottleneck_forward.8} parent=0 // pred_check_branch
    %23 = sbr.rel (%p21) target = $region21
  $region20: #{bottleneck_forward.8} parent=0 // pred_region
    %24 = vst [vmem:[#allocation2] sm:$0xff] 0.0
    %25 = vst [vmem:[#allocation2 + $0x8] sm:$0xff] 0.0
    %26 = vst [vmem:[#allocation2 + $0x10] sm:$0xff] 0.0
    %27 = vst [vmem:[#allocation2 + $0x18] sm:$0xff] 0.0
    %28 = vst [vmem:[#allocation2 + $0x20] sm:$0xff] 0.0
    %29 = vst [vmem:[#allocation2 + $0x28] sm:$0xff] 0.0
    %30 = vst [vmem:[#allocation2 + $0x30] sm:$0xff] 0.0
    %31 = vst [vmem:[#allocation2 + $0x38] sm:$0xff] 0.0
    %32 = vst [vmem:[#allocation2 + $0x40] sm:$0xff] 0.0
    %33 = vst [vmem:[#allocation2 + $0x48] sm:$0xff] 0.0
    %34 = vst [vmem:[#allocation2 + $0x50] sm:$0xff] 0.0
    %35 = vst [vmem:[#allocation2 + $0x58] sm:$0xff] 0.0
    %36 = vst [vmem:[#allocation2 + $0x60] sm:$0xff] 0.0
    %37 = vst [vmem:[#allocation2 + $0x68] sm:$0xff] 0.0
    %38 = vst [vmem:[#allocation2 + $0x70] sm:$0xff] 0.0
    %39 = vst [vmem:[#allocation2 + $0x78] sm:$0xff] 0.0
    %40 = vst [vmem:[#allocation2 + $0x80] sm:$0xff] 0.0
    %41 = vst [vmem:[#allocation2 + $0x88] sm:$0xff] 0.0
    %42 = vst [vmem:[#allocation2 + $0x90] sm:$0xff] 0.0
    %43 = vst [vmem:[#allocation2 + $0x98] sm:$0xff] 0.0
    %44 = vst [vmem:[#allocation2 + $0xa0] sm:$0xff] 0.0
    %45 = vst [vmem:[#allocation2 + $0xa8] sm:$0xff] 0.0
    %46 = vst [vmem:[#allocation2 + $0xb0] sm:$0xff] 0.0
    %47 = vst [vmem:[#allocation2 + $0xb8] sm:$0xff] 0.0
    %48 = vst [vmem:[#allocation2 + $0xc0] sm:$0xff] 0.0
    %49 = vst [vmem:[#allocation2 + $0xc8] sm:$0xff] 0.0
    %50 = vst [vmem:[#allocation2 + $0xd0] sm:$0xff] 0.0
    %51 = vst [vmem:[#allocation2 + $0xd8] sm:$0xff] 0.0
    %52 = vst [vmem:[#allocation2 + $0xe0] sm:$0xff] 0.0
    %53 = vst [vmem:[#allocation2 + $0xe8] sm:$0xff] 0.0
    %54 = vst [vmem:[#allocation2 + $0xf0] sm:$0xff] 0.0
    %55 = vst [vmem:[#allocation2 + $0xf8] sm:$0xff] 0.0
  $region21: #{bottleneck_forward.8} parent=0 // pred_fallthru
    _
  %v56 = vld [vmem:[%s0] sm:$0xf]
  %v57 = vld [vmem:[%s0 + $0x4] sm:$0xf]
  %v58 = vld [vmem:[%s0 + $0x8] sm:$0xf]
  %v59 = vld [vmem:[%s0 + $0xc] sm:$0xf]
  %v60 = vld [vmem:[%s0 + $0x10] sm:$0xf]
  %v61 = vld [vmem:[%s0 + $0x14] sm:$0xf]
  %v62 = vld [vmem:[%s0 + $0x18] sm:$0xf]
  %v63 = vld [vmem:[%s0 + $0x1c] sm:$0xf]
  %v64 = vld [vmem:[%s0 + $0x20] sm:$0xf]
  %v65 = vld [vmem:[%s0 + $0x24] sm:$0xf]
  %v66 = vld [vmem:[%s0 + $0x28] sm:$0xf]
  %v67 = vld [vmem:[%s0 + $0x2c] sm:$0xf]
  %v68 = vld [vmem:[%s0 + $0x30] sm:$0xf]
  %v69 = vld [vmem:[%s0 + $0x34] sm:$0xf]
  %v70 = vld [vmem:[%s0 + $0x38] sm:$0xf]
  %v71 = vld [vmem:[%s0 + $0x3c] sm:$0xf]
  %v72 = vld [vmem:[#allocation2] sm:$0xff]
  %v73 = vld [vmem:[#allocation2 + $0x8] sm:$0xff]
  %v74 = vld [vmem:[#allocation2 + $0x10] sm:$0xff]
  %v75 = vld [vmem:[#allocation2 + $0x18] sm:$0xff]
  %v76 = vld [vmem:[#allocation2 + $0x20] sm:$0xff]
  %v77 = vld [vmem:[#allocation2 + $0x28] sm:$0xff]
  %v78 = vld [vmem:[#allocation2 + $0x30] sm:$0xff]
  %v79 = vld [vmem:[#allocation2 + $0x38] sm:$0xff]
  %v80 = vld [vmem:[#allocation2 + $0x40] sm:$0xff]
  %v81 = vld [vmem:[#allocation2 + $0x48] sm:$0xff]
  %v82 = vld [vmem:[#allocation2 + $0x50] sm:$0xff]
  %v83 = vld [vmem:[#allocation2 + $0x58] sm:$0xff]
  %v84 = vld [vmem:[#allocation2 + $0x60] sm:$0xff]
  %v85 = vld [vmem:[#allocation2 + $0x68] sm:$0xff]
  %v86 = vld [vmem:[#allocation2 + $0x70] sm:$0xff]
  %v87 = vld [vmem:[#allocation2 + $0x78] sm:$0xff]
  %v88 = vld [vmem:[#allocation2 + $0x80] sm:$0xff]
  %v89 = vld [vmem:[#allocation2 + $0x88] sm:$0xff]
  %v90 = vld [vmem:[#allocation2 + $0x90] sm:$0xff]
  %v91 = vld [vmem:[#allocation2 + $0x98] sm:$0xff]
  %v92 = vld [vmem:[#allocation2 + $0xa0] sm:$0xff]
  %v93 = vld [vmem:[#allocation2 + $0xa8] sm:$0xff]
  %v94 = vld [vmem:[#allocation2 + $0xb0] sm:$0xff]
  %v95 = vld [vmem:[#allocation2 + $0xb8] sm:$0xff]
  %v96 = vld [vmem:[#allocation2 + $0xc0] sm:$0xff]
  %v97 = vld [vmem:[#allocation2 + $0xc8] sm:$0xff]
  %v98 = vld [vmem:[#allocation2 + $0xd0] sm:$0xff]
  %v99 = vld [vmem:[#allocation2 + $0xd8] sm:$0xff]
  %v100 = vld [vmem:[#allocation2 + $0xe0] sm:$0xff]
  %v101 = vld [vmem:[#allocation2 + $0xe8] sm:$0xff]
  %v102 = vld [vmem:[#allocation2 + $0xf0] sm:$0xff]
  %v103 = vld [vmem:[#allocation2 + $0xf8] sm:$0xff]
  %v104 = vld [vmem:[%s1] sm:$0xff]
  %v105 = vld [vmem:[%s1 + $0x8] sm:$0xff]
  %v106 = vld [vmem:[%s1 + $0x10] sm:$0xff]
  %v107 = vld [vmem:[%s1 + $0x18] sm:$0xff]
  %v108 = vld [vmem:[%s1 + $0x20] sm:$0xff]
  %v109 = vld [vmem:[%s1 + $0x28] sm:$0xff]
  %v110 = vld [vmem:[%s1 + $0x30] sm:$0xff]
  %v111 = vld [vmem:[%s1 + $0x38] sm:$0xff]
  %v128 = vunpack.c.l.b16 %v56
  %v129 = vunpack.c.l.b16 %v57
  %v130 = vunpack.c.l.b16 %v58
  %v131 = vunpack.c.l.b16 %v59
  %v132 = vunpack.c.l.b16 %v60
  %v133 = vunpack.c.l.b16 %v61
  %v134 = vunpack.c.l.b16 %v62
  %v135 = vunpack.c.l.b16 %v63
  %v136 = vunpack.c.l.b16 %v64
  %v137 = vunpack.c.l.b16 %v65
  %v138 = vunpack.c.l.b16 %v66
  %v139 = vunpack.c.l.b16 %v67
  %v140 = vunpack.c.l.b16 %v68
  %v141 = vunpack.c.l.b16 %v69
  %v142 = vunpack.c.l.b16 %v70
  %v143 = vunpack.c.l.b16 %v71
  %v144 = vpack.c.b16 %v129, %v128
  %v145 = vpack.c.b16 %v131, %v130
  %v146 = vpack.c.b16 %v133, %v132
  %v147 = vpack.c.b16 %v135, %v134
  %v148 = vpack.c.b16 %v137, %v136
  %v149 = vpack.c.b16 %v139, %v138
  %v150 = vpack.c.b16 %v141, %v140
  %v151 = vpack.c.b16 %v143, %v142
  %v160 = vunpack.c.l.b16 %v104
  %v161 = vunpack.c.h.b16 %v104
  %v162 = vunpack.c.l.b16 %v105
  %v163 = vunpack.c.h.b16 %v105
  %v164 = vunpack.c.l.b16 %v106
  %v165 = vunpack.c.h.b16 %v106
  %v166 = vunpack.c.l.b16 %v107
  %v167 = vunpack.c.h.b16 %v107
  %v168 = vunpack.c.l.b16 %v108
  %v169 = vunpack.c.h.b16 %v108
  %v170 = vunpack.c.l.b16 %v109
  %v171 = vunpack.c.h.b16 %v109
  %v172 = vunpack.c.l.b16 %v110
  %v173 = vunpack.c.h.b16 %v110
  %v174 = vunpack.c.l.b16 %v111
  %v175 = vunpack.c.h.b16 %v111
  %v176 = vpack.c.b16 %v162, %v160
  %v177 = vpack.c.b16 %v163, %v161
  %v178 = vpack.c.b16 %v166, %v164
  %v179 = vpack.c.b16 %v167, %v165
  %v180 = vpack.c.b16 %v170, %v168
  %v181 = vpack.c.b16 %v171, %v169
  %v182 = vpack.c.b16 %v174, %v172
  %v183 = vpack.c.b16 %v175, %v173
  %vm192 = vcmask 523264
  %v194 = vsel %vm192, %v144, 0
  %v197 = vsel %vm192, %v145, 0
  %v200 = vsel %vm192, %v146, 0
  %v203 = vsel %vm192, %v147, 0
  %v206 = vsel %vm192, %v148, 0
  %v209 = vsel %vm192, %v149, 0
  %v212 = vsel %vm192, %v150, 0
  %v215 = vsel %vm192, %v151, 0
  %217 = vmatpush.bf16.msra.mxu0 0
  %218 = vmatpush.bf16.msra.mxu0 0
  %219 = vmatpush.bf16.msra.mxu0 0
  %220 = vmatpush.bf16.msra.mxu0 0
  %221 = vmatpush.bf16.msra.mxu0 %v182
  %222 = vmatpush.bf16.msra.mxu0 %v180
  %223 = vmatpush.bf16.msra.mxu0 %v178
  %224 = vmatpush.bf16.msra.mxu0 %v176
  %225 = vmatmul.bf16.gmra.mxu0 %v194
  %v226 = vpop.f32.mrf.mxu0
  %v227 = vadd.f32 0.0, %v226
  %v228 = vpop.f32.mrf.mxu0
  %v229 = vadd.f32 0.0, %v228
  %230 = vmatmul.bf16.gmra.mxu0 %v197
  %v231 = vpop.f32.mrf.mxu0
  %v232 = vadd.f32 0.0, %v231
  %v233 = vpop.f32.mrf.mxu0
  %v234 = vadd.f32 0.0, %v233
  %235 = vmatmul.bf16.gmra.mxu0 %v200
  %v236 = vpop.f32.mrf.mxu0
  %v237 = vadd.f32 0.0, %v236
  %v238 = vpop.f32.mrf.mxu0
  %v239 = vadd.f32 0.0, %v238
  %240 = vmatmul.bf16.gmra.mxu0 %v203
  %v241 = vpop.f32.mrf.mxu0
  %v242 = vadd.f32 0.0, %v241
  %v243 = vpop.f32.mrf.mxu0
  %v244 = vadd.f32 0.0, %v243
  %245 = vmatmul.bf16.gmra.mxu0 %v206
  %v246 = vpop.f32.mrf.mxu0
  %v247 = vadd.f32 0.0, %v246
  %v248 = vpop.f32.mrf.mxu0
  %v249 = vadd.f32 0.0, %v248
  %250 = vmatmul.bf16.gmra.mxu0 %v209
  %v251 = vpop.f32.mrf.mxu0
  %v252 = vadd.f32 0.0, %v251
  %v253 = vpop.f32.mrf.mxu0
  %v254 = vadd.f32 0.0, %v253
  %255 = vmatmul.bf16.gmra.mxu0 %v212
  %v256 = vpop.f32.mrf.mxu0
  %v257 = vadd.f32 0.0, %v256
  %v258 = vpop.f32.mrf.mxu0
  %v259 = vadd.f32 0.0, %v258
  %260 = vmatmul.bf16.gmra.mxu0 %v215
  %v261 = vpop.f32.mrf.mxu0
  %v262 = vadd.f32 0.0, %v261
  %v263 = vpop.f32.mrf.mxu0
  %v264 = vadd.f32 0.0, %v263
  %265 = vdwg.mxu0
  %266 = vmatpush.bf16.msra.mxu0 0
  %267 = vmatpush.bf16.msra.mxu0 0
  %268 = vmatpush.bf16.msra.mxu0 0
  %269 = vmatpush.bf16.msra.mxu0 0
  %270 = vmatpush.bf16.msra.mxu0 %v183
  %271 = vmatpush.bf16.msra.mxu0 %v181
  %272 = vmatpush.bf16.msra.mxu0 %v179
  %273 = vmatpush.bf16.msra.mxu0 %v177
  %274 = vmatmul.bf16.gmra.mxu0 %v194
  %v275 = vpop.f32.mrf.mxu0
  %v276 = vadd.f32 0.0, %v275
  %v277 = vpop.f32.mrf.mxu0
  %v278 = vadd.f32 0.0, %v277
  %279 = vmatmul.bf16.gmra.mxu0 %v197
  %v280 = vpop.f32.mrf.mxu0
  %v281 = vadd.f32 0.0, %v280
  %v282 = vpop.f32.mrf.mxu0
  %v283 = vadd.f32 0.0, %v282
  %284 = vmatmul.bf16.gmra.mxu0 %v200
  %v285 = vpop.f32.mrf.mxu0
  %v286 = vadd.f32 0.0, %v285
  %v287 = vpop.f32.mrf.mxu0
  %v288 = vadd.f32 0.0, %v287
  %289 = vmatmul.bf16.gmra.mxu0 %v203
  %v290 = vpop.f32.mrf.mxu0
  %v291 = vadd.f32 0.0, %v290
  %v292 = vpop.f32.mrf.mxu0
  %v293 = vadd.f32 0.0, %v292
  %294 = vmatmul.bf16.gmra.mxu0 %v206
  %v295 = vpop.f32.mrf.mxu0
  %v296 = vadd.f32 0.0, %v295
  %v297 = vpop.f32.mrf.mxu0
  %v298 = vadd.f32 0.0, %v297
  %299 = vmatmul.bf16.gmra.mxu0 %v209
  %v300 = vpop.f32.mrf.mxu0
  %v301 = vadd.f32 0.0, %v300
  %v302 = vpop.f32.mrf.mxu0
  %v303 = vadd.f32 0.0, %v302
  %304 = vmatmul.bf16.gmra.mxu0 %v212
  %v305 = vpop.f32.mrf.mxu0
  %v306 = vadd.f32 0.0, %v305
  %v307 = vpop.f32.mrf.mxu0
  %v308 = vadd.f32 0.0, %v307
  %309 = vmatmul.bf16.gmra.mxu0 %v215
  %v310 = vpop.f32.mrf.mxu0
  %v311 = vadd.f32 0.0, %v310
  %v312 = vpop.f32.mrf.mxu0
  %v313 = vadd.f32 0.0, %v312
  %314 = vdwg.mxu0
  %v315 = vadd.f32 %v72, %v227
  %v316 = vadd.f32 %v73, %v276
  %v317 = vadd.f32 %v74, %v229
  %v318 = vadd.f32 %v75, %v278
  %v319 = vadd.f32 %v76, %v232
  %v320 = vadd.f32 %v77, %v281
  %v321 = vadd.f32 %v78, %v234
  %v322 = vadd.f32 %v79, %v283
  %v323 = vadd.f32 %v80, %v237
  %v324 = vadd.f32 %v81, %v286
  %v325 = vadd.f32 %v82, %v239
  %v326 = vadd.f32 %v83, %v288
  %v327 = vadd.f32 %v84, %v242
  %v328 = vadd.f32 %v85, %v291
  %v329 = vadd.f32 %v86, %v244
  %v330 = vadd.f32 %v87, %v293
  %v331 = vadd.f32 %v88, %v247
  %v332 = vadd.f32 %v89, %v296
  %v333 = vadd.f32 %v90, %v249
  %v334 = vadd.f32 %v91, %v298
  %v335 = vadd.f32 %v92, %v252
  %v336 = vadd.f32 %v93, %v301
  %v337 = vadd.f32 %v94, %v254
  %v338 = vadd.f32 %v95, %v303
  %v339 = vadd.f32 %v96, %v257
  %v340 = vadd.f32 %v97, %v306
  %v341 = vadd.f32 %v98, %v259
  %v342 = vadd.f32 %v99, %v308
  %v343 = vadd.f32 %v100, %v262
  %v344 = vadd.f32 %v101, %v311
  %v345 = vadd.f32 %v102, %v264
  %v346 = vadd.f32 %v103, %v313
  %347 = vst [vmem:[#allocation2] sm:$0xff] %v315
  %348 = vst [vmem:[#allocation2 + $0x8] sm:$0xff] %v316
  %349 = vst [vmem:[#allocation2 + $0x10] sm:$0xff] %v317
  %350 = vst [vmem:[#allocation2 + $0x18] sm:$0xff] %v318
  %351 = vst [vmem:[#allocation2 + $0x20] sm:$0xff] %v319
  %352 = vst [vmem:[#allocation2 + $0x28] sm:$0xff] %v320
  %353 = vst [vmem:[#allocation2 + $0x30] sm:$0xff] %v321
  %354 = vst [vmem:[#allocation2 + $0x38] sm:$0xff] %v322
  %355 = vst [vmem:[#allocation2 + $0x40] sm:$0xff] %v323
  %356 = vst [vmem:[#allocation2 + $0x48] sm:$0xff] %v324
  %357 = vst [vmem:[#allocation2 + $0x50] sm:$0xff] %v325
  %358 = vst [vmem:[#allocation2 + $0x58] sm:$0xff] %v326
  %359 = vst [vmem:[#allocation2 + $0x60] sm:$0xff] %v327
  %360 = vst [vmem:[#allocation2 + $0x68] sm:$0xff] %v328
  %361 = vst [vmem:[#allocation2 + $0x70] sm:$0xff] %v329
  %362 = vst [vmem:[#allocation2 + $0x78] sm:$0xff] %v330
  %363 = vst [vmem:[#allocation2 + $0x80] sm:$0xff] %v331
  %364 = vst [vmem:[#allocation2 + $0x88] sm:$0xff] %v332
  %365 = vst [vmem:[#allocation2 + $0x90] sm:$0xff] %v333
  %366 = vst [vmem:[#allocation2 + $0x98] sm:$0xff] %v334
  %367 = vst [vmem:[#allocation2 + $0xa0] sm:$0xff] %v335
  %368 = vst [vmem:[#allocation2 + $0xa8] sm:$0xff] %v336
  %369 = vst [vmem:[#allocation2 + $0xb0] sm:$0xff] %v337
  %370 = vst [vmem:[#allocation2 + $0xb8] sm:$0xff] %v338
  %371 = vst [vmem:[#allocation2 + $0xc0] sm:$0xff] %v339
  %372 = vst [vmem:[#allocation2 + $0xc8] sm:$0xff] %v340
  %373 = vst [vmem:[#allocation2 + $0xd0] sm:$0xff] %v341
  %374 = vst [vmem:[#allocation2 + $0xd8] sm:$0xff] %v342
  %375 = vst [vmem:[#allocation2 + $0xe0] sm:$0xff] %v343
  %376 = vst [vmem:[#allocation2 + $0xe8] sm:$0xff] %v344
  %377 = vst [vmem:[#allocation2 + $0xf0] sm:$0xff] %v345
  %378 = vst [vmem:[#allocation2 + $0xf8] sm:$0xff] %v346
  // Predicated region
  $region22: #{bottleneck_forward.8} parent=0 // pred_check
    %p379 = pneg %p20
  $region23: #{bottleneck_forward.8} parent=0 // pred_check_branch
    %381 = sbr.rel (%p379) target = $region25
  $region24: #{bottleneck_forward.8} parent=0 // pred_region
    %v382 = vld [vmem:[#allocation2] sm:$0xff]
    %v383 = vld [vmem:[#allocation2 + $0x8] sm:$0xff]
    %v384 = vld [vmem:[#allocation2 + $0x10] sm:$0xff]
    %v385 = vld [vmem:[#allocation2 + $0x18] sm:$0xff]
    %v386 = vld [vmem:[#allocation2 + $0x20] sm:$0xff]
    %v387 = vld [vmem:[#allocation2 + $0x28] sm:$0xff]
    %v388 = vld [vmem:[#allocation2 + $0x30] sm:$0xff]
    %v389 = vld [vmem:[#allocation2 + $0x38] sm:$0xff]
    %v390 = vld [vmem:[#allocation2 + $0x40] sm:$0xff]
    %v391 = vld [vmem:[#allocation2 + $0x48] sm:$0xff]
    %v392 = vld [vmem:[#allocation2 + $0x50] sm:$0xff]
    %v393 = vld [vmem:[#allocation2 + $0x58] sm:$0xff]
    %v394 = vld [vmem:[#allocation2 + $0x60] sm:$0xff]
    %v395 = vld [vmem:[#allocation2 + $0x68] sm:$0xff]
    %v396 = vld [vmem:[#allocation2 + $0x70] sm:$0xff]
    %v397 = vld [vmem:[#allocation2 + $0x78] sm:$0xff]
    %v398 = vld [vmem:[#allocation2 + $0x80] sm:$0xff]
    %v399 = vld [vmem:[#allocation2 + $0x88] sm:$0xff]
    %v400 = vld [vmem:[#allocation2 + $0x90] sm:$0xff]
    %v401 = vld [vmem:[#allocation2 + $0x98] sm:$0xff]
    %v402 = vld [vmem:[#allocation2 + $0xa0] sm:$0xff]
    %v403 = vld [vmem:[#allocation2 + $0xa8] sm:$0xff]
    %v404 = vld [vmem:[#allocation2 + $0xb0] sm:$0xff]
    %v405 = vld [vmem:[#allocation2 + $0xb8] sm:$0xff]
    %v406 = vld [vmem:[#allocation2 + $0xc0] sm:$0xff]
    %v407 = vld [vmem:[#allocation2 + $0xc8] sm:$0xff]
    %v408 = vld [vmem:[#allocation2 + $0xd0] sm:$0xff]
    %v409 = vld [vmem:[#allocation2 + $0xd8] sm:$0xff]
    %v410 = vld [vmem:[#allocation2 + $0xe0] sm:$0xff]
    %v411 = vld [vmem:[#allocation2 + $0xe8] sm:$0xff]
    %v412 = vld [vmem:[#allocation2 + $0xf0] sm:$0xff]
    %v413 = vld [vmem:[#allocation2 + $0xf8] sm:$0xff]
    %v414 = vpack.c.bf16 %v383, %v382
    %v415 = vpack.c.bf16 %v385, %v384
    %v416 = vpack.c.bf16 %v387, %v386
    %v417 = vpack.c.bf16 %v389, %v388
    %v418 = vpack.c.bf16 %v391, %v390
    %v419 = vpack.c.bf16 %v393, %v392
    %v420 = vpack.c.bf16 %v395, %v394
    %v421 = vpack.c.bf16 %v397, %v396
    %v422 = vpack.c.bf16 %v399, %v398
    %v423 = vpack.c.bf16 %v401, %v400
    %v424 = vpack.c.bf16 %v403, %v402
    %v425 = vpack.c.bf16 %v405, %v404
    %v426 = vpack.c.bf16 %v407, %v406
    %v427 = vpack.c.bf16 %v409, %v408
    %v428 = vpack.c.bf16 %v411, %v410
    %v429 = vpack.c.bf16 %v413, %v412
    %430 = vst [vmem:[%s4] sm:$0xff] %v414
    %431 = vst [vmem:[%s4 + $0x8] sm:$0xff] %v415
    %432 = vst [vmem:[%s4 + $0x10] sm:$0xff] %v416
    %433 = vst [vmem:[%s4 + $0x18] sm:$0xff] %v417
    %434 = vst [vmem:[%s4 + $0x20] sm:$0xff] %v418
    %435 = vst [vmem:[%s4 + $0x28] sm:$0xff] %v419
    %436 = vst [vmem:[%s4 + $0x30] sm:$0xff] %v420
    %437 = vst [vmem:[%s4 + $0x38] sm:$0xff] %v421
    %438 = vst [vmem:[%s4 + $0x40] sm:$0xff] %v422
    %439 = vst [vmem:[%s4 + $0x48] sm:$0xff] %v423
    %440 = vst [vmem:[%s4 + $0x50] sm:$0xff] %v424
    %441 = vst [vmem:[%s4 + $0x58] sm:$0xff] %v425
    %442 = vst [vmem:[%s4 + $0x60] sm:$0xff] %v426
    %443 = vst [vmem:[%s4 + $0x68] sm:$0xff] %v427
    %444 = vst [vmem:[%s4 + $0x70] sm:$0xff] %v428
    %445 = vst [vmem:[%s4 + $0x78] sm:$0xff] %v429
    %v446 = vadd.f32 %v382, %v384
    %v447 = vadd.f32 %v446, %v386
    %v448 = vadd.f32 %v447, %v388
    %v449 = vadd.f32 %v448, %v390
    %v450 = vadd.f32 %v449, %v392
    %v451 = vadd.f32 %v450, %v394
    %v452 = vadd.f32 %v451, %v396
    %v453 = vadd.f32 %v452, %v398
    %v454 = vadd.f32 %v453, %v400
    %v455 = vadd.f32 %v454, %v402
    %v456 = vadd.f32 %v455, %v404
    %v457 = vadd.f32 %v456, %v406
    %v458 = vadd.f32 %v457, %v408
    %v459 = vadd.f32 %v458, %v410
    %v460 = vadd.f32 %v459, %v412
    %v461 = vrot.slane %v460, 4
    %v462 = vadd.f32 %v460, %v461
    %v463 = vrot.slane %v462, 2
    %v464 = vadd.f32 %v462, %v463
    %v465 = vrot.slane %v464, 1
    %v466 = vadd.f32 %v464, %v465
    %v467 = vadd.f32 %v383, %v385
    %v468 = vadd.f32 %v467, %v387
    %v469 = vadd.f32 %v468, %v389
    %v470 = vadd.f32 %v469, %v391
    %v471 = vadd.f32 %v470, %v393
    %v472 = vadd.f32 %v471, %v395
    %v473 = vadd.f32 %v472, %v397
    %v474 = vadd.f32 %v473, %v399
    %v475 = vadd.f32 %v474, %v401
    %v476 = vadd.f32 %v475, %v403
    %v477 = vadd.f32 %v476, %v405
    %v478 = vadd.f32 %v477, %v407
    %v479 = vadd.f32 %v478, %v409
    %v480 = vadd.f32 %v479, %v411
    %v481 = vadd.f32 %v480, %v413
    %v482 = vrot.slane %v481, 4
    %v483 = vadd.f32 %v481, %v482
    %v484 = vrot.slane %v483, 2
    %v485 = vadd.f32 %v483, %v484
    %v486 = vrot.slane %v485, 1
    %v487 = vadd.f32 %v485, %v486
    %v488 = vmul.f32 %v382, %v382
    %v489 = vmul.f32 %v383, %v383
    %v490 = vmul.f32 %v384, %v384
    %v491 = vmul.f32 %v385, %v385
    %v492 = vmul.f32 %v386, %v386
    %v493 = vmul.f32 %v387, %v387
    %v494 = vmul.f32 %v388, %v388
    %v495 = vmul.f32 %v389, %v389
    %v496 = vmul.f32 %v390, %v390
    %v497 = vmul.f32 %v391, %v391
    %v498 = vmul.f32 %v392, %v392
    %v499 = vmul.f32 %v393, %v393
    %v500 = vmul.f32 %v394, %v394
    %v501 = vmul.f32 %v395, %v395
    %v502 = vmul.f32 %v396, %v396
    %v503 = vmul.f32 %v397, %v397
    %v504 = vmul.f32 %v398, %v398
    %v505 = vmul.f32 %v399, %v399
    %v506 = vmul.f32 %v400, %v400
    %v507 = vmul.f32 %v401, %v401
    %v508 = vmul.f32 %v402, %v402
    %v509 = vmul.f32 %v403, %v403
    %v510 = vmul.f32 %v404, %v404
    %v511 = vmul.f32 %v405, %v405
    %v512 = vmul.f32 %v406, %v406
    %v513 = vmul.f32 %v407, %v407
    %v514 = vmul.f32 %v408, %v408
    %v515 = vmul.f32 %v409, %v409
    %v516 = vmul.f32 %v410, %v410
    %v517 = vmul.f32 %v411, %v411
    %v518 = vmul.f32 %v412, %v412
    %v519 = vmul.f32 %v413, %v413
    %v520 = vadd.f32 %v488, %v490
    %v521 = vadd.f32 %v520, %v492
    %v522 = vadd.f32 %v521, %v494
    %v523 = vadd.f32 %v522, %v496
    %v524 = vadd.f32 %v523, %v498
    %v525 = vadd.f32 %v524, %v500
    %v526 = vadd.f32 %v525, %v502
    %v527 = vadd.f32 %v526, %v504
    %v528 = vadd.f32 %v527, %v506
    %v529 = vadd.f32 %v528, %v508
    %v530 = vadd.f32 %v529, %v510
    %v531 = vadd.f32 %v530, %v512
    %v532 = vadd.f32 %v531, %v514
    %v533 = vadd.f32 %v532, %v516
    %v534 = vadd.f32 %v533, %v518
    %v535 = vrot.slane %v534, 4
    %v536 = vadd.f32 %v534, %v535
    %v537 = vrot.slane %v536, 2
    %v538 = vadd.f32 %v536, %v537
    %v539 = vrot.slane %v538, 1
    %v540 = vadd.f32 %v538, %v539
    %v541 = vadd.f32 %v489, %v491
    %v542 = vadd.f32 %v541, %v493
    %v543 = vadd.f32 %v542, %v495
    %v544 = vadd.f32 %v543, %v497
    %v545 = vadd.f32 %v544, %v499
    %v546 = vadd.f32 %v545, %v501
    %v547 = vadd.f32 %v546, %v503
    %v548 = vadd.f32 %v547, %v505
    %v549 = vadd.f32 %v548, %v507
    %v550 = vadd.f32 %v549, %v509
    %v551 = vadd.f32 %v550, %v511
    %v552 = vadd.f32 %v551, %v513
    %v553 = vadd.f32 %v552, %v515
    %v554 = vadd.f32 %v553, %v517
    %v555 = vadd.f32 %v554, %v519
    %v556 = vrot.slane %v555, 4
    %v557 = vadd.f32 %v555, %v556
    %v558 = vrot.slane %v557, 2
    %v559 = vadd.f32 %v557, %v558
    %v560 = vrot.slane %v559, 1
    %v561 = vadd.f32 %v559, %v560
    %vm562 = vcmask 1040384
    %v563 = vsel %vm562, %v466, %v540
    %v564 = vsel %vm562, %v487, %v561
    %v567 = vrot.slane %v564, 6
    %vm568 = vcmask 1041408
    %v569 = vsel %vm568, %v563, %v567
    %571 = vst [vmem:[%s5] sm:$0xf] %v569
  $region25: #{bottleneck_forward.8} parent=0 // pred_fallthru
    _
  // Predicated region
  $region26: #{bottleneck_forward.8} parent=0 // pred_check
    _
  $region27: #{bottleneck_forward.8} parent=0 // pred_check_branch
    %573 = sbr.rel (0) target = $region29
  $region28: #{bottleneck_forward.8} parent=0 // pred_region
    _
  $region29: #{bottleneck_forward.8} parent=0 // pred_fallthru
    _
  // Predicated region
  $region30: #{bottleneck_forward.8} parent=0 // pred_check
    _
  $region31: #{bottleneck_forward.8} parent=0 // pred_check_branch
    %575 = sbr.rel (0) target = $region33
  $region32: #{bottleneck_forward.8} parent=0 // pred_region
    _
  $region33: #{bottleneck_forward.8} parent=0 // pred_fallthru
    _
  // Predicated region
  $region34: #{bottleneck_forward.8} parent=0 // pred_check
    _
  $region35: #{bottleneck_forward.8} parent=0 // pred_check_branch
    %577 = sbr.rel (0) target = $region37
  $region36: #{bottleneck_forward.8} parent=0 // pred_region
    _
  $region37: #{bottleneck_forward.8} parent=0 // pred_fallthru
    _
  // Predicated region
  $region38: #{bottleneck_forward.8} parent=0 // pred_check
    _
  $region39: #{bottleneck_forward.8} parent=0 // pred_check_branch
    %579 = sbr.rel (0) target = $region41
  $region40: #{bottleneck_forward.8} parent=0 // pred_region
    _
  $region41: #{bottleneck_forward.8} parent=0 // pred_fallthru
    _

// kernel: bottleneck_forward.9
$region0: #{bottleneck_forward.9}
  #allocation0 [shape = 'u32[]', space=smem, size = 0x4, offset = 0x4, fixed_abs, tag = 'smem constant byte address 0x4 - core index']
  #allocation1 [shape = 'u32[72,128]{1,0:T(1,128)}', space=vmem, size = 0x9000, scoped, tag = 'internal scratch']
  %s0 = inlined_call_operand.vmem [shape: bf16[128,256], index: 0, kind: input, shape index: {}]
  %s1 = inlined_call_operand.vmem [shape: bf16[128,256], index: 1, kind: input, shape index: {}]
  %s2 = inlined_call_operand.vmem [shape: f32[1,256], index: 2, kind: input, shape index: {}]
  %s3 = inlined_call_operand.vmem [shape: f32[1,256], index: 3, kind: input, shape index: {}]
  %s4 = inlined_call_operand.vmem [shape: f32[1,256], index: 4, kind: input, shape index: {}]
  %s5 = inlined_call_operand.vmem [shape: f32[1,256], index: 5, kind: input, shape index: {}]
  %s6 = inlined_call_operand.hbm [shape: f32[128,256], index: 6, kind: output, shape index: {}]
  %s7 = sld [smem:[#allocation0]]
  $region34: #{bottleneck_forward.9} parent=0
    _
  %s9 = ssub.s32 1, %s7
  %s10 = scalar_select 0, %s9, %s7
  $region1: #{bottleneck_forward.9} parent=0
    #allocation2 [shape = 'u8[131072]{0}', space=vmem, size = 0x20000, scoped, tag = 'output window, operand 0, single buffered']
    #allocation3 [shape = 's32[1]{0}', space=sflag, size = 0x4, scoped, tag = 'scoped memory for bottleneck_forward.9']
    %11 = vsyncpa [#allocation3], 0
    // Predicated region
    $region2: #{bottleneck_forward.9} parent=1 // pred_check
      _
    $region3: #{bottleneck_forward.9} parent=1 // pred_check_branch
      %13 = sbr.rel (0) target = $region5
    $region4: #{bottleneck_forward.9} parent=1 // pred_region
      _
    $region5: #{bottleneck_forward.9} parent=1 // pred_fallthru
      _
    // Predicated region
    $region6: #{bottleneck_forward.9} parent=1 // pred_check
      _
    $region7: #{bottleneck_forward.9} parent=1 // pred_check_branch
      %15 = sbr.rel (0) target = $region9
    $region8: #{bottleneck_forward.9} parent=1 // pred_region
      _
    $region9: #{bottleneck_forward.9} parent=1 // pred_fallthru
      _
    // Predicated region
    $region10: #{bottleneck_forward.9} parent=1 // pred_check
      _
    $region11: #{bottleneck_forward.9} parent=1 // pred_check_branch
      %17 = sbr.rel (0) target = $region13
    $region12: #{bottleneck_forward.9} parent=1 // pred_region
      _
    $region13: #{bottleneck_forward.9} parent=1 // pred_fallthru
      _
    // Predicated region
    $region14: #{bottleneck_forward.9} parent=1 // pred_check
      _
    $region15: #{bottleneck_forward.9} parent=1 // pred_check_branch
      %19 = sbr.rel (0) target = $region17
    $region16: #{bottleneck_forward.9} parent=1 // pred_region
      _
    $region17: #{bottleneck_forward.9} parent=1 // pred_fallthru
      _
    // Predicated region
    $region18: #{bottleneck_forward.9} parent=1 // pred_check
      _
    $region19: #{bottleneck_forward.9} parent=1 // pred_check_branch
      %21 = sbr.rel (0) target = $region21
    $region20: #{bottleneck_forward.9} parent=1 // pred_region
      _
    $region21: #{bottleneck_forward.9} parent=1 // pred_fallthru
      _
    // Predicated region
    $region22: #{bottleneck_forward.9} parent=1 // pred_check
      _
    $region23: #{bottleneck_forward.9} parent=1 // pred_check_branch
      %23 = sbr.rel (0) target = $region25
    $region24: #{bottleneck_forward.9} parent=1 // pred_region
      _
    $region25: #{bottleneck_forward.9} parent=1 // pred_fallthru
      _
    %v24 = vld [vmem:[%s0] sm:$0xff]
    %v25 = vld [vmem:[%s0 + $0x8] sm:$0xff]
    %v26 = vld [vmem:[%s0 + $0x10] sm:$0xff]
    %v27 = vld [vmem:[%s0 + $0x18] sm:$0xff]
    %v28 = vld [vmem:[%s0 + $0x20] sm:$0xff]
    %v29 = vld [vmem:[%s0 + $0x28] sm:$0xff]
    %v30 = vld [vmem:[%s0 + $0x30] sm:$0xff]
    %v31 = vld [vmem:[%s0 + $0x38] sm:$0xff]
    %v32 = vld [vmem:[%s0 + $0x40] sm:$0xff]
    %v33 = vld [vmem:[%s0 + $0x48] sm:$0xff]
    %v34 = vld [vmem:[%s0 + $0x50] sm:$0xff]
    %v35 = vld [vmem:[%s0 + $0x58] sm:$0xff]
    %v36 = vld [vmem:[%s0 + $0x60] sm:$0xff]
    %v37 = vld [vmem:[%s0 + $0x68] sm:$0xff]
    %v38 = vld [vmem:[%s0 + $0x70] sm:$0xff]
    %v39 = vld [vmem:[%s0 + $0x78] sm:$0xff]
    %v40 = vunpack.c.l.bf16 %v24
    %v41 = vunpack.c.h.bf16 %v24
    %v42 = vunpack.c.l.bf16 %v25
    %v43 = vunpack.c.h.bf16 %v25
    %v44 = vunpack.c.l.bf16 %v26
    %v45 = vunpack.c.h.bf16 %v26
    %v46 = vunpack.c.l.bf16 %v27
    %v47 = vunpack.c.h.bf16 %v27
    %v48 = vunpack.c.l.bf16 %v28
    %v49 = vunpack.c.h.bf16 %v28
    %v50 = vunpack.c.l.bf16 %v29
    %v51 = vunpack.c.h.bf16 %v29
    %v52 = vunpack.c.l.bf16 %v30
    %v53 = vunpack.c.h.bf16 %v30
    %v54 = vunpack.c.l.bf16 %v31
    %v55 = vunpack.c.h.bf16 %v31
    %v56 = vunpack.c.l.bf16 %v32
    %v57 = vunpack.c.h.bf16 %v32
    %v58 = vunpack.c.l.bf16 %v33
    %v59 = vunpack.c.h.bf16 %v33
    %v60 = vunpack.c.l.bf16 %v34
    %v61 = vunpack.c.h.bf16 %v34
    %v62 = vunpack.c.l.bf16 %v35
    %v63 = vunpack.c.h.bf16 %v35
    %v64 = vunpack.c.l.bf16 %v36
    %v65 = vunpack.c.h.bf16 %v36
    %v66 = vunpack.c.l.bf16 %v37
    %v67 = vunpack.c.h.bf16 %v37
    %v68 = vunpack.c.l.bf16 %v38
    %v69 = vunpack.c.h.bf16 %v38
    %v70 = vunpack.c.l.bf16 %v39
    %v71 = vunpack.c.h.bf16 %v39
    %v72 = vld [vmem:[%s2] sm:$0x3]
    %v74 = vperm.slane %v72, 0
    %v75 = vperm.slane %v72, 1
    %v78 = vmul.f32 %v40, %v74
    %v79 = vmul.f32 %v41, %v75
    %v80 = vmul.f32 %v42, %v74
    %v81 = vmul.f32 %v43, %v75
    %v82 = vmul.f32 %v44, %v74
    %v83 = vmul.f32 %v45, %v75
    %v84 = vmul.f32 %v46, %v74
    %v85 = vmul.f32 %v47, %v75
    %v86 = vmul.f32 %v48, %v74
    %v87 = vmul.f32 %v49, %v75
    %v88 = vmul.f32 %v50, %v74
    %v89 = vmul.f32 %v51, %v75
    %v90 = vmul.f32 %v52, %v74
    %v91 = vmul.f32 %v53, %v75
    %v92 = vmul.f32 %v54, %v74
    %v93 = vmul.f32 %v55, %v75
    %v94 = vmul.f32 %v56, %v74
    %v95 = vmul.f32 %v57, %v75
    %v96 = vmul.f32 %v58, %v74
    %v97 = vmul.f32 %v59, %v75
    %v98 = vmul.f32 %v60, %v74
    %v99 = vmul.f32 %v61, %v75
    %v100 = vmul.f32 %v62, %v74
    %v101 = vmul.f32 %v63, %v75
    %v102 = vmul.f32 %v64, %v74
    %v103 = vmul.f32 %v65, %v75
    %v104 = vmul.f32 %v66, %v74
    %v105 = vmul.f32 %v67, %v75
    %v106 = vmul.f32 %v68, %v74
    %v107 = vmul.f32 %v69, %v75
    %v108 = vmul.f32 %v70, %v74
    %v109 = vmul.f32 %v71, %v75
    %v110 = vld [vmem:[%s3] sm:$0x3]
    %v112 = vperm.slane %v110, 0
    %v113 = vperm.slane %v110, 1
    %v116 = vadd.f32 %v78, %v112
    %v117 = vadd.f32 %v79, %v113
    %v118 = vadd.f32 %v80, %v112
    %v119 = vadd.f32 %v81, %v113
    %v120 = vadd.f32 %v82, %v112
    %v121 = vadd.f32 %v83, %v113
    %v122 = vadd.f32 %v84, %v112
    %v123 = vadd.f32 %v85, %v113
    %v124 = vadd.f32 %v86, %v112
    %v125 = vadd.f32 %v87, %v113
    %v126 = vadd.f32 %v88, %v112
    %v127 = vadd.f32 %v89, %v113
    %v128 = vadd.f32 %v90, %v112
    %v129 = vadd.f32 %v91, %v113
    %v130 = vadd.f32 %v92, %v112
    %v131 = vadd.f32 %v93, %v113
    %v132 = vadd.f32 %v94, %v112
    %v133 = vadd.f32 %v95, %v113
    %v134 = vadd.f32 %v96, %v112
    %v135 = vadd.f32 %v97, %v113
    %v136 = vadd.f32 %v98, %v112
    %v137 = vadd.f32 %v99, %v113
    %v138 = vadd.f32 %v100, %v112
    %v139 = vadd.f32 %v101, %v113
    %v140 = vadd.f32 %v102, %v112
    %v141 = vadd.f32 %v103, %v113
    %v142 = vadd.f32 %v104, %v112
    %v143 = vadd.f32 %v105, %v113
    %v144 = vadd.f32 %v106, %v112
    %v145 = vadd.f32 %v107, %v113
    %v146 = vadd.f32 %v108, %v112
    %v147 = vadd.f32 %v109, %v113
    %v148 = vld [vmem:[%s1] sm:$0xff]
    %v149 = vld [vmem:[%s1 + $0x8] sm:$0xff]
    %v150 = vld [vmem:[%s1 + $0x10] sm:$0xff]
    %v151 = vld [vmem:[%s1 + $0x18] sm:$0xff]
    %v152 = vld [vmem:[%s1 + $0x20] sm:$0xff]
    %v153 = vld [vmem:[%s1 + $0x28] sm:$0xff]
    %v154 = vld [vmem:[%s1 + $0x30] sm:$0xff]
    %v155 = vld [vmem:[%s1 + $0x38] sm:$0xff]
    %v156 = vld [vmem:[%s1 + $0x40] sm:$0xff]
    %v157 = vld [vmem:[%s1 + $0x48] sm:$0xff]
    %v158 = vld [vmem:[%s1 + $0x50] sm:$0xff]
    %v159 = vld [vmem:[%s1 + $0x58] sm:$0xff]
    %v160 = vld [vmem:[%s1 + $0x60] sm:$0xff]
    %v161 = vld [vmem:[%s1 + $0x68] sm:$0xff]
    %v162 = vld [vmem:[%s1 + $0x70] sm:$0xff]
    %v163 = vld [vmem:[%s1 + $0x78] sm:$0xff]
    %v164 = vunpack.c.l.bf16 %v148
    %v165 = vunpack.c.h.bf16 %v148
    %v166 = vunpack.c.l.bf16 %v149
    %v167 = vunpack.c.h.bf16 %v149
    %v168 = vunpack.c.l.bf16 %v150
    %v169 = vunpack.c.h.bf16 %v150
    %v170 = vunpack.c.l.bf16 %v151
    %v171 = vunpack.c.h.bf16 %v151
    %v172 = vunpack.c.l.bf16 %v152
    %v173 = vunpack.c.h.bf16 %v152
    %v174 = vunpack.c.l.bf16 %v153
    %v175 = vunpack.c.h.bf16 %v153
    %v176 = vunpack.c.l.bf16 %v154
    %v177 = vunpack.c.h.bf16 %v154
    %v178 = vunpack.c.l.bf16 %v155
    %v179 = vunpack.c.h.bf16 %v155
    %v180 = vunpack.c.l.bf16 %v156
    %v181 = vunpack.c.h.bf16 %v156
    %v182 = vunpack.c.l.bf16 %v157
    %v183 = vunpack.c.h.bf16 %v157
    %v184 = vunpack.c.l.bf16 %v158
    %v185 = vunpack.c.h.bf16 %v158
    %v186 = vunpack.c.l.bf16 %v159
    %v187 = vunpack.c.h.bf16 %v159
    %v188 = vunpack.c.l.bf16 %v160
    %v189 = vunpack.c.h.bf16 %v160
    %v190 = vunpack.c.l.bf16 %v161
    %v191 = vunpack.c.h.bf16 %v161
    %v192 = vunpack.c.l.bf16 %v162
    %v193 = vunpack.c.h.bf16 %v162
    %v194 = vunpack.c.l.bf16 %v163
    %v195 = vunpack.c.h.bf16 %v163
    %v196 = vld [vmem:[%s4] sm:$0x3]
    %v198 = vperm.slane %v196, 0
    %v199 = vperm.slane %v196, 1
    %v202 = vmul.f32 %v164, %v198
    %v203 = vmul.f32 %v165, %v199
    %v204 = vmul.f32 %v166, %v198
    %v205 = vmul.f32 %v167, %v199
    %v206 = vmul.f32 %v168, %v198
    %v207 = vmul.f32 %v169, %v199
    %v208 = vmul.f32 %v170, %v198
    %v209 = vmul.f32 %v171, %v199
    %v210 = vmul.f32 %v172, %v198
    %v211 = vmul.f32 %v173, %v199
    %v212 = vmul.f32 %v174, %v198
    %v213 = vmul.f32 %v175, %v199
    %v214 = vmul.f32 %v176, %v198
    %v215 = vmul.f32 %v177, %v199
    %v216 = vmul.f32 %v178, %v198
    %v217 = vmul.f32 %v179, %v199
    %v218 = vmul.f32 %v180, %v198
    %v219 = vmul.f32 %v181, %v199
    %v220 = vmul.f32 %v182, %v198
    %v221 = vmul.f32 %v183, %v199
    %v222 = vmul.f32 %v184, %v198
    %v223 = vmul.f32 %v185, %v199
    %v224 = vmul.f32 %v186, %v198
    %v225 = vmul.f32 %v187, %v199
    %v226 = vmul.f32 %v188, %v198
    %v227 = vmul.f32 %v189, %v199
    %v228 = vmul.f32 %v190, %v198
    %v229 = vmul.f32 %v191, %v199
    %v230 = vmul.f32 %v192, %v198
    %v231 = vmul.f32 %v193, %v199
    %v232 = vmul.f32 %v194, %v198
    %v233 = vmul.f32 %v195, %v199
    %v234 = vld [vmem:[%s5] sm:$0x3]
    %v236 = vperm.slane %v234, 0
    %v237 = vperm.slane %v234, 1
    %v240 = vadd.f32 %v202, %v236
    %v241 = vadd.f32 %v203, %v237
    %v242 = vadd.f32 %v204, %v236
    %v243 = vadd.f32 %v205, %v237
    %v244 = vadd.f32 %v206, %v236
    %v245 = vadd.f32 %v207, %v237
    %v246 = vadd.f32 %v208, %v236
    %v247 = vadd.f32 %v209, %v237
    %v248 = vadd.f32 %v210, %v236
    %v249 = vadd.f32 %v211, %v237
    %v250 = vadd.f32 %v212, %v236
    %v251 = vadd.f32 %v213, %v237
    %v252 = vadd.f32 %v214, %v236
    %v253 = vadd.f32 %v215, %v237
    %v254 = vadd.f32 %v216, %v236
    %v255 = vadd.f32 %v217, %v237
    %v256 = vadd.f32 %v218, %v236
    %v257 = vadd.f32 %v219, %v237
    %v258 = vadd.f32 %v220, %v236
    %v259 = vadd.f32 %v221, %v237
    %v260 = vadd.f32 %v222, %v236
    %v261 = vadd.f32 %v223, %v237
    %v262 = vadd.f32 %v224, %v236
    %v263 = vadd.f32 %v225, %v237
    %v264 = vadd.f32 %v226, %v236
    %v265 = vadd.f32 %v227, %v237
    %v266 = vadd.f32 %v228, %v236
    %v267 = vadd.f32 %v229, %v237
    %v268 = vadd.f32 %v230, %v236
    %v269 = vadd.f32 %v231, %v237
    %v270 = vadd.f32 %v232, %v236
    %v271 = vadd.f32 %v233, %v237
    %v272 = vadd.f32 %v116, %v240
    %v273 = vadd.f32 %v117, %v241
    %v274 = vadd.f32 %v118, %v242
    %v275 = vadd.f32 %v119, %v243
    %v276 = vadd.f32 %v120, %v244
    %v277 = vadd.f32 %v121, %v245
    %v278 = vadd.f32 %v122, %v246
    %v279 = vadd.f32 %v123, %v247
    %v280 = vadd.f32 %v124, %v248
    %v281 = vadd.f32 %v125, %v249
    %v282 = vadd.f32 %v126, %v250
    %v283 = vadd.f32 %v127, %v251
    %v284 = vadd.f32 %v128, %v252
    %v285 = vadd.f32 %v129, %v253
    %v286 = vadd.f32 %v130, %v254
    %v287 = vadd.f32 %v131, %v255
    %v288 = vadd.f32 %v132, %v256
    %v289 = vadd.f32 %v133, %v257
    %v290 = vadd.f32 %v134, %v258
    %v291 = vadd.f32 %v135, %v259
    %v292 = vadd.f32 %v136, %v260
    %v293 = vadd.f32 %v137, %v261
    %v294 = vadd.f32 %v138, %v262
    %v295 = vadd.f32 %v139, %v263
    %v296 = vadd.f32 %v140, %v264
    %v297 = vadd.f32 %v141, %v265
    %v298 = vadd.f32 %v142, %v266
    %v299 = vadd.f32 %v143, %v267
    %v300 = vadd.f32 %v144, %v268
    %v301 = vadd.f32 %v145, %v269
    %v302 = vadd.f32 %v146, %v270
    %v303 = vadd.f32 %v147, %v271
    %v304 = vmax.f32 %v272, 0.0
    %v305 = vmax.f32 %v273, 0.0
    %v306 = vmax.f32 %v274, 0.0
    %v307 = vmax.f32 %v275, 0.0
    %v308 = vmax.f32 %v276, 0.0
    %v309 = vmax.f32 %v277, 0.0
    %v310 = vmax.f32 %v278, 0.0
    %v311 = vmax.f32 %v279, 0.0
    %v312 = vmax.f32 %v280, 0.0
    %v313 = vmax.f32 %v281, 0.0
    %v314 = vmax.f32 %v282, 0.0
    %v315 = vmax.f32 %v283, 0.0
    %v316 = vmax.f32 %v284, 0.0
    %v317 = vmax.f32 %v285, 0.0
    %v318 = vmax.f32 %v286, 0.0
    %v319 = vmax.f32 %v287, 0.0
    %v320 = vmax.f32 %v288, 0.0
    %v321 = vmax.f32 %v289, 0.0
    %v322 = vmax.f32 %v290, 0.0
    %v323 = vmax.f32 %v291, 0.0
    %v324 = vmax.f32 %v292, 0.0
    %v325 = vmax.f32 %v293, 0.0
    %v326 = vmax.f32 %v294, 0.0
    %v327 = vmax.f32 %v295, 0.0
    %v328 = vmax.f32 %v296, 0.0
    %v329 = vmax.f32 %v297, 0.0
    %v330 = vmax.f32 %v298, 0.0
    %v331 = vmax.f32 %v299, 0.0
    %v332 = vmax.f32 %v300, 0.0
    %v333 = vmax.f32 %v301, 0.0
    %v334 = vmax.f32 %v302, 0.0
    %v335 = vmax.f32 %v303, 0.0
    %336 = vst [vmem:[#allocation2] sm:$0xff] %v304
    %337 = vst [vmem:[#allocation2 + $0x8] sm:$0xff] %v305
    %338 = vst [vmem:[#allocation2 + $0x10] sm:$0xff] %v306
    %339 = vst [vmem:[#allocation2 + $0x18] sm:$0xff] %v307
    %340 = vst [vmem:[#allocation2 + $0x20] sm:$0xff] %v308
    %341 = vst [vmem:[#allocation2 + $0x28] sm:$0xff] %v309
    %342 = vst [vmem:[#allocation2 + $0x30] sm:$0xff] %v310
    %343 = vst [vmem:[#allocation2 + $0x38] sm:$0xff] %v311
    %344 = vst [vmem:[#allocation2 + $0x40] sm:$0xff] %v312
    %345 = vst [vmem:[#allocation2 + $0x48] sm:$0xff] %v313
    %346 = vst [vmem:[#allocation2 + $0x50] sm:$0xff] %v314
    %347 = vst [vmem:[#allocation2 + $0x58] sm:$0xff] %v315
    %348 = vst [vmem:[#allocation2 + $0x60] sm:$0xff] %v316
    %349 = vst [vmem:[#allocation2 + $0x68] sm:$0xff] %v317
    %350 = vst [vmem:[#allocation2 + $0x70] sm:$0xff] %v318
    %351 = vst [vmem:[#allocation2 + $0x78] sm:$0xff] %v319
    %352 = vst [vmem:[#allocation2 + $0x80] sm:$0xff] %v320
    %353 = vst [vmem:[#allocation2 + $0x88] sm:$0xff] %v321
    %354 = vst [vmem:[#allocation2 + $0x90] sm:$0xff] %v322
    %355 = vst [vmem:[#allocation2 + $0x98] sm:$0xff] %v323
    %356 = vst [vmem:[#allocation2 + $0xa0] sm:$0xff] %v324
    %357 = vst [vmem:[#allocation2 + $0xa8] sm:$0xff] %v325
    %358 = vst [vmem:[#allocation2 + $0xb0] sm:$0xff] %v326
    %359 = vst [vmem:[#allocation2 + $0xb8] sm:$0xff] %v327
    %360 = vst [vmem:[#allocation2 + $0xc0] sm:$0xff] %v328
    %361 = vst [vmem:[#allocation2 + $0xc8] sm:$0xff] %v329
    %362 = vst [vmem:[#allocation2 + $0xd0] sm:$0xff] %v330
    %363 = vst [vmem:[#allocation2 + $0xd8] sm:$0xff] %v331
    %364 = vst [vmem:[#allocation2 + $0xe0] sm:$0xff] %v332
    %365 = vst [vmem:[#allocation2 + $0xe8] sm:$0xff] %v333
    %366 = vst [vmem:[#allocation2 + $0xf0] sm:$0xff] %v334
    %367 = vst [vmem:[#allocation2 + $0xf8] sm:$0xff] %v335
    // Predicated region
    $region26: #{bottleneck_forward.9} parent=1 // pred_check
      _
    $region27: #{bottleneck_forward.9} parent=1 // pred_check_branch
      %369 = sbr.rel (0) target = $region29
    $region28: #{bottleneck_forward.9} parent=1 // pred_region
      %371 = vsyncadd [#allocation3], 0
      %s372 = sshll.u32 [#allocation2], 4
      %s373 = int_to_ptr.vmem [resolvable:$true] %s372
      %s374 = sshll.u32 %s6, 4
      %s375 = int_to_ptr.hbm [resolvable:$true] %s374
      %380 = dma.vmem_to_hbm [thread:$0]  %s373, 4096, %s375, [#allocation3], 256, 256, 16
    $region29: #{bottleneck_forward.9} parent=1 // pred_fallthru
      _
    // Predicated region
    $region30: #{bottleneck_forward.9} parent=1 // pred_check
      _
    $region31: #{bottleneck_forward.9} parent=1 // pred_check_branch
      %382 = sbr.rel (0) target = $region33
    $region32: #{bottleneck_forward.9} parent=1 // pred_region
      %384 = dma.done [#allocation3], 4096
    $region33: #{bottleneck_forward.9} parent=1 // pred_fallthru
      _
    %385 = vsyncpa [#allocation3], 1

// kernel: bottleneck_forward.6
$region0: #{bottleneck_forward.6}
  #allocation0 [shape = 'u32[]', space=smem, size = 0x4, offset = 0x4, fixed_abs, tag = 'smem constant byte address 0x4 - core index']
  #allocation1 [shape = 'u32[72,128]{1,0:T(1,128)}', space=vmem, size = 0x9000, scoped, tag = 'internal scratch']
  #allocation2 [shape = 'f32[64,64]{1,0:T(8,128)}', space=vmem, size = 0x8000, scoped, tag = 'scratch operand']
  %s0 = inlined_call_operand.vmem [shape: bf16[8,9,9,64], index: 0, kind: input, shape index: {}]
  %s1 = inlined_call_operand.vmem [shape: bf16[4,9,9,1], index: 1, kind: input, shape index: {}]
  %s2 = inlined_call_operand.vmem [shape: bf16[9,64,64], index: 2, kind: input, shape index: {}]
  %s3 = inlined_call_operand.vmem [shape: f32[1,64], index: 3, kind: input, shape index: {}]
  %s4 = inlined_call_operand.vmem [shape: f32[1,64], index: 4, kind: input, shape index: {}]
  %s5 = inlined_call_operand.vmem [shape: bf16[2,64,64], index: 5, kind: output, shape index: {0}]
  %s6 = inlined_call_operand.vmem [shape: f32[2,2,64], index: 6, kind: output, shape index: {1}]
  %7 = xla_tuple %s5, %s6
  %s8 = sld [smem:[#allocation0]]
  $region61: #{bottleneck_forward.6} parent=0
    _
  %s10 = ssub.s32 1, %s8
  %s11 = scalar_select 0, %s10, %s8
  loop: start=0, step=1, limit=4
  $region2: #{bottleneck_forward.6} parent=0 // loop_pre_header
    _
  $region3: #{bottleneck_forward.6} parent=0 // loop_header
    %s13 = sphi 0, %s17
    %p14 = scmp.ge.s32.totalorder %s13, 4
    %s20 = sphi 0, %s32
    %s21 = sphi 0, %s28
    %s22 = sphi 0, %s20
    %s23 = sphi 0, %s21
    %s24 = sphi 0, %s22
    %s25 = sphi 0, %s23
    %s35 = sphi 0, %s37
    %s38 = sphi 0, %s35
    %s39 = sphi 0, %s38
    %s55 = sphi 0, %s39
    %s59 = sphi 0, %s59
    %s61 = sphi 0, %s59
    %s62 = sphi 0, %s61
    %s76 = sphi 0, %s62
    %s80 = sphi 0, %s80
    %s82 = sphi 0, %s80
    %s83 = sphi 0, %s82
    %s97 = sphi 0, %s83
    %s101 = sphi 0, %s101
    %s103 = sphi 0, %s101
    %s104 = sphi 0, %s103
    %s118 = sphi 0, %s104
    %s122 = sphi 0, %s122
    %s124 = sphi 0, %s122
    %s125 = sphi 0, %s124
    %s139 = sphi 0, %s125
    %s147 = sphi 0, %s149
    %s150 = sphi 0, %s147
    %s151 = sphi 0, %s150
    %s167 = sphi 0, %s151
    %s175 = sphi 0, %s177
    %s178 = sphi 0, %s175
    %s179 = sphi 0, %s178
    %s195 = sphi 0, %s179
  $region4: #{bottleneck_forward.6} parent=0 // loop_header_branch
    %16 = sbr.rel (%p14) target = $region8
  $region5: #{bottleneck_forward.6} parent=0 // loop_body
    %s18 = ssub.s32 %s13, 1
    %s19 = ssub.s32 %s13, 2
    %s26 = sadd.s32 1, %s21
    %p27 = scmp.ge.s32.totalorder %s26, 1
    %s28 = scalar_select %p27, 0, %s26
    %s29 = sadd.s32 1, %s20
    %s30 = scalar_select %p27, %s29, %s20
    %p31 = scmp.ge.s32.totalorder %s30, 2
    %s32 = scalar_select %p31, 0, %s30
    %s33 = ssub.s32 %s20, %s32
    %p34 = scmp.eq.s32.totalorder %s33, 0
    %s36 = sadd.s32 %s35, 1
    %s37 = scalar_select %p34, %s35, %s36
    %p40 = pneg %p34
    %p41 = scmp.eq.s32.totalorder %s13, 1
    %p42 = por %p40, %p41
    %p43 = scmp.ne.s32.totalorder %s35, %s38
    %p44 = scmp.eq.s32.totalorder %s13, 0
    %p45 = por %p43, %p44
    %p46 = scmp.ne.s32.totalorder %s35, %s38
    %p47 = scmp.eq.s32.totalorder %s18, 1
    %p48 = por %p46, %p47
    %p49 = scmp.ne.s32.totalorder %s38, %s39
    %p50 = scmp.eq.s32.totalorder %s18, 0
    %p51 = por %p49, %p50
    %p52 = scmp.ne.s32.totalorder %s38, %s39
    %p53 = scmp.eq.s32.totalorder %s19, 1
    %p54 = por %p52, %p53
    %p56 = scmp.ne.s32.totalorder %s39, %s55
    %p57 = scmp.eq.s32.totalorder %s19, 0
    %p58 = por %p56, %p57
    %s60 = sadd.s32 %s59, 1
    %p63 = scmp.eq.s32.totalorder %s13, 1
    %p64 = scmp.ne.s32.totalorder %s59, %s61
    %p65 = scmp.eq.s32.totalorder %s13, 0
    %p66 = por %p64, %p65
    %p67 = scmp.ne.s32.totalorder %s59, %s61
    %p68 = scmp.eq.s32.totalorder %s18, 1
    %p69 = por %p67, %p68
    %p70 = scmp.ne.s32.totalorder %s61, %s62
    %p71 = scmp.eq.s32.totalorder %s18, 0
    %p72 = por %p70, %p71
    %p73 = scmp.ne.s32.totalorder %s61, %s62
    %p74 = scmp.eq.s32.totalorder %s19, 1
    %p75 = por %p73, %p74
    %p77 = scmp.ne.s32.totalorder %s62, %s76
    %p78 = scmp.eq.s32.totalorder %s19, 0
    %p79 = por %p77, %p78
    %s81 = sadd.s32 %s80, 1
    %p84 = scmp.eq.s32.totalorder %s13, 1
    %p85 = scmp.ne.s32.totalorder %s80, %s82
    %p86 = scmp.eq.s32.totalorder %s13, 0
    %p87 = por %p85, %p86
    %p88 = scmp.ne.s32.totalorder %s80, %s82
    %p89 = scmp.eq.s32.totalorder %s18, 1
    %p90 = por %p88, %p89
    %p91 = scmp.ne.s32.totalorder %s82, %s83
    %p92 = scmp.eq.s32.totalorder %s18, 0
    %p93 = por %p91, %p92
    %p94 = scmp.ne.s32.totalorder %s82, %s83
    %p95 = scmp.eq.s32.totalorder %s19, 1
    %p96 = por %p94, %p95
    %p98 = scmp.ne.s32.totalorder %s83, %s97
    %p99 = scmp.eq.s32.totalorder %s19, 0
    %p100 = por %p98, %p99
    %s102 = sadd.s32 %s101, 1
    %p105 = scmp.eq.s32.totalorder %s13, 1
    %p106 = scmp.ne.s32.totalorder %s101, %s103
    %p107 = scmp.eq.s32.totalorder %s13, 0
    %p108 = por %p106, %p107
    %p109 = scmp.ne.s32.totalorder %s101, %s103
    %p110 = scmp.eq.s32.totalorder %s18, 1
    %p111 = por %p109, %p110
    %p112 = scmp.ne.s32.totalorder %s103, %s104
    %p113 = scmp.eq.s32.totalorder %s18, 0
    %p114 = por %p112, %p113
    %p115 = scmp.ne.s32.totalorder %s103, %s104
    %p116 = scmp.eq.s32.totalorder %s19, 1
    %p117 = por %p115, %p116
    %p119 = scmp.ne.s32.totalorder %s104, %s118
    %p120 = scmp.eq.s32.totalorder %s19, 0
    %p121 = por %p119, %p120
    %s123 = sadd.s32 %s122, 1
    %p126 = scmp.eq.s32.totalorder %s13, 1
    %p127 = scmp.ne.s32.totalorder %s122, %s124
    %p128 = scmp.eq.s32.totalorder %s13, 0
    %p129 = por %p127, %p128
    %p130 = scmp.ne.s32.totalorder %s122, %s124
    %p131 = scmp.eq.s32.totalorder %s18, 1
    %p132 = por %p130, %p131
    %p133 = scmp.ne.s32.totalorder %s124, %s125
    %p134 = scmp.eq.s32.totalorder %s18, 0
    %p135 = por %p133, %p134
    %p136 = scmp.ne.s32.totalorder %s124, %s125
    %p137 = scmp.eq.s32.totalorder %s19, 1
    %p138 = por %p136, %p137
    %p140 = scmp.ne.s32.totalorder %s125, %s139
    %p141 = scmp.eq.s32.totalorder %s19, 0
    %p142 = por %p140, %p141
    %s143 = ssub.s32 %s20, %s32
    %s144 = ssub.s32 %s21, %s28
    %s145 = sor.u32 %s143, %s144
    %p146 = scmp.eq.s32.totalorder %s145, 0
    %s148 = sadd.s32 %s147, 1
    %s149 = scalar_select %p146, %s147, %s148
    %p152 = pneg %p146
    %p153 = scmp.eq.s32.totalorder %s13, 1
    %p154 = por %p152, %p153
    %p155 = scmp.ne.s32.totalorder %s147, %s150
    %p156 = scmp.eq.s32.totalorder %s13, 0
    %p157 = por %p155, %p156
    %p158 = scmp.ne.s32.totalorder %s147, %s150
    %p159 = scmp.eq.s32.totalorder %s18, 1
    %p160 = por %p158, %p159
    %p161 = scmp.ne.s32.totalorder %s150, %s151
    %p162 = scmp.eq.s32.totalorder %s18, 0
    %p163 = por %p161, %p162
    %p164 = scmp.ne.s32.totalorder %s150, %s151
    %p165 = scmp.eq.s32.totalorder %s19, 1
    %p166 = por %p164, %p165
    %p168 = scmp.ne.s32.totalorder %s151, %s167
    %p169 = scmp.eq.s32.totalorder %s19, 0
    %p170 = por %p168, %p169
    %s171 = sadd.s32 %s20, %s21
    %s172 = sadd.s32 %s32, %s28
    %s173 = ssub.s32 %s171, %s172
    %p174 = scmp.eq.s32.totalorder %s173, 0
    %s176 = sadd.s32 %s175, 1
    %s177 = scalar_select %p174, %s175, %s176
    %p180 = pneg %p174
    %p181 = scmp.eq.s32.totalorder %s13, 1
    %p182 = por %p180, %p181
    %p183 = scmp.ne.s32.totalorder %s175, %s178
    %p184 = scmp.eq.s32.totalorder %s13, 0
    %p185 = por %p183, %p184
    %p186 = scmp.ne.s32.totalorder %s175, %s178
    %p187 = scmp.eq.s32.totalorder %s18, 1
    %p188 = por %p186, %p187
    %p189 = scmp.ne.s32.totalorder %s178, %s179
    %p190 = scmp.eq.s32.totalorder %s18, 0
    %p191 = por %p189, %p190
    %p192 = scmp.ne.s32.totalorder %s178, %s179
    %p193 = scmp.eq.s32.totalorder %s19, 1
    %p194 = por %p192, %p193
    %p196 = scmp.ne.s32.totalorder %s179, %s195
    %p197 = scmp.eq.s32.totalorder %s19, 0
    %p198 = por %p196, %p197
    %p199 = scmp.le.s32.totalorder 1, %s13
    %p200 = scmp.lt.s32.totalorder %s13, 3
    %p201 = pnand %p199, %p200
    %p202 = pneg %p201
    // Predicated region
    $region9: #{bottleneck_forward.6} parent=5 // pred_check
      _
    $region10: #{bottleneck_forward.6} parent=5 // pred_check_branch
      %204 = sbr.rel (%p201) target = $region12
    $region11: #{bottleneck_forward.6} parent=5 // pred_region
      %s205 = ssub.s32 %s13, 1
      // Predicated region
      $region13: #{bottleneck_forward.6} parent=11 // pred_check
        %p206 = pneg %p72
      $region14: #{bottleneck_forward.6} parent=11 // pred_check_branch
        %208 = sbr.rel (%p206) target = $region16
      $region15: #{bottleneck_forward.6} parent=11 // pred_region
        _
      $region16: #{bottleneck_forward.6} parent=11 // pred_fallthru
        _
      // Predicated region
      $region17: #{bottleneck_forward.6} parent=11 // pred_check
        %p209 = pneg %p93
      $region18: #{bottleneck_forward.6} parent=11 // pred_check_branch
        %211 = sbr.rel (%p209) target = $region20
      $region19: #{bottleneck_forward.6} parent=11 // pred_region
        _
      $region20: #{bottleneck_forward.6} parent=11 // pred_fallthru
        _
      // Predicated region
      $region21: #{bottleneck_forward.6} parent=11 // pred_check
        %p212 = pneg %p114
      $region22: #{bottleneck_forward.6} parent=11 // pred_check_branch
        %214 = sbr.rel (%p212) target = $region24
      $region23: #{bottleneck_forward.6} parent=11 // pred_region
        _
      $region24: #{bottleneck_forward.6} parent=11 // pred_fallthru
        _
      // Predicated region
      $region25: #{bottleneck_forward.6} parent=11 // pred_check
        %p215 = pneg %p135
      $region26: #{bottleneck_forward.6} parent=11 // pred_check_branch
        %217 = sbr.rel (%p215) target = $region28
      $region27: #{bottleneck_forward.6} parent=11 // pred_region
        _
      $region28: #{bottleneck_forward.6} parent=11 // pred_fallthru
        _
    $region12: #{bottleneck_forward.6} parent=5 // pred_fallthru
      _
    %p218 = scmp.lt.s32.totalorder %s13, 2
    // Predicated region
    $region29: #{bottleneck_forward.6} parent=5 // pred_check
      %p219 = pneg %p218
    $region30: #{bottleneck_forward.6} parent=5 // pred_check_branch
      %221 = sbr.rel (%p219) target = $region32
    $region31: #{bottleneck_forward.6} parent=5 // pred_region
      // Predicated region
      $region33: #{bottleneck_forward.6} parent=31 // pred_check
        %p222 = pneg %p45
      $region34: #{bottleneck_forward.6} parent=31 // pred_check_branch
        %224 = sbr.rel (%p222) target = $region36
      $region35: #{bottleneck_forward.6} parent=31 // pred_region
        %s225 = smul.u32 4, %s20
        %p226 = scmp.lt.s32.totalorder %s225, 7
        %s227 = scalar_select %p226, %s225, 7
        %s228 = smul.addr %s227, 18
        %s229 = smul.addr %s228, 4
        %s230 = scalar_lea.vmem %s0, %s229
        %s231 = smul.u32 4, %s20
      $region36: #{bottleneck_forward.6} parent=31 // pred_fallthru
        _
    $region32: #{bottleneck_forward.6} parent=5 // pred_fallthru
      _
    %p232 = scmp.le.s32.totalorder 1, %s13
    %p233 = scmp.lt.s32.totalorder %s13, 3
    %p234 = pnand %p232, %p233
    %p235 = pneg %p234
    // Predicated region
    $region37: #{bottleneck_forward.6} parent=5 // pred_check
      _
    $region38: #{bottleneck_forward.6} parent=5 // pred_check_branch
      %237 = sbr.rel (%p234) target = $region40
    $region39: #{bottleneck_forward.6} parent=5 // pred_region
      %s238 = ssub.s32 %s13, 1
      %s239 = smul.u32 4, %s22
      %p240 = scmp.lt.s32.totalorder %s239, 7
      %s241 = scalar_select %p240, %s239, 7
      %s242 = smul.addr %s241, 18
      %s243 = smul.addr %s242, 4
      %s244 = scalar_lea.vmem %s0, %s243
      %p245 = pneg %p51
      %p246 = pneg %p48
      %p247 = pneg %p72
      %p248 = pneg %p69
      %p249 = pneg %p93
      %p250 = pneg %p90
      %p251 = pneg %p114
      %p252 = pneg %p111
      %p253 = pneg %p135
      %p254 = pneg %p132
      %p255 = pneg %p163
      %p256 = pneg %p160
      %s257 = smul.u32 8, %s23
      %p258 = scmp.lt.s32.totalorder %s22, 1
      %s259 = scalar_select %p258, %s22, 1
      %p260 = scmp.lt.s32.totalorder %s257, 7
      %s261 = scalar_select %p260, %s257, 7
      %s262 = smul.addr %s259, 8
      %s263 = sadd.s32 %s261, %s262
      %s264 = smul.addr %s263, 4
      %s265 = scalar_lea.vmem %s5, %s264
      %p266 = pneg %p191
      %p267 = pneg %p188
      %s268 = sadd.s32 %s22, %s23
      %p269 = scmp.lt.s32.totalorder %s268, 1
      %s270 = scalar_select %p269, %s268, 1
      %s271 = smul.addr %s270, 2
      %s272 = scalar_lea.vmem %s6, %s271
      %s273 = smul.u32 4, %s22
      %p274 = scmp.lt.s32.totalorder %s273, 7
      %s275 = scalar_select %p274, %s273, 7
      %s276 = smul.addr %s275, 18
      %s277 = smul.addr %s276, 4
      %s278 = scalar_lea.vmem %s0, %s277
      %s279 = smul.u32 4, %s22
      %s280 = smul.u32 8, %s23
      %p281 = scmp.lt.s32.totalorder %s22, 1
      %s282 = scalar_select %p281, %s22, 1
      %p283 = scmp.lt.s32.totalorder %s280, 7
      %s284 = scalar_select %p283, %s280, 7
      %s285 = smul.addr %s282, 8
      %s286 = sadd.s32 %s284, %s285
      %s287 = smul.addr %s286, 4
      %s288 = scalar_lea.vmem %s5, %s287
      %s289 = smul.u32 8, %s23
      %s290 = sadd.s32 %s22, %s23
      %p291 = scmp.lt.s32.totalorder %s290, 1
      %s292 = scalar_select %p291, %s290, 1
      %s293 = smul.addr %s292, 2
      %s294 = scalar_lea.vmem %s6, %s293
      %s295 = sadd.s32 %s22, %s23
      %s297 = smul.u32 %s23, 8
      %s298 = smul.u32 %s297, 2
      %s299 = smul.addr %s298, 4
      %s300 = scalar_lea.vmem %s278, %s299
      %v301 = vld [vmem:[%s300] sm:$0xf]
      %v302 = vld [vmem:[%s300 + $0x4] sm:$0x1]
      %v303 = vld [vmem:[%s300 + $0x8] sm:$0xf]
      %v304 = vld [vmem:[%s300 + $0xc] sm:$0x1]
      %v305 = vld [vmem:[%s300 + $0x10] sm:$0xf]
      %v306 = vld [vmem:[%s300 + $0x14] sm:$0x1]
      %v307 = vld [vmem:[%s300 + $0x18] sm:$0xf]
      %v308 = vld [vmem:[%s300 + $0x1c] sm:$0x1]
      %v309 = vld [vmem:[%s300 + $0x20] sm:$0xf]
      %v310 = vld [vmem:[%s300 + $0x24] sm:$0x1]
      %v311 = vld [vmem:[%s300 + $0x28] sm:$0xf]
      %v312 = vld [vmem:[%s300 + $0x2c] sm:$0x1]
      %v313 = vld [vmem:[%s300 + $0x30] sm:$0xf]
      %v314 = vld [vmem:[%s300 + $0x34] sm:$0x1]
      %v315 = vld [vmem:[%s300 + $0x38] sm:$0xf]
      %v316 = vld [vmem:[%s300 + $0x3c] sm:$0x1]
      %v317 = vld [vmem:[%s300 + $0x40] sm:$0xf]
      %v318 = vld [vmem:[%s300 + $0x44] sm:$0x1]
      %v319 = vld [vmem:[%s300 + $0x48] sm:$0xf]
      %v320 = vld [vmem:[%s300 + $0x50] sm:$0xf]
      %v321 = vld [vmem:[%s300 + $0x58] sm:$0xf]
      %v322 = vld [vmem:[%s300 + $0x60] sm:$0xf]
      %v323 = vld [vmem:[%s300 + $0x68] sm:$0xf]
      %v324 = vld [vmem:[%s300 + $0x70] sm:$0xf]
      %v325 = vld [vmem:[%s300 + $0x78] sm:$0xf]
      %v326 = vld [vmem:[%s300 + $0x80] sm:$0xf]
      %v327 = vld [vmem:[%s300 + $0x88] sm:$0xf]
      %v328 = vld [vmem:[%s300 + $0x90] sm:$0xf]
      %v329 = vld [vmem:[%s300 + $0x94] sm:$0x1]
      %v330 = vld [vmem:[%s300 + $0x98] sm:$0xf]
      %v331 = vld [vmem:[%s300 + $0x9c] sm:$0x1]
      %v332 = vld [vmem:[%s300 + $0xa0] sm:$0xf]
      %v333 = vld [vmem:[%s300 + $0xa4] sm:$0x1]
      %v334 = vld [vmem:[%s300 + $0xa8] sm:$0xf]
      %v335 = vld [vmem:[%s300 + $0xac] sm:$0x1]
      %v336 = vld [vmem:[%s300 + $0xb0] sm:$0xf]
      %v337 = vld [vmem:[%s300 + $0xb4] sm:$0x1]
      %v338 = vld [vmem:[%s300 + $0xb8] sm:$0xf]
      %v339 = vld [vmem:[%s300 + $0xbc] sm:$0x1]
      %v340 = vld [vmem:[%s300 + $0xc0] sm:$0xf]
      %v341 = vld [vmem:[%s300 + $0xc4] sm:$0x1]
      %v342 = vld [vmem:[%s300 + $0xc8] sm:$0xf]
      %v343 = vld [vmem:[%s300 + $0xcc] sm:$0x1]
      %v344 = vld [vmem:[%s300 + $0xd8] sm:$0xf]
      %v345 = vld [vmem:[%s300 + $0xe0] sm:$0xf]
      %v346 = vld [vmem:[%s300 + $0xe8] sm:$0xf]
      %v347 = vld [vmem:[%s300 + $0xf0] sm:$0xf]
      %v348 = vld [vmem:[%s300 + $0xf8] sm:$0xf]
      %v349 = vld [vmem:[%s300 + $0x100] sm:$0xf]
      %v350 = vld [vmem:[%s300 + $0x108] sm:$0xf]
      %v351 = vld [vmem:[%s300 + $0x110] sm:$0xf]
      %v352 = vunpack.c.l.bf16 %v301
      %v353 = vunpack.c.l.bf16 %v302
      %v354 = vunpack.c.l.bf16 %v303
      %v355 = vunpack.c.l.bf16 %v304
      %v356 = vunpack.c.l.bf16 %v305
      %v357 = vunpack.c.l.bf16 %v306
      %v358 = vunpack.c.l.bf16 %v307
      %v359 = vunpack.c.l.bf16 %v308
      %v360 = vunpack.c.l.bf16 %v309
      %v361 = vunpack.c.l.bf16 %v310
      %v362 = vunpack.c.l.bf16 %v311
      %v363 = vunpack.c.l.bf16 %v312
      %v364 = vunpack.c.l.bf16 %v313
      %v365 = vunpack.c.l.bf16 %v314
      %v366 = vunpack.c.l.bf16 %v315
      %v367 = vunpack.c.l.bf16 %v316
      %v368 = vunpack.c.l.bf16 %v317
      %v369 = vunpack.c.l.bf16 %v318
      %v370 = vunpack.c.l.bf16 %v319
      %v371 = vunpack.c.l.bf16 %v320
      %v372 = vunpack.c.l.bf16 %v321
      %v373 = vunpack.c.l.bf16 %v322
      %v374 = vunpack.c.l.bf16 %v323
      %v375 = vunpack.c.l.bf16 %v324
      %v376 = vunpack.c.l.bf16 %v325
      %v377 = vunpack.c.l.bf16 %v326
      %v378 = vunpack.c.l.bf16 %v327
      %v379 = vunpack.c.l.bf16 %v328
      %v380 = vunpack.c.l.bf16 %v329
      %v381 = vunpack.c.l.bf16 %v330
      %v382 = vunpack.c.l.bf16 %v331
      %v383 = vunpack.c.l.bf16 %v332
      %v384 = vunpack.c.l.bf16 %v333
      %v385 = vunpack.c.l.bf16 %v334
      %v386 = vunpack.c.l.bf16 %v335
      %v387 = vunpack.c.l.bf16 %v336
      %v388 = vunpack.c.l.bf16 %v337
      %v389 = vunpack.c.l.bf16 %v338
      %v390 = vunpack.c.l.bf16 %v339
      %v391 = vunpack.c.l.bf16 %v340
      %v392 = vunpack.c.l.bf16 %v341
      %v393 = vunpack.c.l.bf16 %v342
      %v394 = vunpack.c.l.bf16 %v343
      %v395 = vunpack.c.l.bf16 %v344
      %v396 = vunpack.c.l.bf16 %v345
      %v397 = vunpack.c.l.bf16 %v346
      %v398 = vunpack.c.l.bf16 %v347
      %v399 = vunpack.c.l.bf16 %v348
      %v400 = vunpack.c.l.bf16 %v349
      %v401 = vunpack.c.l.bf16 %v350
      %v402 = vunpack.c.l.bf16 %v351
      %s403 = smul.addr %s298, 4
      %s404 = scalar_lea.vmem %s1, %s403
      %v405 = vld [vmem:[%s404] sm:$0xf]
      %v406 = vld [vmem:[%s404 + $0x4] sm:$0x1]
      %v407 = vld [vmem:[%s404 + $0x8] sm:$0xf]
      %v408 = vld [vmem:[%s404 + $0xc] sm:$0x1]
      %v409 = vld [vmem:[%s404 + $0x10] sm:$0xf]
      %v410 = vld [vmem:[%s404 + $0x14] sm:$0x1]
      %v411 = vld [vmem:[%s404 + $0x18] sm:$0xf]
      %v412 = vld [vmem:[%s404 + $0x1c] sm:$0x1]
      %v413 = vld [vmem:[%s404 + $0x20] sm:$0xf]
      %v414 = vld [vmem:[%s404 + $0x24] sm:$0x1]
      %v415 = vld [vmem:[%s404 + $0x28] sm:$0xf]
      %v416 = vld [vmem:[%s404 + $0x2c] sm:$0x1]
      %v417 = vld [vmem:[%s404 + $0x30] sm:$0xf]
      %v418 = vld [vmem:[%s404 + $0x34] sm:$0x1]
      %v419 = vld [vmem:[%s404 + $0x38] sm:$0xf]
      %v420 = vld [vmem:[%s404 + $0x3c] sm:$0x1]
      %v421 = vld [vmem:[%s404 + $0x40] sm:$0xf]
      %v422 = vld [vmem:[%s404 + $0x44] sm:$0x1]
      %v423 = vld [vmem:[%s404 + $0x48] sm:$0xf]
      %v424 = vld [vmem:[%s404 + $0x50] sm:$0xf]
      %v425 = vld [vmem:[%s404 + $0x58] sm:$0xf]
      %v426 = vld [vmem:[%s404 + $0x60] sm:$0xf]
      %v427 = vld [vmem:[%s404 + $0x68] sm:$0xf]
      %v428 = vld [vmem:[%s404 + $0x70] sm:$0xf]
      %v429 = vld [vmem:[%s404 + $0x78] sm:$0xf]
      %v430 = vld [vmem:[%s404 + $0x80] sm:$0xf]
      %v431 = vld [vmem:[%s404 + $0x88] sm:$0xf]
      %v432 = vld [vmem:[%s404 + $0x90] sm:$0xf]
      %v433 = vld [vmem:[%s404 + $0x94] sm:$0x1]
      %v434 = vld [vmem:[%s404 + $0x98] sm:$0xf]
      %v435 = vld [vmem:[%s404 + $0x9c] sm:$0x1]
      %v436 = vld [vmem:[%s404 + $0xa0] sm:$0xf]
      %v437 = vld [vmem:[%s404 + $0xa4] sm:$0x1]
      %v438 = vld [vmem:[%s404 + $0xa8] sm:$0xf]
      %v439 = vld [vmem:[%s404 + $0xac] sm:$0x1]
      %v440 = vld [vmem:[%s404 + $0xb0] sm:$0xf]
      %v441 = vld [vmem:[%s404 + $0xb4] sm:$0x1]
      %v442 = vld [vmem:[%s404 + $0xb8] sm:$0xf]
      %v443 = vld [vmem:[%s404 + $0xbc] sm:$0x1]
      %v444 = vld [vmem:[%s404 + $0xc0] sm:$0xf]
      %v445 = vld [vmem:[%s404 + $0xc4] sm:$0x1]
      %v446 = vld [vmem:[%s404 + $0xc8] sm:$0xf]
      %v447 = vld [vmem:[%s404 + $0xcc] sm:$0x1]
      %v448 = vld [vmem:[%s404 + $0xd8] sm:$0xf]
      %v449 = vld [vmem:[%s404 + $0xe0] sm:$0xf]
      %v450 = vld [vmem:[%s404 + $0xe8] sm:$0xf]
      %v451 = vld [vmem:[%s404 + $0xf0] sm:$0xf]
      %v452 = vld [vmem:[%s404 + $0xf8] sm:$0xf]
      %v453 = vld [vmem:[%s404 + $0x100] sm:$0xf]
      %v454 = vld [vmem:[%s404 + $0x108] sm:$0xf]
      %v455 = vld [vmem:[%s404 + $0x110] sm:$0xf]
      %v456 = vunpack.c.l.bf16 %v405
      %v457 = vunpack.c.l.bf16 %v406
      %v458 = vunpack.c.l.bf16 %v407
      %v459 = vunpack.c.l.bf16 %v408
      %v460 = vunpack.c.l.bf16 %v409
      %v461 = vunpack.c.l.bf16 %v410
      %v462 = vunpack.c.l.bf16 %v411
      %v463 = vunpack.c.l.bf16 %v412
      %v464 = vunpack.c.l.bf16 %v413
      %v465 = vunpack.c.l.bf16 %v414
      %v466 = vunpack.c.l.bf16 %v415
      %v467 = vunpack.c.l.bf16 %v416
      %v468 = vunpack.c.l.bf16 %v417
      %v469 = vunpack.c.l.bf16 %v418
      %v470 = vunpack.c.l.bf16 %v419
      %v471 = vunpack.c.l.bf16 %v420
      %v472 = vunpack.c.l.bf16 %v421
      %v473 = vunpack.c.l.bf16 %v422
      %v474 = vunpack.c.l.bf16 %v423
      %v475 = vunpack.c.l.bf16 %v424
      %v476 = vunpack.c.l.bf16 %v425
      %v477 = vunpack.c.l.bf16 %v426
      %v478 = vunpack.c.l.bf16 %v427
      %v479 = vunpack.c.l.bf16 %v428
      %v480 = vunpack.c.l.bf16 %v429
      %v481 = vunpack.c.l.bf16 %v430
      %v482 = vunpack.c.l.bf16 %v431
      %v483 = vunpack.c.l.bf16 %v432
      %v484 = vunpack.c.l.bf16 %v433
      %v485 = vunpack.c.l.bf16 %v434
      %v486 = vunpack.c.l.bf16 %v435
      %v487 = vunpack.c.l.bf16 %v436
      %v488 = vunpack.c.l.bf16 %v437
      %v489 = vunpack.c.l.bf16 %v438
      %v490 = vunpack.c.l.bf16 %v439
      %v491 = vunpack.c.l.bf16 %v440
      %v492 = vunpack.c.l.bf16 %v441
      %v493 = vunpack.c.l.bf16 %v442
      %v494 = vunpack.c.l.bf16 %v443
      %v495 = vunpack.c.l.bf16 %v444
      %v496 = vunpack.c.l.bf16 %v445
      %v497 = vunpack.c.l.bf16 %v446
      %v498 = vunpack.c.l.bf16 %v447
      %v499 = vunpack.c.l.bf16 %v448
      %v500 = vunpack.c.l.bf16 %v449
      %v501 = vunpack.c.l.bf16 %v450
      %v502 = vunpack.c.l.bf16 %v451
      %v503 = vunpack.c.l.bf16 %v452
      %v504 = vunpack.c.l.bf16 %v453
      %v505 = vunpack.c.l.bf16 %v454
      %v506 = vunpack.c.l.bf16 %v455
      %v507 = vld [vmem:[%s3] sm:$0x1]
      %v509 = vperm.slane %v507, 0
      %v511 = vmul.f32 %v352, %v509
      %v512 = vmul.f32 %v353, %v509
      %v513 = vmul.f32 %v354, %v509
      %v514 = vmul.f32 %v355, %v509
      %v515 = vmul.f32 %v356, %v509
      %v516 = vmul.f32 %v357, %v509
      %v517 = vmul.f32 %v358, %v509
      %v518 = vmul.f32 %v359, %v509
      %v519 = vmul.f32 %v360, %v509
      %v520 = vmul.f32 %v361, %v509
      %v521 = vmul.f32 %v362, %v509
      %v522 = vmul.f32 %v363, %v509
      %v523 = vmul.f32 %v364, %v509
      %v524 = vmul.f32 %v365, %v509
      %v525 = vmul.f32 %v366, %v509
      %v526 = vmul.f32 %v367, %v509
      %v527 = vmul.f32 %v368, %v509
      %v528 = vmul.f32 %v369, %v509
      %v529 = vmul.f32 %v370, %v509
      %v530 = vmul.f32 %v371, %v509
      %v531 = vmul.f32 %v372, %v509
      %v532 = vmul.f32 %v373, %v509
      %v533 = vmul.f32 %v374, %v509
      %v534 = vmul.f32 %v375, %v509
      %v535 = vmul.f32 %v376, %v509
      %v536 = vmul.f32 %v377, %v509
      %v537 = vmul.f32 %v378, %v509
      %v538 = vmul.f32 %v379, %v509
      %v539 = vmul.f32 %v380, %v509
      %v540 = vmul.f32 %v381, %v509
      %v541 = vmul.f32 %v382, %v509
      %v542 = vmul.f32 %v383, %v509
      %v543 = vmul.f32 %v384, %v509
      %v544 = vmul.f32 %v385, %v509
      %v545 = vmul.f32 %v386, %v509
      %v546 = vmul.f32 %v387, %v509
      %v547 = vmul.f32 %v388, %v509
      %v548 = vmul.f32 %v389, %v509
      %v549 = vmul.f32 %v390, %v509
      %v550 = vmul.f32 %v391, %v509
      %v551 = vmul.f32 %v392, %v509
      %v552 = vmul.f32 %v393, %v509
      %v553 = vmul.f32 %v394, %v509
      %v554 = vmul.f32 %v395, %v509
      %v555 = vmul.f32 %v396, %v509
      %v556 = vmul.f32 %v397, %v509
      %v557 = vmul.f32 %v398, %v509
      %v558 = vmul.f32 %v399, %v509
      %v559 = vmul.f32 %v400, %v509
      %v560 = vmul.f32 %v401, %v509
      %v561 = vmul.f32 %v402, %v509
      %v562 = vld [vmem:[%s4] sm:$0x1]
      %v564 = vperm.slane %v562, 0
      %v566 = vadd.f32 %v511, %v564
      %v567 = vadd.f32 %v512, %v564
      %v568 = vadd.f32 %v513, %v564
      %v569 = vadd.f32 %v514, %v564
      %v570 = vadd.f32 %v515, %v564
      %v571 = vadd.f32 %v516, %v564
      %v572 = vadd.f32 %v517, %v564
      %v573 = vadd.f32 %v518, %v564
      %v574 = vadd.f32 %v519, %v564
      %v575 = vadd.f32 %v520, %v564
      %v576 = vadd.f32 %v521, %v564
      %v577 = vadd.f32 %v522, %v564
      %v578 = vadd.f32 %v523, %v564
      %v579 = vadd.f32 %v524, %v564
      %v580 = vadd.f32 %v525, %v564
      %v581 = vadd.f32 %v526, %v564
      %v582 = vadd.f32 %v527, %v564
      %v583 = vadd.f32 %v528, %v564
      %v584 = vadd.f32 %v529, %v564
      %v585 = vadd.f32 %v530, %v564
      %v586 = vadd.f32 %v531, %v564
      %v587 = vadd.f32 %v532, %v564
      %v588 = vadd.f32 %v533, %v564
      %v589 = vadd.f32 %v534, %v564
      %v590 = vadd.f32 %v535, %v564
      %v591 = vadd.f32 %v536, %v564
      %v592 = vadd.f32 %v537, %v564
      %v593 = vadd.f32 %v538, %v564
      %v594 = vadd.f32 %v539, %v564
      %v595 = vadd.f32 %v540, %v564
      %v596 = vadd.f32 %v541, %v564
      %v597 = vadd.f32 %v542, %v564
      %v598 = vadd.f32 %v543, %v564
      %v599 = vadd.f32 %v544, %v564
      %v600 = vadd.f32 %v545, %v564
      %v601 = vadd.f32 %v546, %v564
      %v602 = vadd.f32 %v547, %v564
      %v603 = vadd.f32 %v548, %v564
      %v604 = vadd.f32 %v549, %v564
      %v605 = vadd.f32 %v550, %v564
      %v606 = vadd.f32 %v551, %v564
      %v607 = vadd.f32 %v552, %v564
      %v608 = vadd.f32 %v553, %v564
      %v609 = vadd.f32 %v554, %v564
      %v610 = vadd.f32 %v555, %v564
      %v611 = vadd.f32 %v556, %v564
      %v612 = vadd.f32 %v557, %v564
      %v613 = vadd.f32 %v558, %v564
      %v614 = vadd.f32 %v559, %v564
      %v615 = vadd.f32 %v560, %v564
      %v616 = vadd.f32 %v561, %v564
      %v617 = vmax.f32 %v566, 0.0
      %v618 = vmax.f32 %v567, 0.0
      %v619 = vmax.f32 %v568, 0.0
      %v620 = vmax.f32 %v569, 0.0
      %v621 = vmax.f32 %v570, 0.0
      %v622 = vmax.f32 %v571, 0.0
      %v623 = vmax.f32 %v572, 0.0
      %v624 = vmax.f32 %v573, 0.0
      %v625 = vmax.f32 %v574, 0.0
      %v626 = vmax.f32 %v575, 0.0
      %v627 = vmax.f32 %v576, 0.0
      %v628 = vmax.f32 %v577, 0.0
      %v629 = vmax.f32 %v578, 0.0
      %v630 = vmax.f32 %v579, 0.0
      %v631 = vmax.f32 %v580, 0.0
      %v632 = vmax.f32 %v581, 0.0
      %v633 = vmax.f32 %v582, 0.0
      %v634 = vmax.f32 %v583, 0.0
      %v635 = vmax.f32 %v584, 0.0
      %v636 = vmax.f32 %v585, 0.0
      %v637 = vmax.f32 %v586, 0.0
      %v638 = vmax.f32 %v587, 0.0
      %v639 = vmax.f32 %v588, 0.0
      %v640 = vmax.f32 %v589, 0.0
      %v641 = vmax.f32 %v590, 0.0
      %v642 = vmax.f32 %v591, 0.0
      %v643 = vmax.f32 %v592, 0.0
      %v644 = vmax.f32 %v593, 0.0
      %v645 = vmax.f32 %v594, 0.0
      %v646 = vmax.f32 %v595, 0.0
      %v647 = vmax.f32 %v596, 0.0
      %v648 = vmax.f32 %v597, 0.0
      %v649 = vmax.f32 %v598, 0.0
      %v650 = vmax.f32 %v599, 0.0
      %v651 = vmax.f32 %v600, 0.0
      %v652 = vmax.f32 %v601, 0.0
      %v653 = vmax.f32 %v602, 0.0
      %v654 = vmax.f32 %v603, 0.0
      %v655 = vmax.f32 %v604, 0.0
      %v656 = vmax.f32 %v605, 0.0
      %v657 = vmax.f32 %v606, 0.0
      %v658 = vmax.f32 %v607, 0.0
      %v659 = vmax.f32 %v608, 0.0
      %v660 = vmax.f32 %v609, 0.0
      %v661 = vmax.f32 %v610, 0.0
      %v662 = vmax.f32 %v611, 0.0
      %v663 = vmax.f32 %v612, 0.0
      %v664 = vmax.f32 %v613, 0.0
      %v665 = vmax.f32 %v614, 0.0
      %v666 = vmax.f32 %v615, 0.0
      %v667 = vmax.f32 %v616, 0.0
      %669 = vset.pattern.permute.xlu0 0
      %670 = vperm.xlu0 %669, %v456
      %v671 = vpop.permute.xlu0 %670
      %674 = vset.pattern.permute.xlu0 0
      %675 = vperm.xlu0 %674, %v457
      %v676 = vpop.permute.xlu0 %675
      %679 = vset.pattern.permute.xlu0 0
      %680 = vperm.xlu0 %679, %v458
      %v681 = vpop.permute.xlu0 %680
      %684 = vset.pattern.permute.xlu0 0
      %685 = vperm.xlu0 %684, %v459
      %v686 = vpop.permute.xlu0 %685
      %689 = vset.pattern.permute.xlu0 0
      %690 = vperm.xlu0 %689, %v460
      %v691 = vpop.permute.xlu0 %690
      %694 = vset.pattern.permute.xlu0 0
      %695 = vperm.xlu0 %694, %v461
      %v696 = vpop.permute.xlu0 %695
      %699 = vset.pattern.permute.xlu0 0
      %700 = vperm.xlu0 %699, %v462
      %v701 = vpop.permute.xlu0 %700
      %704 = vset.pattern.permute.xlu0 0
      %705 = vperm.xlu0 %704, %v463
      %v706 = vpop.permute.xlu0 %705
      %709 = vset.pattern.permute.xlu0 0
      %710 = vperm.xlu0 %709, %v464
      %v711 = vpop.permute.xlu0 %710
      %714 = vset.pattern.permute.xlu0 0
      %715 = vperm.xlu0 %714, %v465
      %v716 = vpop.permute.xlu0 %715
      %719 = vset.pattern.permute.xlu0 0
      %720 = vperm.xlu0 %719, %v466
      %v721 = vpop.permute.xlu0 %720
      %724 = vset.pattern.permute.xlu0 0
      %725 = vperm.xlu0 %724, %v467
      %v726 = vpop.permute.xlu0 %725
      %729 = vset.pattern.permute.xlu0 0
      %730 = vperm.xlu0 %729, %v468
      %v731 = vpop.permute.xlu0 %730
      %734 = vset.pattern.permute.xlu0 0
      %735 = vperm.xlu0 %734, %v469
      %v736 = vpop.permute.xlu0 %735
      %739 = vset.pattern.permute.xlu0 0
      %740 = vperm.xlu0 %739, %v470
      %v741 = vpop.permute.xlu0 %740
      %744 = vset.pattern.permute.xlu0 0
      %745 = vperm.xlu0 %744, %v471
      %v746 = vpop.permute.xlu0 %745
      %749 = vset.pattern.permute.xlu0 0
      %750 = vperm.xlu0 %749, %v472
      %v751 = vpop.permute.xlu0 %750
      %754 = vset.pattern.permute.xlu0 0
      %755 = vperm.xlu0 %754, %v473
      %v756 = vpop.permute.xlu0 %755
      %759 = vset.pattern.permute.xlu0 0
      %760 = vperm.xlu0 %759, %v474
      %v761 = vpop.permute.xlu0 %760
      %764 = vset.pattern.permute.xlu0 0
      %765 = vperm.xlu0 %764, %v475
      %v766 = vpop.permute.xlu0 %765
      %769 = vset.pattern.permute.xlu0 0
      %770 = vperm.xlu0 %769, %v476
      %v771 = vpop.permute.xlu0 %770
      %774 = vset.pattern.permute.xlu0 0
      %775 = vperm.xlu0 %774, %v477
      %v776 = vpop.permute.xlu0 %775
      %779 = vset.pattern.permute.xlu0 0
      %780 = vperm.xlu0 %779, %v478
      %v781 = vpop.permute.xlu0 %780
      %784 = vset.pattern.permute.xlu0 0
      %785 = vperm.xlu0 %784, %v479
      %v786 = vpop.permute.xlu0 %785
      %789 = vset.pattern.permute.xlu0 0
      %790 = vperm.xlu0 %789, %v480
      %v791 = vpop.permute.xlu0 %790
      %794 = vset.pattern.permute.xlu0 0
      %795 = vperm.xlu0 %794, %v481
      %v796 = vpop.permute.xlu0 %795
      %799 = vset.pattern.permute.xlu0 0
      %800 = vperm.xlu0 %799, %v482
      %v801 = vpop.permute.xlu0 %800
      %804 = vset.pattern.permute.xlu0 0
      %805 = vperm.xlu0 %804, %v483
      %v806 = vpop.permute.xlu0 %805
      %809 = vset.pattern.permute.xlu0 0
      %810 = vperm.xlu0 %809, %v484
      %v811 = vpop.permute.xlu0 %810
      %814 = vset.pattern.permute.xlu0 0
      %815 = vperm.xlu0 %814, %v485
      %v816 = vpop.permute.xlu0 %815
      %819 = vset.pattern.permute.xlu0 0
      %820 = vperm.xlu0 %819, %v486
      %v821 = vpop.permute.xlu0 %820
      %824 = vset.pattern.permute.xlu0 0
      %825 = vperm.xlu0 %824, %v487
      %v826 = vpop.permute.xlu0 %825
      %829 = vset.pattern.permute.xlu0 0
      %830 = vperm.xlu0 %829, %v488
      %v831 = vpop.permute.xlu0 %830
      %834 = vset.pattern.permute.xlu0 0
      %835 = vperm.xlu0 %834, %v489
      %v836 = vpop.permute.xlu0 %835
      %839 = vset.pattern.permute.xlu0 0
      %840 = vperm.xlu0 %839, %v490
      %v841 = vpop.permute.xlu0 %840
      %844 = vset.pattern.permute.xlu0 0
      %845 = vperm.xlu0 %844, %v491
      %v846 = vpop.permute.xlu0 %845
      %849 = vset.pattern.permute.xlu0 0
      %850 = vperm.xlu0 %849, %v492
      %v851 = vpop.permute.xlu0 %850
      %854 = vset.pattern.permute.xlu0 0
      %855 = vperm.xlu0 %854, %v493
      %v856 = vpop.permute.xlu0 %855
      %859 = vset.pattern.permute.xlu0 0
      %860 = vperm.xlu0 %859, %v494
      %v861 = vpop.permute.xlu0 %860
      %864 = vset.pattern.permute.xlu0 0
      %865 = vperm.xlu0 %864, %v495
      %v866 = vpop.permute.xlu0 %865
      %869 = vset.pattern.permute.xlu0 0
      %870 = vperm.xlu0 %869, %v496
      %v871 = vpop.permute.xlu0 %870
      %874 = vset.pattern.permute.xlu0 0
      %875 = vperm.xlu0 %874, %v497
      %v876 = vpop.permute.xlu0 %875
      %879 = vset.pattern.permute.xlu0 0
      %880 = vperm.xlu0 %879, %v498
      %v881 = vpop.permute.xlu0 %880
      %884 = vset.pattern.permute.xlu0 0
      %885 = vperm.xlu0 %884, %v499
      %v886 = vpop.permute.xlu0 %885
      %889 = vset.pattern.permute.xlu0 0
      %890 = vperm.xlu0 %889, %v500
      %v891 = vpop.permute.xlu0 %890
      %894 = vset.pattern.permute.xlu0 0
      %895 = vperm.xlu0 %894, %v501
      %v896 = vpop.permute.xlu0 %895
      %899 = vset.pattern.permute.xlu0 0
      %900 = vperm.xlu0 %899, %v502
      %v901 = vpop.permute.xlu0 %900
      %904 = vset.pattern.permute.xlu0 0
      %905 = vperm.xlu0 %904, %v503
      %v906 = vpop.permute.xlu0 %905
      %909 = vset.pattern.permute.xlu0 0
      %910 = vperm.xlu0 %909, %v504
      %v911 = vpop.permute.xlu0 %910
      %914 = vset.pattern.permute.xlu0 0
      %915 = vperm.xlu0 %914, %v505
      %v916 = vpop.permute.xlu0 %915
      %919 = vset.pattern.permute.xlu0 0
      %920 = vperm.xlu0 %919, %v506
      %v921 = vpop.permute.xlu0 %920
      %v923 = vmul.f32 %v617, %v671
      %v924 = vmul.f32 %v618, %v676
      %v925 = vmul.f32 %v619, %v681
      %v926 = vmul.f32 %v620, %v686
      %v927 = vmul.f32 %v621, %v691
      %v928 = vmul.f32 %v622, %v696
      %v929 = vmul.f32 %v623, %v701
      %v930 = vmul.f32 %v624, %v706
      %v931 = vmul.f32 %v625, %v711
      %v932 = vmul.f32 %v626, %v716
      %v933 = vmul.f32 %v627, %v721
      %v934 = vmul.f32 %v628, %v726
      %v935 = vmul.f32 %v629, %v731
      %v936 = vmul.f32 %v630, %v736
      %v937 = vmul.f32 %v631, %v741
      %v938 = vmul.f32 %v632, %v746
      %v939 = vmul.f32 %v633, %v751
      %v940 = vmul.f32 %v634, %v756
      %v941 = vmul.f32 %v635, %v761
      %v942 = vmul.f32 %v636, %v766
      %v943 = vmul.f32 %v637, %v771
      %v944 = vmul.f32 %v638, %v776
      %v945 = vmul.f32 %v639, %v781
      %v946 = vmul.f32 %v640, %v786
      %v947 = vmul.f32 %v641, %v791
      %v948 = vmul.f32 %v642, %v796
      %v949 = vmul.f32 %v643, %v801
      %v950 = vmul.f32 %v644, %v806
      %v951 = vmul.f32 %v645, %v811
      %v952 = vmul.f32 %v646, %v816
      %v953 = vmul.f32 %v647, %v821
      %v954 = vmul.f32 %v648, %v826
      %v955 = vmul.f32 %v649, %v831
      %v956 = vmul.f32 %v650, %v836
      %v957 = vmul.f32 %v651, %v841
      %v958 = vmul.f32 %v652, %v846
      %v959 = vmul.f32 %v653, %v851
      %v960 = vmul.f32 %v654, %v856
      %v961 = vmul.f32 %v655, %v861
      %v962 = vmul.f32 %v656, %v866
      %v963 = vmul.f32 %v657, %v871
      %v964 = vmul.f32 %v658, %v876
      %v965 = vmul.f32 %v659, %v881
      %v966 = vmul.f32 %v660, %v886
      %v967 = vmul.f32 %v661, %v891
      %v968 = vmul.f32 %v662, %v896
      %v969 = vmul.f32 %v663, %v901
      %v970 = vmul.f32 %v664, %v906
      %v971 = vmul.f32 %v665, %v911
      %v972 = vmul.f32 %v666, %v916
      %v973 = vmul.f32 %v667, %v921
      %v974 = vpack.c.bf16 %v923, %v923
      %v975 = vpack.c.bf16 %v924, %v924
      %v976 = vpack.c.bf16 %v925, %v925
      %v977 = vpack.c.bf16 %v926, %v926
      %v978 = vpack.c.bf16 %v927, %v927
      %v979 = vpack.c.bf16 %v928, %v928
      %v980 = vpack.c.bf16 %v929, %v929
      %v981 = vpack.c.bf16 %v930, %v930
      %v982 = vpack.c.bf16 %v931, %v931
      %v983 = vpack.c.bf16 %v932, %v932
      %v984 = vpack.c.bf16 %v933, %v933
      %v985 = vpack.c.bf16 %v934, %v934
      %v986 = vpack.c.bf16 %v935, %v935
      %v987 = vpack.c.bf16 %v936, %v936
      %v988 = vpack.c.bf16 %v937, %v937
      %v989 = vpack.c.bf16 %v938, %v938
      %v990 = vpack.c.bf16 %v939, %v939
      %v991 = vpack.c.bf16 %v940, %v940
      %v992 = vpack.c.bf16 %v941, %v941
      %v993 = vpack.c.bf16 %v942, %v942
      %v994 = vpack.c.bf16 %v943, %v943
      %v995 = vpack.c.bf16 %v944, %v944
      %v996 = vpack.c.bf16 %v945, %v945
      %v997 = vpack.c.bf16 %v946, %v946
      %v998 = vpack.c.bf16 %v947, %v947
      %v999 = vpack.c.bf16 %v948, %v948
      %v1000 = vpack.c.bf16 %v949, %v949
      %v1001 = vpack.c.bf16 %v950, %v950
      %v1002 = vpack.c.bf16 %v951, %v951
      %v1003 = vpack.c.bf16 %v952, %v952
      %v1004 = vpack.c.bf16 %v953, %v953
      %v1005 = vpack.c.bf16 %v954, %v954
      %v1006 = vpack.c.bf16 %v955, %v955
      %v1007 = vpack.c.bf16 %v956, %v956
      %v1008 = vpack.c.bf16 %v957, %v957
      %v1009 = vpack.c.bf16 %v958, %v958
      %v1010 = vpack.c.bf16 %v959, %v959
      %v1011 = vpack.c.bf16 %v960, %v960
      %v1012 = vpack.c.bf16 %v961, %v961
      %v1013 = vpack.c.bf16 %v962, %v962
      %v1014 = vpack.c.bf16 %v963, %v963
      %v1015 = vpack.c.bf16 %v964, %v964
      %v1016 = vpack.c.bf16 %v965, %v965
      %v1017 = vpack.c.bf16 %v966, %v966
      %v1018 = vpack.c.bf16 %v967, %v967
      %v1019 = vpack.c.bf16 %v968, %v968
      %v1020 = vpack.c.bf16 %v969, %v969
      %v1021 = vpack.c.bf16 %v970, %v970
      %v1022 = vpack.c.bf16 %v971, %v971
      %v1023 = vpack.c.bf16 %v972, %v972
      %v1024 = vpack.c.bf16 %v973, %v973
      %vm1025 = vcmask 523264
      %1026 = vst.msk [vmem:[#allocation2] sm:$0xff] %vm1025, 0.0
      %1027 = vst.msk [vmem:[#allocation2 + $0x8] sm:$0xff] %vm1025, 0.0
      %1028 = vst.msk [vmem:[#allocation2 + $0x10] sm:$0xff] %vm1025, 0.0
      %1029 = vst.msk [vmem:[#allocation2 + $0x18] sm:$0xff] %vm1025, 0.0
      %1030 = vst.msk [vmem:[#allocation2 + $0x20] sm:$0xff] %vm1025, 0.0
      %1031 = vst.msk [vmem:[#allocation2 + $0x28] sm:$0xff] %vm1025, 0.0
      %1032 = vst.msk [vmem:[#allocation2 + $0x30] sm:$0xff] %vm1025, 0.0
      %1033 = vst.msk [vmem:[#allocation2 + $0x38] sm:$0xff] %vm1025, 0.0
      %v1034 = vld [vmem:[#allocation2] sm:$0xff]
      %v1035 = vld [vmem:[#allocation2 + $0x8] sm:$0xff]
      %v1036 = vld [vmem:[#allocation2 + $0x10] sm:$0xff]
      %v1037 = vld [vmem:[#allocation2 + $0x18] sm:$0xff]
      %v1038 = vld [vmem:[#allocation2 + $0x20] sm:$0xff]
      %v1039 = vld [vmem:[#allocation2 + $0x28] sm:$0xff]
      %v1040 = vld [vmem:[#allocation2 + $0x30] sm:$0xff]
      %v1041 = vld [vmem:[#allocation2 + $0x38] sm:$0xff]
      %v1042 = vld [vmem:[%s2] sm:$0xf]
      %v1043 = vld [vmem:[%s2 + $0x4] sm:$0xf]
      %v1044 = vld [vmem:[%s2 + $0x8] sm:$0xf]
      %v1045 = vld [vmem:[%s2 + $0xc] sm:$0xf]
      %v1046 = vld [vmem:[%s2 + $0x10] sm:$0xf]
      %v1047 = vld [vmem:[%s2 + $0x14] sm:$0xf]
      %v1048 = vld [vmem:[%s2 + $0x18] sm:$0xf]
      %v1049 = vld [vmem:[%s2 + $0x1c] sm:$0xf]
      %v1058 = vunpack.c.l.b16 %v974
      %v1059 = vunpack.c.l.b16 %v976
      %v1060 = vunpack.c.l.b16 %v978
      %v1061 = vunpack.c.l.b16 %v980
      %v1062 = vunpack.c.l.b16 %v982
      %v1063 = vunpack.c.l.b16 %v984
      %v1064 = vunpack.c.l.b16 %v986
      %v1065 = vunpack.c.l.b16 %v988
      %v1066 = vpack.c.b16 %v1059, %v1058
      %v1067 = vpack.c.b16 %v1061, %v1060
      %v1068 = vpack.c.b16 %v1063, %v1062
      %v1069 = vpack.c.b16 %v1065, %v1064
      %v1078 = vunpack.c.l.b16 %v1042
      %v1079 = vunpack.c.l.b16 %v1043
      %v1080 = vunpack.c.l.b16 %v1044
      %v1081 = vunpack.c.l.b16 %v1045
      %v1082 = vunpack.c.l.b16 %v1046
      %v1083 = vunpack.c.l.b16 %v1047
      %v1084 = vunpack.c.l.b16 %v1048
      %v1085 = vunpack.c.l.b16 %v1049
      %v1086 = vpack.c.b16 %v1079, %v1078
      %v1087 = vpack.c.b16 %v1081, %v1080
      %v1088 = vpack.c.b16 %v1083, %v1082
      %v1089 = vpack.c.b16 %v1085, %v1084
      %v1095 = vsel %vm1025, %v1066, 0
      %v1098 = vsel %vm1025, %v1067, 0
      %v1101 = vsel %vm1025, %v1068, 0
      %v1104 = vsel %vm1025, %v1069, 0
      %1106 = vmatpush.bf16.msra.mxu0 0
      %1107 = vmatpush.bf16.msra.mxu0 0
      %1108 = vmatpush.bf16.msra.mxu0 0
      %1109 = vmatpush.bf16.msra.mxu0 0
      %1110 = vmatpush.bf16.msra.mxu0 %v1089
      %1111 = vmatpush.bf16.msra.mxu0 %v1088
      %1112 = vmatpush.bf16.msra.mxu0 %v1087
      %1113 = vmatpush.bf16.msra.mxu0 %v1086
      %1114 = vmatmul.bf16.gmra.mxu0 %v1095
      %v1115 = vpop.f32.mrf.mxu0
      %v1116 = vadd.f32 0.0, %v1115
      %v1117 = vpop.f32.mrf.mxu0
      %v1118 = vadd.f32 0.0, %v1117
      %1119 = vmatmul.bf16.gmra.mxu0 %v1098
      %v1120 = vpop.f32.mrf.mxu0
      %v1121 = vadd.f32 0.0, %v1120
      %v1122 = vpop.f32.mrf.mxu0
      %v1123 = vadd.f32 0.0, %v1122
      %1124 = vmatmul.bf16.gmra.mxu0 %v1101
      %v1125 = vpop.f32.mrf.mxu0
      %v1126 = vadd.f32 0.0, %v1125
      %v1127 = vpop.f32.mrf.mxu0
      %v1128 = vadd.f32 0.0, %v1127
      %1129 = vmatmul.bf16.gmra.mxu0 %v1104
      %v1130 = vpop.f32.mrf.mxu0
      %v1131 = vadd.f32 0.0, %v1130
      %v1132 = vpop.f32.mrf.mxu0
      %v1133 = vadd.f32 0.0, %v1132
      %1134 = vdwg.mxu0
      %v1135 = vadd.f32 %v1034, %v1116
      %v1136 = vadd.f32 %v1035, %v1118
      %v1137 = vadd.f32 %v1036, %v1121
      %v1138 = vadd.f32 %v1037, %v1123
      %v1139 = vadd.f32 %v1038, %v1126
      %v1140 = vadd.f32 %v1039, %v1128
      %v1141 = vadd.f32 %v1040, %v1131
      %v1142 = vadd.f32 %v1041, %v1133
      %1143 = vst.msk [vmem:[#allocation2] sm:$0xff] %vm1025, %v1135
      %1144 = vst.msk [vmem:[#allocation2 + $0x8] sm:$0xff] %vm1025, %v1136
      %1145 = vst.msk [vmem:[#allocation2 + $0x10] sm:$0xff] %vm1025, %v1137
      %1146 = vst.msk [vmem:[#allocation2 + $0x18] sm:$0xff] %vm1025, %v1138
      %1147 = vst.msk [vmem:[#allocation2 + $0x20] sm:$0xff] %vm1025, %v1139
      %1148 = vst.msk [vmem:[#allocation2 + $0x28] sm:$0xff] %vm1025, %v1140
      %1149 = vst.msk [vmem:[#allocation2 + $0x30] sm:$0xff] %vm1025, %v1141
      %1150 = vst.msk [vmem:[#allocation2 + $0x38] sm:$0xff] %vm1025, %v1142
      %v1151 = vld [vmem:[#allocation2] sm:$0xff]
      %v1152 = vld [vmem:[#allocation2 + $0x8] sm:$0xff]
      %v1153 = vld [vmem:[#allocation2 + $0x10] sm:$0xff]
      %v1154 = vld [vmem:[#allocation2 + $0x18] sm:$0xff]
      %v1155 = vld [vmem:[#allocation2 + $0x20] sm:$0xff]
      %v1156 = vld [vmem:[#allocation2 + $0x28] sm:$0xff]
      %v1157 = vld [vmem:[#allocation2 + $0x30] sm:$0xff]
      %v1158 = vld [vmem:[#allocation2 + $0x38] sm:$0xff]
      %s1159 = scalar_lea.vmem %s2, 32
      %v1160 = vld [vmem:[%s1159] sm:$0xf]
      %v1161 = vld [vmem:[%s1159 + $0x4] sm:$0xf]
      %v1162 = vld [vmem:[%s1159 + $0x8] sm:$0xf]
      %v1163 = vld [vmem:[%s1159 + $0xc] sm:$0xf]
      %v1164 = vld [vmem:[%s1159 + $0x10] sm:$0xf]
      %v1165 = vld [vmem:[%s1159 + $0x14] sm:$0xf]
      %v1166 = vld [vmem:[%s1159 + $0x18] sm:$0xf]
      %v1167 = vld [vmem:[%s1159 + $0x1c] sm:$0xf]
      %v1176 = vunpack.c.l.b16 %v992
      %v1177 = vunpack.c.l.b16 %v993
      %v1178 = vunpack.c.l.b16 %v994
      %v1179 = vunpack.c.l.b16 %v995
      %v1180 = vunpack.c.l.b16 %v996
      %v1181 = vunpack.c.l.b16 %v997
      %v1182 = vunpack.c.l.b16 %v998
      %v1183 = vunpack.c.l.b16 %v999
      %v1184 = vpack.c.b16 %v1177, %v1176
      %v1185 = vpack.c.b16 %v1179, %v1178
      %v1186 = vpack.c.b16 %v1181, %v1180
      %v1187 = vpack.c.b16 %v1183, %v1182
      %v1196 = vunpack.c.l.b16 %v1160
      %v1197 = vunpack.c.l.b16 %v1161
      %v1198 = vunpack.c.l.b16 %v1162
      %v1199 = vunpack.c.l.b16 %v1163
      %v1200 = vunpack.c.l.b16 %v1164
      %v1201 = vunpack.c.l.b16 %v1165
      %v1202 = vunpack.c.l.b16 %v1166
      %v1203 = vunpack.c.l.b16 %v1167
      %v1204 = vpack.c.b16 %v1197, %v1196
      %v1205 = vpack.c.b16 %v1199, %v1198
      %v1206 = vpack.c.b16 %v1201, %v1200
      %v1207 = vpack.c.b16 %v1203, %v1202
      %v1213 = vsel %vm1025, %v1184, 0
      %v1216 = vsel %vm1025, %v1185, 0
      %v1219 = vsel %vm1025, %v1186, 0
      %v1222 = vsel %vm1025, %v1187, 0
      %1224 = vmatpush.bf16.msra.mxu0 0
      %1225 = vmatpush.bf16.msra.mxu0 0
      %1226 = vmatpush.bf16.msra.mxu0 0
      %1227 = vmatpush.bf16.msra.mxu0 0
      %1228 = vmatpush.bf16.msra.mxu0 %v1207
      %1229 = vmatpush.bf16.msra.mxu0 %v1206
      %1230 = vmatpush.bf16.msra.mxu0 %v1205
      %1231 = vmatpush.bf16.msra.mxu0 %v1204
      %1232 = vmatmul.bf16.gmra.mxu0 %v1213
      %v1233 = vpop.f32.mrf.mxu0
      %v1234 = vadd.f32 0.0, %v1233
      %v1235 = vpop.f32.mrf.mxu0
      %v1236 = vadd.f32 0.0, %v1235
      %1237 = vmatmul.bf16.gmra.mxu0 %v1216
      %v1238 = vpop.f32.mrf.mxu0
      %v1239 = vadd.f32 0.0, %v1238
      %v1240 = vpop.f32.mrf.mxu0
      %v1241 = vadd.f32 0.0, %v1240
      %1242 = vmatmul.bf16.gmra.mxu0 %v1219
      %v1243 = vpop.f32.mrf.mxu0
      %v1244 = vadd.f32 0.0, %v1243
      %v1245 = vpop.f32.mrf.mxu0
      %v1246 = vadd.f32 0.0, %v1245
      %1247 = vmatmul.bf16.gmra.mxu0 %v1222
      %v1248 = vpop.f32.mrf.mxu0
      %v1249 = vadd.f32 0.0, %v1248
      %v1250 = vpop.f32.mrf.mxu0
      %v1251 = vadd.f32 0.0, %v1250
      %1252 = vdwg.mxu0
      %v1253 = vadd.f32 %v1151, %v1234
      %v1254 = vadd.f32 %v1152, %v1236
      %v1255 = vadd.f32 %v1153, %v1239
      %v1256 = vadd.f32 %v1154, %v1241
      %v1257 = vadd.f32 %v1155, %v1244
      %v1258 = vadd.f32 %v1156, %v1246
      %v1259 = vadd.f32 %v1157, %v1249
      %v1260 = vadd.f32 %v1158, %v1251
      %1261 = vst.msk [vmem:[#allocation2] sm:$0xff] %vm1025, %v1253
      %1262 = vst.msk [vmem:[#allocation2 + $0x8] sm:$0xff] %vm1025, %v1254
      %1263 = vst.msk [vmem:[#allocation2 + $0x10] sm:$0xff] %vm1025, %v1255
      %1264 = vst.msk [vmem:[#allocation2 + $0x18] sm:$0xff] %vm1025, %v1256
      %1265 = vst.msk [vmem:[#allocation2 + $0x20] sm:$0xff] %vm1025, %v1257
      %1266 = vst.msk [vmem:[#allocation2 + $0x28] sm:$0xff] %vm1025, %v1258
      %1267 = vst.msk [vmem:[#allocation2 + $0x30] sm:$0xff] %vm1025, %v1259
      %1268 = vst.msk [vmem:[#allocation2 + $0x38] sm:$0xff] %vm1025, %v1260
      %vm1269 = vsmask.f32 3328
      %vm1270 = vsmask.f32 7440
      %vm1271 = vmor %vm1269, %vm1270
      %v1273 = vshrl.u32 %v974, 16
      %v1275 = vrot.slane %v1273, 4
      %v1276 = vshll.u32 %v974, 16
      %v1278 = vrot.slane %v1276, 5
      %v1279 = vor.u32 %v1275, %v1278
      %v1280 = vrot.slane %v1279, 4
      %v1282 = vshll.u32 %v975, 16
      %v1284 = vrot.slane %v1282, 5
      %v1285 = vsel %vm1271, %v1280, %v1284
      %v1287 = vshrl.u32 %v976, 16
      %v1289 = vrot.slane %v1287, 4
      %v1290 = vshll.u32 %v976, 16
      %v1292 = vrot.slane %v1290, 5
      %v1293 = vor.u32 %v1289, %v1292
      %v1294 = vrot.slane %v1293, 4
      %v1296 = vshll.u32 %v977, 16
      %v1298 = vrot.slane %v1296, 5
      %v1299 = vsel %vm1271, %v1294, %v1298
      %v1301 = vshrl.u32 %v978, 16
      %v1303 = vrot.slane %v1301, 4
      %v1304 = vshll.u32 %v978, 16
      %v1306 = vrot.slane %v1304, 5
      %v1307 = vor.u32 %v1303, %v1306
      %v1308 = vrot.slane %v1307, 4
      %v1310 = vshll.u32 %v979, 16
      %v1312 = vrot.slane %v1310, 5
      %v1313 = vsel %vm1271, %v1308, %v1312
      %v1315 = vshrl.u32 %v980, 16
      %v1317 = vrot.slane %v1315, 4
      %v1318 = vshll.u32 %v980, 16
      %v1320 = vrot.slane %v1318, 5
      %v1321 = vor.u32 %v1317, %v1320
      %v1322 = vrot.slane %v1321, 4
      %v1324 = vshll.u32 %v981, 16
      %v1326 = vrot.slane %v1324, 5
      %v1327 = vsel %vm1271, %v1322, %v1326
      %v1329 = vshrl.u32 %v982, 16
      %v1331 = vrot.slane %v1329, 4
      %v1332 = vshll.u32 %v982, 16
      %v1334 = vrot.slane %v1332, 5
      %v1335 = vor.u32 %v1331, %v1334
      %v1336 = vrot.slane %v1335, 4
      %v1338 = vshll.u32 %v983, 16
      %v1340 = vrot.slane %v1338, 5
      %v1341 = vsel %vm1271, %v1336, %v1340
      %v1343 = vshrl.u32 %v984, 16
      %v1345 = vrot.slane %v1343, 4
      %v1346 = vshll.u32 %v984, 16
      %v1348 = vrot.slane %v1346, 5
      %v1349 = vor.u32 %v1345, %v1348
      %v1350 = vrot.slane %v1349, 4
      %v1352 = vshll.u32 %v985, 16
      %v1354 = vrot.slane %v1352, 5
      %v1355 = vsel %vm1271, %v1350, %v1354
      %v1357 = vshrl.u32 %v986, 16
      %v1359 = vrot.slane %v1357, 4
      %v1360 = vshll.u32 %v986, 16
      %v1362 = vrot.slane %v1360, 5
      %v1363 = vor.u32 %v1359, %v1362
      %v1364 = vrot.slane %v1363, 4
      %v1366 = vshll.u32 %v987, 16
      %v1368 = vrot.slane %v1366, 5
      %v1369 = vsel %vm1271, %v1364, %v1368
      %v1371 = vshrl.u32 %v988, 16
      %v1373 = vrot.slane %v1371, 4
      %v1374 = vshll.u32 %v988, 16
      %v1376 = vrot.slane %v1374, 5
      %v1377 = vor.u32 %v1373, %v1376
      %v1378 = vrot.slane %v1377, 4
      %v1380 = vshll.u32 %v989, 16
      %v1382 = vrot.slane %v1380, 5
      %v1383 = vsel %vm1271, %v1378, %v1382
      %v1384 = vld [vmem:[#allocation2] sm:$0xff]
      %v1385 = vld [vmem:[#allocation2 + $0x8] sm:$0xff]
      %v1386 = vld [vmem:[#allocation2 + $0x10] sm:$0xff]
      %v1387 = vld [vmem:[#allocation2 + $0x18] sm:$0xff]
      %v1388 = vld [vmem:[#allocation2 + $0x20] sm:$0xff]
      %v1389 = vld [vmem:[#allocation2 + $0x28] sm:$0xff]
      %v1390 = vld [vmem:[#allocation2 + $0x30] sm:$0xff]
      %v1391 = vld [vmem:[#allocation2 + $0x38] sm:$0xff]
      %s1392 = scalar_lea.vmem %s2, 64
      %v1393 = vld [vmem:[%s1392] sm:$0xf]
      %v1394 = vld [vmem:[%s1392 + $0x4] sm:$0xf]
      %v1395 = vld [vmem:[%s1392 + $0x8] sm:$0xf]
      %v1396 = vld [vmem:[%s1392 + $0xc] sm:$0xf]
      %v1397 = vld [vmem:[%s1392 + $0x10] sm:$0xf]
      %v1398 = vld [vmem:[%s1392 + $0x14] sm:$0xf]
      %v1399 = vld [vmem:[%s1392 + $0x18] sm:$0xf]
      %v1400 = vld [vmem:[%s1392 + $0x1c] sm:$0xf]
      %v1401 = vunpack.c.l.b16 %v1285
      %v1402 = vunpack.c.l.b16 %v1299
      %v1403 = vunpack.c.l.b16 %v1313
      %v1404 = vunpack.c.l.b16 %v1327
      %v1405 = vunpack.c.l.b16 %v1341
      %v1406 = vunpack.c.l.b16 %v1355
      %v1407 = vunpack.c.l.b16 %v1369
      %v1408 = vunpack.c.l.b16 %v1383
      %v1409 = vpack.c.b16 %v1402, %v1401
      %v1410 = vpack.c.b16 %v1404, %v1403
      %v1411 = vpack.c.b16 %v1406, %v1405
      %v1412 = vpack.c.b16 %v1408, %v1407
      %v1421 = vunpack.c.l.b16 %v1393
      %v1422 = vunpack.c.l.b16 %v1394
      %v1423 = vunpack.c.l.b16 %v1395
      %v1424 = vunpack.c.l.b16 %v1396
      %v1425 = vunpack.c.l.b16 %v1397
      %v1426 = vunpack.c.l.b16 %v1398
      %v1427 = vunpack.c.l.b16 %v1399
      %v1428 = vunpack.c.l.b16 %v1400
      %v1429 = vpack.c.b16 %v1422, %v1421
      %v1430 = vpack.c.b16 %v1424, %v1423
      %v1431 = vpack.c.b16 %v1426, %v1425
      %v1432 = vpack.c.b16 %v1428, %v1427
      %v1438 = vsel %vm1025, %v1409, 0
      %v1441 = vsel %vm1025, %v1410, 0
      %v1444 = vsel %vm1025, %v1411, 0
      %v1447 = vsel %vm1025, %v1412, 0
      %1449 = vmatpush.bf16.msra.mxu0 0
      %1450 = vmatpush.bf16.msra.mxu0 0
      %1451 = vmatpush.bf16.msra.mxu0 0
      %1452 = vmatpush.bf16.msra.mxu0 0
      %1453 = vmatpush.bf16.msra.mxu0 %v1432
      %1454 = vmatpush.bf16.msra.mxu0 %v1431
      %1455 = vmatpush.bf16.msra.mxu0 %v1430
      %1456 = vmatpush.bf16.msra.mxu0 %v1429
      %1457 = vmatmul.bf16.gmra.mxu0 %v1438
      %v1458 = vpop.f32.mrf.mxu0
      %v1459 = vadd.f32 0.0, %v1458
      %v1460 = vpop.f32.mrf.mxu0
      %v1461 = vadd.f32 0.0, %v1460
      %1462 = vmatmul.bf16.gmra.mxu0 %v1441
      %v1463 = vpop.f32.mrf.mxu0
      %v1464 = vadd.f32 0.0, %v1463
      %v1465 = vpop.f32.mrf.mxu0
      %v1466 = vadd.f32 0.0, %v1465
      %1467 = vmatmul.bf16.gmra.mxu0 %v1444
      %v1468 = vpop.f32.mrf.mxu0
      %v1469 = vadd.f32 0.0, %v1468
      %v1470 = vpop.f32.mrf.mxu0
      %v1471 = vadd.f32 0.0, %v1470
      %1472 = vmatmul.bf16.gmra.mxu0 %v1447
      %v1473 = vpop.f32.mrf.mxu0
      %v1474 = vadd.f32 0.0, %v1473
      %v1475 = vpop.f32.mrf.mxu0
      %v1476 = vadd.f32 0.0, %v1475
      %1477 = vdwg.mxu0
      %v1478 = vadd.f32 %v1384, %v1459
      %v1479 = vadd.f32 %v1385, %v1461
      %v1480 = vadd.f32 %v1386, %v1464
      %v1481 = vadd.f32 %v1387, %v1466
      %v1482 = vadd.f32 %v1388, %v1469
      %v1483 = vadd.f32 %v1389, %v1471
      %v1484 = vadd.f32 %v1390, %v1474
      %v1485 = vadd.f32 %v1391, %v1476
      %1486 = vst.msk [vmem:[#allocation2] sm:$0xff] %vm1025, %v1478
      %1487 = vst.msk [vmem:[#allocation2 + $0x8] sm:$0xff] %vm1025, %v1479
      %1488 = vst.msk [vmem:[#allocation2 + $0x10] sm:$0xff] %vm1025, %v1480
      %1489 = vst.msk [vmem:[#allocation2 + $0x18] sm:$0xff] %vm1025, %v1481
      %1490 = vst.msk [vmem:[#allocation2 + $0x20] sm:$0xff] %vm1025, %v1482
      %1491 = vst.msk [vmem:[#allocation2 + $0x28] sm:$0xff] %vm1025, %v1483
      %1492 = vst.msk [vmem:[#allocation2 + $0x30] sm:$0xff] %vm1025, %v1484
      %1493 = vst.msk [vmem:[#allocation2 + $0x38] sm:$0xff] %vm1025, %v1485
      %v1494 = vld [vmem:[#allocation2] sm:$0xff]
      %v1495 = vld [vmem:[#allocation2 + $0x8] sm:$0xff]
      %v1496 = vld [vmem:[#allocation2 + $0x10] sm:$0xff]
      %v1497 = vld [vmem:[#allocation2 + $0x18] sm:$0xff]
      %v1498 = vld [vmem:[#allocation2 + $0x20] sm:$0xff]
      %v1499 = vld [vmem:[#allocation2 + $0x28] sm:$0xff]
      %v1500 = vld [vmem:[#allocation2 + $0x30] sm:$0xff]
      %v1501 = vld [vmem:[#allocation2 + $0x38] sm:$0xff]
      %s1502 = scalar_lea.vmem %s2, 96
      %v1503 = vld [vmem:[%s1502] sm:$0xf]
      %v1504 = vld [vmem:[%s1502 + $0x4] sm:$0xf]
      %v1505 = vld [vmem:[%s1502 + $0x8] sm:$0xf]
      %v1506 = vld [vmem:[%s1502 + $0xc] sm:$0xf]
      %v1507 = vld [vmem:[%s1502 + $0x10] sm:$0xf]
      %v1508 = vld [vmem:[%s1502 + $0x14] sm:$0xf]
      %v1509 = vld [vmem:[%s1502 + $0x18] sm:$0xf]
      %v1510 = vld [vmem:[%s1502 + $0x1c] sm:$0xf]
      %v1519 = vunpack.c.l.b16 %v1001
      %v1520 = vunpack.c.l.b16 %v1003
      %v1521 = vunpack.c.l.b16 %v1005
      %v1522 = vunpack.c.l.b16 %v1007
      %v1523 = vunpack.c.l.b16 %v1009
      %v1524 = vunpack.c.l.b16 %v1011
      %v1525 = vunpack.c.l.b16 %v1013
      %v1526 = vunpack.c.l.b16 %v1015
      %v1527 = vpack.c.b16 %v1520, %v1519
      %v1528 = vpack.c.b16 %v1522, %v1521
      %v1529 = vpack.c.b16 %v1524, %v1523
      %v1530 = vpack.c.b16 %v1526, %v1525
      %v1539 = vunpack.c.l.b16 %v1503
      %v1540 = vunpack.c.l.b16 %v1504
      %v1541 = vunpack.c.l.b16 %v1505
      %v1542 = vunpack.c.l.b16 %v1506
      %v1543 = vunpack.c.l.b16 %v1507
      %v1544 = vunpack.c.l.b16 %v1508
      %v1545 = vunpack.c.l.b16 %v1509
      %v1546 = vunpack.c.l.b16 %v1510
      %v1547 = vpack.c.b16 %v1540, %v1539
      %v1548 = vpack.c.b16 %v1542, %v1541
      %v1549 = vpack.c.b16 %v1544, %v1543
      %v1550 = vpack.c.b16 %v1546, %v1545
      %v1556 = vsel %vm1025, %v1527, 0
      %v1559 = vsel %vm1025, %v1528, 0
      %v1562 = vsel %vm1025, %v1529, 0
      %v1565 = vsel %vm1025, %v1530, 0
      %1567 = vmatpush.bf16.msra.mxu0 0
      %1568 = vmatpush.bf16.msra.mxu0 0
      %1569 = vmatpush.bf16.msra.mxu0 0
      %1570 = vmatpush.bf16.msra.mxu0 0
      %1571 = vmatpush.bf16.msra.mxu0 %v1550
      %1572 = vmatpush.bf16.msra.mxu0 %v1549
      %1573 = vmatpush.bf16.msra.mxu0 %v1548
      %1574 = vmatpush.bf16.msra.mxu0 %v1547
      %1575 = vmatmul.bf16.gmra.mxu0 %v1556
      %v1576 = vpop.f32.mrf.mxu0
      %v1577 = vadd.f32 0.0, %v1576
      %v1578 = vpop.f32.mrf.mxu0
      %v1579 = vadd.f32 0.0, %v1578
      %1580 = vmatmul.bf16.gmra.mxu0 %v1559
      %v1581 = vpop.f32.mrf.mxu0
      %v1582 = vadd.f32 0.0, %v1581
      %v1583 = vpop.f32.mrf.mxu0
      %v1584 = vadd.f32 0.0, %v1583
      %1585 = vmatmul.bf16.gmra.mxu0 %v1562
      %v1586 = vpop.f32.mrf.mxu0
      %v1587 = vadd.f32 0.0, %v1586
      %v1588 = vpop.f32.mrf.mxu0
      %v1589 = vadd.f32 0.0, %v1588
      %1590 = vmatmul.bf16.gmra.mxu0 %v1565
      %v1591 = vpop.f32.mrf.mxu0
      %v1592 = vadd.f32 0.0, %v1591
      %v1593 = vpop.f32.mrf.mxu0
      %v1594 = vadd.f32 0.0, %v1593
      %1595 = vdwg.mxu0
      %v1596 = vadd.f32 %v1494, %v1577
      %v1597 = vadd.f32 %v1495, %v1579
      %v1598 = vadd.f32 %v1496, %v1582
      %v1599 = vadd.f32 %v1497, %v1584
      %v1600 = vadd.f32 %v1498, %v1587
      %v1601 = vadd.f32 %v1499, %v1589
      %v1602 = vadd.f32 %v1500, %v1592
      %v1603 = vadd.f32 %v1501, %v1594
      %1604 = vst.msk [vmem:[#allocation2] sm:$0xff] %vm1025, %v1596
      %1605 = vst.msk [vmem:[#allocation2 + $0x8] sm:$0xff] %vm1025, %v1597
      %1606 = vst.msk [vmem:[#allocation2 + $0x10] sm:$0xff] %vm1025, %v1598
      %1607 = vst.msk [vmem:[#allocation2 + $0x18] sm:$0xff] %vm1025, %v1599
      %1608 = vst.msk [vmem:[#allocation2 + $0x20] sm:$0xff] %vm1025, %v1600
      %1609 = vst.msk [vmem:[#allocation2 + $0x28] sm:$0xff] %vm1025, %v1601
      %1610 = vst.msk [vmem:[#allocation2 + $0x30] sm:$0xff] %vm1025, %v1602
      %1611 = vst.msk [vmem:[#allocation2 + $0x38] sm:$0xff] %vm1025, %v1603
      %v1612 = vld [vmem:[#allocation2] sm:$0xff]
      %v1613 = vld [vmem:[#allocation2 + $0x8] sm:$0xff]
      %v1614 = vld [vmem:[#allocation2 + $0x10] sm:$0xff]
      %v1615 = vld [vmem:[#allocation2 + $0x18] sm:$0xff]
      %v1616 = vld [vmem:[#allocation2 + $0x20] sm:$0xff]
      %v1617 = vld [vmem:[#allocation2 + $0x28] sm:$0xff]
      %v1618 = vld [vmem:[#allocation2 + $0x30] sm:$0xff]
      %v1619 = vld [vmem:[#allocation2 + $0x38] sm:$0xff]
      %s1620 = scalar_lea.vmem %s2, 128
      %v1621 = vld [vmem:[%s1620] sm:$0xf]
      %v1622 = vld [vmem:[%s1620 + $0x4] sm:$0xf]
      %v1623 = vld [vmem:[%s1620 + $0x8] sm:$0xf]
      %v1624 = vld [vmem:[%s1620 + $0xc] sm:$0xf]
      %v1625 = vld [vmem:[%s1620 + $0x10] sm:$0xf]
      %v1626 = vld [vmem:[%s1620 + $0x14] sm:$0xf]
      %v1627 = vld [vmem:[%s1620 + $0x18] sm:$0xf]
      %v1628 = vld [vmem:[%s1620 + $0x1c] sm:$0xf]
      %v1637 = vunpack.c.l.b16 %v1017
      %v1638 = vunpack.c.l.b16 %v1018
      %v1639 = vunpack.c.l.b16 %v1019
      %v1640 = vunpack.c.l.b16 %v1020
      %v1641 = vunpack.c.l.b16 %v1021
      %v1642 = vunpack.c.l.b16 %v1022
      %v1643 = vunpack.c.l.b16 %v1023
      %v1644 = vunpack.c.l.b16 %v1024
      %v1645 = vpack.c.b16 %v1638, %v1637
      %v1646 = vpack.c.b16 %v1640, %v1639
      %v1647 = vpack.c.b16 %v1642, %v1641
      %v1648 = vpack.c.b16 %v1644, %v1643
      %v1657 = vunpack.c.l.b16 %v1621
      %v1658 = vunpack.c.l.b16 %v1622
      %v1659 = vunpack.c.l.b16 %v1623
      %v1660 = vunpack.c.l.b16 %v1624
      %v1661 = vunpack.c.l.b16 %v1625
      %v1662 = vunpack.c.l.b16 %v1626
      %v1663 = vunpack.c.l.b16 %v1627
      %v1664 = vunpack.c.l.b16 %v1628
      %v1665 = vpack.c.b16 %v1658, %v1657
      %v1666 = vpack.c.b16 %v1660, %v1659
      %v1667 = vpack.c.b16 %v1662, %v1661
      %v1668 = vpack.c.b16 %v1664, %v1663
      %v1674 = vsel %vm1025, %v1645, 0
      %v1677 = vsel %vm1025, %v1646, 0
      %v1680 = vsel %vm1025, %v1647, 0
      %v1683 = vsel %vm1025, %v1648, 0
      %1685 = vmatpush.bf16.msra.mxu0 0
      %1686 = vmatpush.bf16.msra.mxu0 0
      %1687 = vmatpush.bf16.msra.mxu0 0
      %1688 = vmatpush.bf16.msra.mxu0 0
      %1689 = vmatpush.bf16.msra.mxu0 %v1668
      %1690 = vmatpush.bf16.msra.mxu0 %v1667
      %1691 = vmatpush.bf16.msra.mxu0 %v1666
      %1692 = vmatpush.bf16.msra.mxu0 %v1665
      %1693 = vmatmul.bf16.gmra.mxu0 %v1674
      %v1694 = vpop.f32.mrf.mxu0
      %v1695 = vadd.f32 0.0, %v1694
      %v1696 = vpop.f32.mrf.mxu0
      %v1697 = vadd.f32 0.0, %v1696
      %1698 = vmatmul.bf16.gmra.mxu0 %v1677
      %v1699 = vpop.f32.mrf.mxu0
      %v1700 = vadd.f32 0.0, %v1699
      %v1701 = vpop.f32.mrf.mxu0
      %v1702 = vadd.f32 0.0, %v1701
      %1703 = vmatmul.bf16.gmra.mxu0 %v1680
      %v1704 = vpop.f32.mrf.mxu0
      %v1705 = vadd.f32 0.0, %v1704
      %v1706 = vpop.f32.mrf.mxu0
      %v1707 = vadd.f32 0.0, %v1706
      %1708 = vmatmul.bf16.gmra.mxu0 %v1683
      %v1709 = vpop.f32.mrf.mxu0
      %v1710 = vadd.f32 0.0, %v1709
      %v1711 = vpop.f32.mrf.mxu0
      %v1712 = vadd.f32 0.0, %v1711
      %1713 = vdwg.mxu0
      %v1714 = vadd.f32 %v1612, %v1695
      %v1715 = vadd.f32 %v1613, %v1697
      %v1716 = vadd.f32 %v1614, %v1700
      %v1717 = vadd.f32 %v1615, %v1702
      %v1718 = vadd.f32 %v1616, %v1705
      %v1719 = vadd.f32 %v1617, %v1707
      %v1720 = vadd.f32 %v1618, %v1710
      %v1721 = vadd.f32 %v1619, %v1712
      %1722 = vst.msk [vmem:[#allocation2] sm:$0xff] %vm1025, %v1714
      %1723 = vst.msk [vmem:[#allocation2 + $0x8] sm:$0xff] %vm1025, %v1715
      %1724 = vst.msk [vmem:[#allocation2 + $0x10] sm:$0xff] %vm1025, %v1716
      %1725 = vst.msk [vmem:[#allocation2 + $0x18] sm:$0xff] %vm1025, %v1717
      %1726 = vst.msk [vmem:[#allocation2 + $0x20] sm:$0xff] %vm1025, %v1718
      %1727 = vst.msk [vmem:[#allocation2 + $0x28] sm:$0xff] %vm1025, %v1719
      %1728 = vst.msk [vmem:[#allocation2 + $0x30] sm:$0xff] %vm1025, %v1720
      %1729 = vst.msk [vmem:[#allocation2 + $0x38] sm:$0xff] %vm1025, %v1721
      %v1731 = vshrl.u32 %v1001, 16
      %v1733 = vrot.slane %v1731, 4
      %v1734 = vshll.u32 %v1001, 16
      %v1736 = vrot.slane %v1734, 5
      %v1737 = vor.u32 %v1733, %v1736
      %v1738 = vrot.slane %v1737, 4
      %v1740 = vshll.u32 %v1002, 16
      %v1742 = vrot.slane %v1740, 5
      %v1743 = vsel %vm1271, %v1738, %v1742
      %v1745 = vshrl.u32 %v1003, 16
      %v1747 = vrot.slane %v1745, 4
      %v1748 = vshll.u32 %v1003, 16
      %v1750 = vrot.slane %v1748, 5
      %v1751 = vor.u32 %v1747, %v1750
      %v1752 = vrot.slane %v1751, 4
      %v1754 = vshll.u32 %v1004, 16
      %v1756 = vrot.slane %v1754, 5
      %v1757 = vsel %vm1271, %v1752, %v1756
      %v1759 = vshrl.u32 %v1005, 16
      %v1761 = vrot.slane %v1759, 4
      %v1762 = vshll.u32 %v1005, 16
      %v1764 = vrot.slane %v1762, 5
      %v1765 = vor.u32 %v1761, %v1764
      %v1766 = vrot.slane %v1765, 4
      %v1768 = vshll.u32 %v1006, 16
      %v1770 = vrot.slane %v1768, 5
      %v1771 = vsel %vm1271, %v1766, %v1770
      %v1773 = vshrl.u32 %v1007, 16
      %v1775 = vrot.slane %v1773, 4
      %v1776 = vshll.u32 %v1007, 16
      %v1778 = vrot.slane %v1776, 5
      %v1779 = vor.u32 %v1775, %v1778
      %v1780 = vrot.slane %v1779, 4
      %v1782 = vshll.u32 %v1008, 16
      %v1784 = vrot.slane %v1782, 5
      %v1785 = vsel %vm1271, %v1780, %v1784
      %v1787 = vshrl.u32 %v1009, 16
      %v1789 = vrot.slane %v1787, 4
      %v1790 = vshll.u32 %v1009, 16
      %v1792 = vrot.slane %v1790, 5
      %v1793 = vor.u32 %v1789, %v1792
      %v1794 = vrot.slane %v1793, 4
      %v1796 = vshll.u32 %v1010, 16
      %v1798 = vrot.slane %v1796, 5
      %v1799 = vsel %vm1271, %v1794, %v1798
      %v1801 = vshrl.u32 %v1011, 16
      %v1803 = vrot.slane %v1801, 4
      %v1804 = vshll.u32 %v1011, 16
      %v1806 = vrot.slane %v1804, 5
      %v1807 = vor.u32 %v1803, %v1806
      %v1808 = vrot.slane %v1807, 4
      %v1810 = vshll.u32 %v1012, 16
      %v1812 = vrot.slane %v1810, 5
      %v1813 = vsel %vm1271, %v1808, %v1812
      %v1815 = vshrl.u32 %v1013, 16
      %v1817 = vrot.slane %v1815, 4
      %v1818 = vshll.u32 %v1013, 16
      %v1820 = vrot.slane %v1818, 5
      %v1821 = vor.u32 %v1817, %v1820
      %v1822 = vrot.slane %v1821, 4
      %v1824 = vshll.u32 %v1014, 16
      %v1826 = vrot.slane %v1824, 5
      %v1827 = vsel %vm1271, %v1822, %v1826
      %v1829 = vshrl.u32 %v1015, 16
      %v1831 = vrot.slane %v1829, 4
      %v1832 = vshll.u32 %v1015, 16
      %v1834 = vrot.slane %v1832, 5
      %v1835 = vor.u32 %v1831, %v1834
      %v1836 = vrot.slane %v1835, 4
      %v1838 = vshll.u32 %v1016, 16
      %v1840 = vrot.slane %v1838, 5
      %v1841 = vsel %vm1271, %v1836, %v1840
      %v1842 = vld [vmem:[#allocation2] sm:$0xff]
      %v1843 = vld [vmem:[#allocation2 + $0x8] sm:$0xff]
      %v1844 = vld [vmem:[#allocation2 + $0x10] sm:$0xff]
      %v1845 = vld [vmem:[#allocation2 + $0x18] sm:$0xff]
      %v1846 = vld [vmem:[#allocation2 + $0x20] sm:$0xff]
      %v1847 = vld [vmem:[#allocation2 + $0x28] sm:$0xff]
      %v1848 = vld [vmem:[#allocation2 + $0x30] sm:$0xff]
      %v1849 = vld [vmem:[#allocation2 + $0x38] sm:$0xff]
      %s1850 = scalar_lea.vmem %s2, 160
      %v1851 = vld [vmem:[%s1850] sm:$0xf]
      %v1852 = vld [vmem:[%s1850 + $0x4] sm:$0xf]
      %v1853 = vld [vmem:[%s1850 + $0x8] sm:$0xf]
      %v1854 = vld [vmem:[%s1850 + $0xc] sm:$0xf]
      %v1855 = vld [vmem:[%s1850 + $0x10] sm:$0xf]
      %v1856 = vld [vmem:[%s1850 + $0x14] sm:$0xf]
      %v1857 = vld [vmem:[%s1850 + $0x18] sm:$0xf]
      %v1858 = vld [vmem:[%s1850 + $0x1c] sm:$0xf]
      %v1859 = vunpack.c.l.b16 %v1743
      %v1860 = vunpack.c.l.b16 %v1757
      %v1861 = vunpack.c.l.b16 %v1771
      %v1862 = vunpack.c.l.b16 %v1785
      %v1863 = vunpack.c.l.b16 %v1799
      %v1864 = vunpack.c.l.b16 %v1813
      %v1865 = vunpack.c.l.b16 %v1827
      %v1866 = vunpack.c.l.b16 %v1841
      %v1867 = vpack.c.b16 %v1860, %v1859
      %v1868 = vpack.c.b16 %v1862, %v1861
      %v1869 = vpack.c.b16 %v1864, %v1863
      %v1870 = vpack.c.b16 %v1866, %v1865
      %v1879 = vunpack.c.l.b16 %v1851
      %v1880 = vunpack.c.l.b16 %v1852
      %v1881 = vunpack.c.l.b16 %v1853
      %v1882 = vunpack.c.l.b16 %v1854
      %v1883 = vunpack.c.l.b16 %v1855
      %v1884 = vunpack.c.l.b16 %v1856
      %v1885 = vunpack.c.l.b16 %v1857
      %v1886 = vunpack.c.l.b16 %v1858
      %v1887 = vpack.c.b16 %v1880, %v1879
      %v1888 = vpack.c.b16 %v1882, %v1881
      %v1889 = vpack.c.b16 %v1884, %v1883
      %v1890 = vpack.c.b16 %v1886, %v1885
      %v1896 = vsel %vm1025, %v1867, 0
      %v1899 = vsel %vm1025, %v1868, 0
      %v1902 = vsel %vm1025, %v1869, 0
      %v1905 = vsel %vm1025, %v1870, 0
      %1907 = vmatpush.bf16.msra.mxu0 0
      %1908 = vmatpush.bf16.msra.mxu0 0
      %1909 = vmatpush.bf16.msra.mxu0 0
      %1910 = vmatpush.bf16.msra.mxu0 0
      %1911 = vmatpush.bf16.msra.mxu0 %v1890
      %1912 = vmatpush.bf16.msra.mxu0 %v1889
      %1913 = vmatpush.bf16.msra.mxu0 %v1888
      %1914 = vmatpush.bf16.msra.mxu0 %v1887
      %1915 = vmatmul.bf16.gmra.mxu0 %v1896
      %v1916 = vpop.f32.mrf.mxu0
      %v1917 = vadd.f32 0.0, %v1916
      %v1918 = vpop.f32.mrf.mxu0
      %v1919 = vadd.f32 0.0, %v1918
      %1920 = vmatmul.bf16.gmra.mxu0 %v1899
      %v1921 = vpop.f32.mrf.mxu0
      %v1922 = vadd.f32 0.0, %v1921
      %v1923 = vpop.f32.mrf.mxu0
      %v1924 = vadd.f32 0.0, %v1923
      %1925 = vmatmul.bf16.gmra.mxu0 %v1902
      %v1926 = vpop.f32.mrf.mxu0
      %v1927 = vadd.f32 0.0, %v1926
      %v1928 = vpop.f32.mrf.mxu0
      %v1929 = vadd.f32 0.0, %v1928
      %1930 = vmatmul.bf16.gmra.mxu0 %v1905
      %v1931 = vpop.f32.mrf.mxu0
      %v1932 = vadd.f32 0.0, %v1931
      %v1933 = vpop.f32.mrf.mxu0
      %v1934 = vadd.f32 0.0, %v1933
      %1935 = vdwg.mxu0
      %v1936 = vadd.f32 %v1842, %v1917
      %v1937 = vadd.f32 %v1843, %v1919
      %v1938 = vadd.f32 %v1844, %v1922
      %v1939 = vadd.f32 %v1845, %v1924
      %v1940 = vadd.f32 %v1846, %v1927
      %v1941 = vadd.f32 %v1847, %v1929
      %v1942 = vadd.f32 %v1848, %v1932
      %v1943 = vadd.f32 %v1849, %v1934
      %1944 = vst.msk [vmem:[#allocation2] sm:$0xff] %vm1025, %v1936
      %1945 = vst.msk [vmem:[#allocation2 + $0x8] sm:$0xff] %vm1025, %v1937
      %1946 = vst.msk [vmem:[#allocation2 + $0x10] sm:$0xff] %vm1025, %v1938
      %1947 = vst.msk [vmem:[#allocation2 + $0x18] sm:$0xff] %vm1025, %v1939
      %1948 = vst.msk [vmem:[#allocation2 + $0x20] sm:$0xff] %vm1025, %v1940
      %1949 = vst.msk [vmem:[#allocation2 + $0x28] sm:$0xff] %vm1025, %v1941
      %1950 = vst.msk [vmem:[#allocation2 + $0x30] sm:$0xff] %vm1025, %v1942
      %1951 = vst.msk [vmem:[#allocation2 + $0x38] sm:$0xff] %vm1025, %v1943
      %v1952 = vld [vmem:[#allocation2] sm:$0xff]
      %v1953 = vld [vmem:[#allocation2 + $0x8] sm:$0xff]
      %v1954 = vld [vmem:[#allocation2 + $0x10] sm:$0xff]
      %v1955 = vld [vmem:[#allocation2 + $0x18] sm:$0xff]
      %v1956 = vld [vmem:[#allocation2 + $0x20] sm:$0xff]
      %v1957 = vld [vmem:[#allocation2 + $0x28] sm:$0xff]
      %v1958 = vld [vmem:[#allocation2 + $0x30] sm:$0xff]
      %v1959 = vld [vmem:[#allocation2 + $0x38] sm:$0xff]
      %s1960 = scalar_lea.vmem %s2, 192
      %v1961 = vld [vmem:[%s1960] sm:$0xf]
      %v1962 = vld [vmem:[%s1960 + $0x4] sm:$0xf]
      %v1963 = vld [vmem:[%s1960 + $0x8] sm:$0xf]
      %v1964 = vld [vmem:[%s1960 + $0xc] sm:$0xf]
      %v1965 = vld [vmem:[%s1960 + $0x10] sm:$0xf]
      %v1966 = vld [vmem:[%s1960 + $0x14] sm:$0xf]
      %v1967 = vld [vmem:[%s1960 + $0x18] sm:$0xf]
      %v1968 = vld [vmem:[%s1960 + $0x1c] sm:$0xf]
      %v1970 = vunpack.c.l.b16 %v990
      %v1971 = vpack.c.b16 %v1060, %v1059
      %v1972 = vpack.c.b16 %v1062, %v1061
      %v1973 = vpack.c.b16 %v1064, %v1063
      %v1974 = vpack.c.b16 %v1970, %v1065
      %v1983 = vunpack.c.l.b16 %v1961
      %v1984 = vunpack.c.l.b16 %v1962
      %v1985 = vunpack.c.l.b16 %v1963
      %v1986 = vunpack.c.l.b16 %v1964
      %v1987 = vunpack.c.l.b16 %v1965
      %v1988 = vunpack.c.l.b16 %v1966
      %v1989 = vunpack.c.l.b16 %v1967
      %v1990 = vunpack.c.l.b16 %v1968
      %v1991 = vpack.c.b16 %v1984, %v1983
      %v1992 = vpack.c.b16 %v1986, %v1985
      %v1993 = vpack.c.b16 %v1988, %v1987
      %v1994 = vpack.c.b16 %v1990, %v1989
      %v2000 = vsel %vm1025, %v1971, 0
      %v2003 = vsel %vm1025, %v1972, 0
      %v2006 = vsel %vm1025, %v1973, 0
      %v2009 = vsel %vm1025, %v1974, 0
      %2011 = vmatpush.bf16.msra.mxu0 0
      %2012 = vmatpush.bf16.msra.mxu0 0
      %2013 = vmatpush.bf16.msra.mxu0 0
      %2014 = vmatpush.bf16.msra.mxu0 0
      %2015 = vmatpush.bf16.msra.mxu0 %v1994
      %2016 = vmatpush.bf16.msra.mxu0 %v1993
      %2017 = vmatpush.bf16.msra.mxu0 %v1992
      %2018 = vmatpush.bf16.msra.mxu0 %v1991
      %2019 = vmatmul.bf16.gmra.mxu0 %v2000
      %v2020 = vpop.f32.mrf.mxu0
      %v2021 = vadd.f32 0.0, %v2020
      %v2022 = vpop.f32.mrf.mxu0
      %v2023 = vadd.f32 0.0, %v2022
      %2024 = vmatmul.bf16.gmra.mxu0 %v2003
      %v2025 = vpop.f32.mrf.mxu0
      %v2026 = vadd.f32 0.0, %v2025
      %v2027 = vpop.f32.mrf.mxu0
      %v2028 = vadd.f32 0.0, %v2027
      %2029 = vmatmul.bf16.gmra.mxu0 %v2006
      %v2030 = vpop.f32.mrf.mxu0
      %v2031 = vadd.f32 0.0, %v2030
      %v2032 = vpop.f32.mrf.mxu0
      %v2033 = vadd.f32 0.0, %v2032
      %2034 = vmatmul.bf16.gmra.mxu0 %v2009
      %v2035 = vpop.f32.mrf.mxu0
      %v2036 = vadd.f32 0.0, %v2035
      %v2037 = vpop.f32.mrf.mxu0
      %v2038 = vadd.f32 0.0, %v2037
      %2039 = vdwg.mxu0
      %v2040 = vadd.f32 %v1952, %v2021
      %v2041 = vadd.f32 %v1953, %v2023
      %v2042 = vadd.f32 %v1954, %v2026
      %v2043 = vadd.f32 %v1955, %v2028
      %v2044 = vadd.f32 %v1956, %v2031
      %v2045 = vadd.f32 %v1957, %v2033
      %v2046 = vadd.f32 %v1958, %v2036
      %v2047 = vadd.f32 %v1959, %v2038
      %2048 = vst.msk [vmem:[#allocation2] sm:$0xff] %vm1025, %v2040
      %2049 = vst.msk [vmem:[#allocation2 + $0x8] sm:$0xff] %vm1025, %v2041
      %2050 = vst.msk [vmem:[#allocation2 + $0x10] sm:$0xff] %vm1025, %v2042
      %2051 = vst.msk [vmem:[#allocation2 + $0x18] sm:$0xff] %vm1025, %v2043
      %2052 = vst.msk [vmem:[#allocation2 + $0x20] sm:$0xff] %vm1025, %v2044
      %2053 = vst.msk [vmem:[#allocation2 + $0x28] sm:$0xff] %vm1025, %v2045
      %2054 = vst.msk [vmem:[#allocation2 + $0x30] sm:$0xff] %vm1025, %v2046
      %2055 = vst.msk [vmem:[#allocation2 + $0x38] sm:$0xff] %vm1025, %v2047
      %v2056 = vld [vmem:[#allocation2] sm:$0xff]
      %v2057 = vld [vmem:[#allocation2 + $0x8] sm:$0xff]
      %v2058 = vld [vmem:[#allocation2 + $0x10] sm:$0xff]
      %v2059 = vld [vmem:[#allocation2 + $0x18] sm:$0xff]
      %v2060 = vld [vmem:[#allocation2 + $0x20] sm:$0xff]
      %v2061 = vld [vmem:[#allocation2 + $0x28] sm:$0xff]
      %v2062 = vld [vmem:[#allocation2 + $0x30] sm:$0xff]
      %v2063 = vld [vmem:[#allocation2 + $0x38] sm:$0xff]
      %s2064 = scalar_lea.vmem %s2, 224
      %v2065 = vld [vmem:[%s2064] sm:$0xf]
      %v2066 = vld [vmem:[%s2064 + $0x4] sm:$0xf]
      %v2067 = vld [vmem:[%s2064 + $0x8] sm:$0xf]
      %v2068 = vld [vmem:[%s2064 + $0xc] sm:$0xf]
      %v2069 = vld [vmem:[%s2064 + $0x10] sm:$0xf]
      %v2070 = vld [vmem:[%s2064 + $0x14] sm:$0xf]
      %v2071 = vld [vmem:[%s2064 + $0x18] sm:$0xf]
      %v2072 = vld [vmem:[%s2064 + $0x1c] sm:$0xf]
      %v2074 = vunpack.c.l.b16 %v1000
      %v2075 = vpack.c.b16 %v1178, %v1177
      %v2076 = vpack.c.b16 %v1180, %v1179
      %v2077 = vpack.c.b16 %v1182, %v1181
      %v2078 = vpack.c.b16 %v2074, %v1183
      %v2087 = vunpack.c.l.b16 %v2065
      %v2088 = vunpack.c.l.b16 %v2066
      %v2089 = vunpack.c.l.b16 %v2067
      %v2090 = vunpack.c.l.b16 %v2068
      %v2091 = vunpack.c.l.b16 %v2069
      %v2092 = vunpack.c.l.b16 %v2070
      %v2093 = vunpack.c.l.b16 %v2071
      %v2094 = vunpack.c.l.b16 %v2072
      %v2095 = vpack.c.b16 %v2088, %v2087
      %v2096 = vpack.c.b16 %v2090, %v2089
      %v2097 = vpack.c.b16 %v2092, %v2091
      %v2098 = vpack.c.b16 %v2094, %v2093
      %v2104 = vsel %vm1025, %v2075, 0
      %v2107 = vsel %vm1025, %v2076, 0
      %v2110 = vsel %vm1025, %v2077, 0
      %v2113 = vsel %vm1025, %v2078, 0
      %2115 = vmatpush.bf16.msra.mxu0 0
      %2116 = vmatpush.bf16.msra.mxu0 0
      %2117 = vmatpush.bf16.msra.mxu0 0
      %2118 = vmatpush.bf16.msra.mxu0 0
      %2119 = vmatpush.bf16.msra.mxu0 %v2098
      %2120 = vmatpush.bf16.msra.mxu0 %v2097
      %2121 = vmatpush.bf16.msra.mxu0 %v2096
      %2122 = vmatpush.bf16.msra.mxu0 %v2095
      %2123 = vmatmul.bf16.gmra.mxu0 %v2104
      %v2124 = vpop.f32.mrf.mxu0
      %v2125 = vadd.f32 0.0, %v2124
      %v2126 = vpop.f32.mrf.mxu0
      %v2127 = vadd.f32 0.0, %v2126
      %2128 = vmatmul.bf16.gmra.mxu0 %v2107
      %v2129 = vpop.f32.mrf.mxu0
      %v2130 = vadd.f32 0.0, %v2129
      %v2131 = vpop.f32.mrf.mxu0
      %v2132 = vadd.f32 0.0, %v2131
      %2133 = vmatmul.bf16.gmra.mxu0 %v2110
      %v2134 = vpop.f32.mrf.mxu0
      %v2135 = vadd.f32 0.0, %v2134
      %v2136 = vpop.f32.mrf.mxu0
      %v2137 = vadd.f32 0.0, %v2136
      %2138 = vmatmul.bf16.gmra.mxu0 %v2113
      %v2139 = vpop.f32.mrf.mxu0
      %v2140 = vadd.f32 0.0, %v2139
      %v2141 = vpop.f32.mrf.mxu0
      %v2142 = vadd.f32 0.0, %v2141
      %2143 = vdwg.mxu0
      %v2144 = vadd.f32 %v2056, %v2125
      %v2145 = vadd.f32 %v2057, %v2127
      %v2146 = vadd.f32 %v2058, %v2130
      %v2147 = vadd.f32 %v2059, %v2132
      %v2148 = vadd.f32 %v2060, %v2135
      %v2149 = vadd.f32 %v2061, %v2137
      %v2150 = vadd.f32 %v2062, %v2140
      %v2151 = vadd.f32 %v2063, %v2142
      %2152 = vst.msk [vmem:[#allocation2] sm:$0xff] %vm1025, %v2144
      %2153 = vst.msk [vmem:[#allocation2 + $0x8] sm:$0xff] %vm1025, %v2145
      %2154 = vst.msk [vmem:[#allocation2 + $0x10] sm:$0xff] %vm1025, %v2146
      %2155 = vst.msk [vmem:[#allocation2 + $0x18] sm:$0xff] %vm1025, %v2147
      %2156 = vst.msk [vmem:[#allocation2 + $0x20] sm:$0xff] %vm1025, %v2148
      %2157 = vst.msk [vmem:[#allocation2 + $0x28] sm:$0xff] %vm1025, %v2149
      %2158 = vst.msk [vmem:[#allocation2 + $0x30] sm:$0xff] %vm1025, %v2150
      %2159 = vst.msk [vmem:[#allocation2 + $0x38] sm:$0xff] %vm1025, %v2151
      %v2161 = vshrl.u32 %v990, 16
      %v2163 = vrot.slane %v2161, 4
      %v2164 = vshll.u32 %v990, 16
      %v2166 = vrot.slane %v2164, 5
      %v2167 = vor.u32 %v2163, %v2166
      %v2168 = vrot.slane %v2167, 4
      %v2170 = vshll.u32 %v991, 16
      %v2172 = vrot.slane %v2170, 5
      %v2173 = vsel %vm1271, %v2168, %v2172
      %v2174 = vld [vmem:[#allocation2] sm:$0xff]
      %v2175 = vld [vmem:[#allocation2 + $0x8] sm:$0xff]
      %v2176 = vld [vmem:[#allocation2 + $0x10] sm:$0xff]
      %v2177 = vld [vmem:[#allocation2 + $0x18] sm:$0xff]
      %v2178 = vld [vmem:[#allocation2 + $0x20] sm:$0xff]
      %v2179 = vld [vmem:[#allocation2 + $0x28] sm:$0xff]
      %v2180 = vld [vmem:[#allocation2 + $0x30] sm:$0xff]
      %v2181 = vld [vmem:[#allocation2 + $0x38] sm:$0xff]
      %s2182 = scalar_lea.vmem %s2, 256
      %v2183 = vld [vmem:[%s2182] sm:$0xf]
      %v2184 = vld [vmem:[%s2182 + $0x4] sm:$0xf]
      %v2185 = vld [vmem:[%s2182 + $0x8] sm:$0xf]
      %v2186 = vld [vmem:[%s2182 + $0xc] sm:$0xf]
      %v2187 = vld [vmem:[%s2182 + $0x10] sm:$0xf]
      %v2188 = vld [vmem:[%s2182 + $0x14] sm:$0xf]
      %v2189 = vld [vmem:[%s2182 + $0x18] sm:$0xf]
      %v2190 = vld [vmem:[%s2182 + $0x1c] sm:$0xf]
      %v2191 = vunpack.c.l.b16 %v2173
      %v2192 = vpack.c.b16 %v1403, %v1402
      %v2193 = vpack.c.b16 %v1405, %v1404
      %v2194 = vpack.c.b16 %v1407, %v1406
      %v2195 = vpack.c.b16 %v2191, %v1408
      %v2204 = vunpack.c.l.b16 %v2183
      %v2205 = vunpack.c.l.b16 %v2184
      %v2206 = vunpack.c.l.b16 %v2185
      %v2207 = vunpack.c.l.b16 %v2186
      %v2208 = vunpack.c.l.b16 %v2187
      %v2209 = vunpack.c.l.b16 %v2188
      %v2210 = vunpack.c.l.b16 %v2189
      %v2211 = vunpack.c.l.b16 %v2190
      %v2212 = vpack.c.b16 %v2205, %v2204
      %v2213 = vpack.c.b16 %v2207, %v2206
      %v2214 = vpack.c.b16 %v2209, %v2208
      %v2215 = vpack.c.b16 %v2211, %v2210
      %v2221 = vsel %vm1025, %v2192, 0
      %v2224 = vsel %vm1025, %v2193, 0
      %v2227 = vsel %vm1025, %v2194, 0
      %v2230 = vsel %vm1025, %v2195, 0
      %2232 = vmatpush.bf16.msra.mxu0 0
      %2233 = vmatpush.bf16.msra.mxu0 0
      %2234 = vmatpush.bf16.msra.mxu0 0
      %2235 = vmatpush.bf16.msra.mxu0 0
      %2236 = vmatpush.bf16.msra.mxu0 %v2215
      %2237 = vmatpush.bf16.msra.mxu0 %v2214
      %2238 = vmatpush.bf16.msra.mxu0 %v2213
      %2239 = vmatpush.bf16.msra.mxu0 %v2212
      %2240 = vmatmul.bf16.gmra.mxu0 %v2221
      %v2241 = vpop.f32.mrf.mxu0
      %v2242 = vadd.f32 0.0, %v2241
      %v2243 = vpop.f32.mrf.mxu0
      %v2244 = vadd.f32 0.0, %v2243
      %2245 = vmatmul.bf16.gmra.mxu0 %v2224
      %v2246 = vpop.f32.mrf.mxu0
      %v2247 = vadd.f32 0.0, %v2246
      %v2248 = vpop.f32.mrf.mxu0
      %v2249 = vadd.f32 0.0, %v2248
      %2250 = vmatmul.bf16.gmra.mxu0 %v2227
      %v2251 = vpop.f32.mrf.mxu0
      %v2252 = vadd.f32 0.0, %v2251
      %v2253 = vpop.f32.mrf.mxu0
      %v2254 = vadd.f32 0.0, %v2253
      %2255 = vmatmul.bf16.gmra.mxu0 %v2230
      %v2256 = vpop.f32.mrf.mxu0
      %v2257 = vadd.f32 0.0, %v2256
      %v2258 = vpop.f32.mrf.mxu0
      %v2259 = vadd.f32 0.0, %v2258
      %2260 = vdwg.mxu0
      %v2261 = vadd.f32 %v2174, %v2242
      %v2262 = vadd.f32 %v2175, %v2244
      %v2263 = vadd.f32 %v2176, %v2247
      %v2264 = vadd.f32 %v2177, %v2249
      %v2265 = vadd.f32 %v2178, %v2252
      %v2266 = vadd.f32 %v2179, %v2254
      %v2267 = vadd.f32 %v2180, %v2257
      %v2268 = vadd.f32 %v2181, %v2259
      %2269 = vst.msk [vmem:[#allocation2] sm:$0xff] %vm1025, %v2261
      %2270 = vst.msk [vmem:[#allocation2 + $0x8] sm:$0xff] %vm1025, %v2262
      %2271 = vst.msk [vmem:[#allocation2 + $0x10] sm:$0xff] %vm1025, %v2263
      %2272 = vst.msk [vmem:[#allocation2 + $0x18] sm:$0xff] %vm1025, %v2264
      %2273 = vst.msk [vmem:[#allocation2 + $0x20] sm:$0xff] %vm1025, %v2265
      %2274 = vst.msk [vmem:[#allocation2 + $0x28] sm:$0xff] %vm1025, %v2266
      %2275 = vst.msk [vmem:[#allocation2 + $0x30] sm:$0xff] %vm1025, %v2267
      %2276 = vst.msk [vmem:[#allocation2 + $0x38] sm:$0xff] %vm1025, %v2268
      %v2277 = vld [vmem:[#allocation2] sm:$0xff]
      %v2278 = vld [vmem:[#allocation2 + $0x8] sm:$0xff]
      %v2279 = vld [vmem:[#allocation2 + $0x10] sm:$0xff]
      %v2280 = vld [vmem:[#allocation2 + $0x18] sm:$0xff]
      %v2281 = vld [vmem:[#allocation2 + $0x20] sm:$0xff]
      %v2282 = vld [vmem:[#allocation2 + $0x28] sm:$0xff]
      %v2283 = vld [vmem:[#allocation2 + $0x30] sm:$0xff]
      %v2284 = vld [vmem:[#allocation2 + $0x38] sm:$0xff]
      %v2285 = vpack.c.bf16 %v2277, %v2277
      %v2286 = vpack.c.bf16 %v2278, %v2278
      %v2287 = vpack.c.bf16 %v2279, %v2279
      %v2288 = vpack.c.bf16 %v2280, %v2280
      %v2289 = vpack.c.bf16 %v2281, %v2281
      %v2290 = vpack.c.bf16 %v2282, %v2282
      %v2291 = vpack.c.bf16 %v2283, %v2283
      %v2292 = vpack.c.bf16 %v2284, %v2284
      %vm2293 = vcmask 519168
      %2294 = vst.msk [vmem:[%s288] sm:$0xf] %vm2293, %v2285
      %2295 = vst.msk [vmem:[%s288 + $0x4] sm:$0xf] %vm2293, %v2286
      %2296 = vst.msk [vmem:[%s288 + $0x8] sm:$0xf] %vm2293, %v2287
      %2297 = vst.msk [vmem:[%s288 + $0xc] sm:$0xf] %vm2293, %v2288
      %2298 = vst.msk [vmem:[%s288 + $0x10] sm:$0xf] %vm2293, %v2289
      %2299 = vst.msk [vmem:[%s288 + $0x14] sm:$0xf] %vm2293, %v2290
      %2300 = vst.msk [vmem:[%s288 + $0x18] sm:$0xf] %vm2293, %v2291
      %2301 = vst.msk [vmem:[%s288 + $0x1c] sm:$0xf] %vm2293, %v2292
      %v2302 = vsel %vm1025, %v2277, 0.0
      %v2303 = vsel %vm1025, %v2278, 0.0
      %v2304 = vadd.f32 %v2302, %v2303
      %v2305 = vsel %vm1025, %v2279, 0.0
      %v2306 = vadd.f32 %v2304, %v2305
      %v2307 = vsel %vm1025, %v2280, 0.0
      %v2308 = vadd.f32 %v2306, %v2307
      %v2309 = vsel %vm1025, %v2281, 0.0
      %v2310 = vadd.f32 %v2308, %v2309
      %v2311 = vsel %vm1025, %v2282, 0.0
      %v2312 = vadd.f32 %v2310, %v2311
      %v2313 = vsel %vm1025, %v2283, 0.0
      %v2314 = vadd.f32 %v2312, %v2313
      %v2315 = vsel %vm1025, %v2284, 0.0
      %v2316 = vadd.f32 %v2314, %v2315
      %v2317 = vrot.slane %v2316, 4
      %v2318 = vadd.f32 %v2316, %v2317
      %v2319 = vrot.slane %v2318, 2
      %v2320 = vadd.f32 %v2318, %v2319
      %v2321 = vrot.slane %v2320, 1
      %v2322 = vadd.f32 %v2320, %v2321
      %v2323 = vmul.f32 %v2277, %v2277
      %v2324 = vmul.f32 %v2278, %v2278
      %v2325 = vmul.f32 %v2279, %v2279
      %v2326 = vmul.f32 %v2280, %v2280
      %v2327 = vmul.f32 %v2281, %v2281
      %v2328 = vmul.f32 %v2282, %v2282
      %v2329 = vmul.f32 %v2283, %v2283
      %v2330 = vmul.f32 %v2284, %v2284
      %v2331 = vsel %vm1025, %v2323, 0.0
      %v2332 = vsel %vm1025, %v2324, 0.0
      %v2333 = vadd.f32 %v2331, %v2332
      %v2334 = vsel %vm1025, %v2325, 0.0
      %v2335 = vadd.f32 %v2333, %v2334
      %v2336 = vsel %vm1025, %v2326, 0.0
      %v2337 = vadd.f32 %v2335, %v2336
      %v2338 = vsel %vm1025, %v2327, 0.0
      %v2339 = vadd.f32 %v2337, %v2338
      %v2340 = vsel %vm1025, %v2328, 0.0
      %v2341 = vadd.f32 %v2339, %v2340
      %v2342 = vsel %vm1025, %v2329, 0.0
      %v2343 = vadd.f32 %v2341, %v2342
      %v2344 = vsel %vm1025, %v2330, 0.0
      %v2345 = vadd.f32 %v2343, %v2344
      %v2346 = vrot.slane %v2345, 4
      %v2347 = vadd.f32 %v2345, %v2346
      %v2348 = vrot.slane %v2347, 2
      %v2349 = vadd.f32 %v2347, %v2348
      %v2350 = vrot.slane %v2349, 1
      %v2351 = vadd.f32 %v2349, %v2350
      %vm2352 = vcmask 1040384
      %v2353 = vsel %vm2352, %v2322, %v2351
      %vm2354 = vcmask 517120
      %2355 = vst.msk [vmem:[%s294] sm:$0x3] %vm2354, %v2353
      %s2356 = smul.u32 8, %s23
      %p2357 = scmp.lt.s32.totalorder %s22, 1
      %s2358 = scalar_select %p2357, %s22, 1
      %p2359 = scmp.lt.s32.totalorder %s2356, 7
      %s2360 = scalar_select %p2359, %s2356, 7
      %s2361 = smul.addr %s2358, 8
      %s2362 = sadd.s32 %s2360, %s2361
      %s2363 = smul.addr %s2362, 4
      %s2364 = scalar_lea.vmem %s5, %s2363
      %s2365 = sadd.s32 %s22, %s23
      %p2366 = scmp.lt.s32.totalorder %s2365, 1
      %s2367 = scalar_select %p2366, %s2365, 1
      %s2368 = smul.addr %s2367, 2
      %s2369 = scalar_lea.vmem %s6, %s2368
      // Predicated region
      $region41: #{bottleneck_forward.6} parent=39 // pred_check
        %p2370 = pneg %p160
      $region42: #{bottleneck_forward.6} parent=39 // pred_check_branch
        %2372 = sbr.rel (%p2370) target = $region44
      $region43: #{bottleneck_forward.6} parent=39 // pred_region
        %s2373 = smul.u32 8, %s23
      $region44: #{bottleneck_forward.6} parent=39 // pred_fallthru
        _
      // Predicated region
      $region45: #{bottleneck_forward.6} parent=39 // pred_check
        %p2374 = pneg %p188
      $region46: #{bottleneck_forward.6} parent=39 // pred_check_branch
        %2376 = sbr.rel (%p2374) target = $region48
      $region47: #{bottleneck_forward.6} parent=39 // pred_region
        %s2377 = sadd.s32 %s22, %s23
      $region48: #{bottleneck_forward.6} parent=39 // pred_fallthru
        _
    $region40: #{bottleneck_forward.6} parent=5 // pred_fallthru
      _
    %p2378 = scmp.le.s32.totalorder 2, %s13
    // Predicated region
    $region49: #{bottleneck_forward.6} parent=5 // pred_check
      %p2379 = pneg %p2378
    $region50: #{bottleneck_forward.6} parent=5 // pred_check_branch
      %2381 = sbr.rel (%p2379) target = $region52
    $region51: #{bottleneck_forward.6} parent=5 // pred_region
      %s2382 = ssub.s32 %s13, 2
      // Predicated region
      $region53: #{bottleneck_forward.6} parent=51 // pred_check
        %p2383 = pneg %p166
      $region54: #{bottleneck_forward.6} parent=51 // pred_check_branch
        %2385 = sbr.rel (%p2383) target = $region56
      $region55: #{bottleneck_forward.6} parent=51 // pred_region
        %s2386 = smul.u32 8, %s25
        %p2387 = scmp.lt.s32.totalorder %s24, 1
        %s2388 = scalar_select %p2387, %s24, 1
        %p2389 = scmp.lt.s32.totalorder %s2386, 7
        %s2390 = scalar_select %p2389, %s2386, 7
        %s2391 = smul.addr %s2388, 8
        %s2392 = sadd.s32 %s2390, %s2391
        %s2393 = smul.addr %s2392, 4
        %s2394 = scalar_lea.vmem %s5, %s2393
      $region56: #{bottleneck_forward.6} parent=51 // pred_fallthru
        _
      // Predicated region
      $region57: #{bottleneck_forward.6} parent=51 // pred_check
        %p2395 = pneg %p194
      $region58: #{bottleneck_forward.6} parent=51 // pred_check_branch
        %2397 = sbr.rel (%p2395) target = $region60
      $region59: #{bottleneck_forward.6} parent=51 // pred_region
        %s2398 = sadd.s32 %s24, %s25
        %p2399 = scmp.lt.s32.totalorder %s2398, 1
        %s2400 = scalar_select %p2399, %s2398, 1
        %s2401 = smul.addr %s2400, 2
        %s2402 = scalar_lea.vmem %s6, %s2401
      $region60: #{bottleneck_forward.6} parent=51 // pred_fallthru
        _
    $region52: #{bottleneck_forward.6} parent=5 // pred_fallthru
      _
  $region6: #{bottleneck_forward.6} parent=0 // loop_footer
    %s17 = sadd.s32 1, %s13
  $region7: #{bottleneck_forward.6} parent=0 // loop_footer_branch
    %12 = sbr.rel target = $region3
  $region8: #{bottleneck_forward.6} parent=0 // loop_exit
    _

</llo_original>
